<compile_context>
chip_gen: v5e
topology: v5e:2x2
jax: 0.10.0
libtpu: 0.0.40
codegen_flags: <defaults>
</compile_context>

<pallas_src>
import numpy as np
import jax
import jax.numpy as jnp
from jax.experimental import pallas as pl
from jax.experimental.pallas import tpu as pltpu

# -----------------------------------------------------------------------------
# Configuration (small synthetic shapes)
# -----------------------------------------------------------------------------
B = 2                 # images
C = 8                 # num_channels of the FPN feature map
H = W = 8             # spatial size of the feature map
HIDDEN = 32           # hidden_state_size (object feature size)
REP = 64              # representation_size
NUM_CLASSES = 16      # target (action) classes
NUM_OBJ = 5           # object categories
HUMAN_IDX = 0
N_BOXES = 8           # (padded) boxes per image
NP = N_BOXES * N_BOXES          # padded pair grid, row-major (x, y)
LANES = 128                     # lane-dense output / side-input width
PRED_PAD = LANES                # predictor output padded to 128 lanes
SPAT_PAD = LANES                # spatial encoding 36 -> 128 lanes
NEG_BIAS = -1e9
P_EVAL = 2.8          # score exponent in eval mode (self.training == False)

OBJECT_CLASS_TO_TARGET_CLASS = [[], [0, 1], [2, 3, 4], [5], [7, 8]]

# Constant pair-selection one-hot matrices: pair p -> (x = p // N, y = p % N).
_X_ALL = np.arange(NP) // N_BOXES
_Y_ALL = np.arange(NP) % N_BOXES
_EX = np.zeros((NP, N_BOXES), np.float32); _EX[np.arange(NP), _X_ALL] = 1.0
_EY = np.zeros((NP, N_BOXES), np.float32); _EY[np.arange(NP), _Y_ALL] = 1.0
_EXT = np.ascontiguousarray(_EX.T)


# -----------------------------------------------------------------------------
# Host-side weight packer: many (K, N) matrices -> one aligned 2-D blob
# -----------------------------------------------------------------------------
class _Packer:
    def __init__(self, cols, row_align):
        self.cols = cols
        self.row_align = row_align
        self.chunks = []
        self.offsets = {}
        self.rows = 0

    def add(self, name, arr):
        a = np.asarray(arr, np.float32)
        if a.ndim == 1:
            a = a[None, :]
        r, c = a.shape
        assert c <= self.cols, (name, c, self.cols)
        rp = ((r + self.row_align - 1) // self.row_align) * self.row_align
        buf = np.zeros((rp, self.cols), np.float32)
        buf[:r, :c] = a
        self.chunks.append(buf)
        self.offsets[name] = (self.rows, r, c)
        self.rows += rp

    def finalize(self, dtype):
        blob = np.concatenate(self.chunks, axis=0)
        return jnp.asarray(blob, dtype), self.offsets


# -----------------------------------------------------------------------------
# The fused Pallas kernel (one grid step == one image)
# -----------------------------------------------------------------------------
def _build_kernel(wn_off, ww_off, pb_off):
    f32 = jnp.float32
    bf16 = jnp.bfloat16

    def kernel(spat_ref, text_ref, unary_ref, side_ref,   # per-image inputs
               wn_ref, ww_ref, pb_ref,                    # packed weight blobs
               logits_ref, coop_ref, comp_ref):           # lane-dense outputs

        # static, aligned slices of the packed blobs (zero runtime cost)
        def Wn(name):
            off, r, c = wn_off[name]
            return wn_ref[off:off + r, 0:c]

        def Ww(name):
            off, r, c = ww_off[name]
            return ww_ref[off:off + r, 0:c]

        def P(name):
            off, r, c = pb_off[name]
            return pb_ref[off:off + r, 0:c]

        def mxu(a, b):
            # bf16 operands, f32 accumulation (MXU-native on v5e/v6e/v7x)
            return jnp.dot(a.astype(bf16), b.astype(bf16),
                           preferred_element_type=f32)

        def qkt(q, k):
            # q @ k.T without materializing a transpose: contract last dims
            return jax.lax.dot_general(
                q.astype(bf16), k.astype(bf16),
                (((1,), (1,)), ((), ())), preferred_element_type=f32)

        def layer_norm(x, g, b, eps=1e-5):
            mu = jnp.mean(x, axis=-1, keepdims=True)
            var = jnp.mean((x - mu) ** 2, axis=-1, keepdims=True)
            return (x - mu) * jax.lax.rsqrt(var + eps) * g + b

        def softmax_rows(logits):
            m = jnp.max(logits, axis=-1, keepdims=True)
            e = jnp.exp(logits - m)
            return e / jnp.sum(e, axis=-1, keepdims=True)   # exact reciprocal

        spat_in = spat_ref[0]                    # (NP, 128) zero-padded past 36
        text = text_ref[0]                       # (NP, REP)
        u = unary_ref[0]                         # (N, HIDDEN)
        side = side_ref[0]                       # (8, 128) packed side inputs
        glob = side[0:1, 0:C]                    # (1, C)   global feature
        box_bias = side[1:2, 0:N_BOXES]          # (1, N)   0 / -1e9
        pair_bias = side[2:3, 0:NP]              # (1, NP)  0 / -1e9

        ex = Wn("ex")                            # (NP, N) one-hot  p -> p // N
        ey = Wn("ey")                            # (NP, N) one-hot  p -> p %  N
        ext = Wn("ext")                          # (N, NP)

        # ---- spatial head: Linear(36,128)-ReLU-Linear(128,256)-ReLU-Linear(256,REP)-ReLU
        hh = jax.nn.relu(mxu(spat_in, Wn("sw1")) + P("sb1"))
        hh = jax.nn.relu(mxu(hh, Ww("sw2")) + P("sb2"))
        spat = jax.nn.relu(mxu(hh, Wn("sw3")) + P("sb3"))           # (NP, REP)

        # ---- coop encoder (2 layers, statically unrolled)
        # TODO(synk): ModifiedEncoder definition is not provided; approximated
        # with single-head self-attention layers whose logits receive an
        # additive bias projected from the pairwise spatial features.
        scale_c = 1.0 / float(np.sqrt(HIDDEN))
        coop_maps = []
        for l in range(2):
            pfx = "c%d_" % l
            # bias[i, j] = spat[i*N + j, :] @ wbias   (via one-hot re-layout)
            v_b = jnp.sum(spat * P(pfx + "wbias"), axis=-1, keepdims=True)   # (NP,1)
            bias = jnp.dot(ext.astype(f32), ey.astype(f32) * v_b,
                           preferred_element_type=f32)                      # (N, N)
            q = mxu(u, Wn(pfx + "wq"))                                       # (N, HIDDEN)
            k = mxu(u, Wn(pfx + "wk"))
            val = mxu(u, Wn(pfx + "wv"))
            logits_c = qkt(q, k) * scale_c + bias + box_bias                 # (N, N)
            attn = softmax_rows(logits_c)
            ctx = mxu(mxu(attn, val), Wn(pfx + "wo"))
            h1 = layer_norm(u + ctx, P(pfx + "g1"), P(pfx + "be1"))
            ff = mxu(jax.nn.relu(mxu(h1, Wn(pfx + "w1")) + P(pfx + "b1")),
                     Wn(pfx + "w2")) + P(pfx + "b2")
            u = layer_norm(h1 + ff, P(pfx + "g2"), P(pfx + "be2"))
            coop_maps.append(attn)

        # one lane-dense (8, 128) store for both coop attention maps
        coop_ref[0] = jnp.concatenate(
            coop_maps + [jnp.zeros((N_BOXES, LANES - 2 * N_BOXES), f32)], axis=1)

        # ---- fused MultiBranchFusion: [mbf(app pair) | mbf_g(global)] in one pass
        # TODO(synk): MultiBranchFusion internals are not provided; approximated
        # as relu(relu((A@W1+b1) * (S@W2+b2)) @ W3 + b3) with mbf / mbf_g fused
        # via block-concatenated / block-diagonal weights.
        mixed = text + spat                                                  # (NP, REP)
        # gather of pair endpoints folded with fc1: a_x[p] = (u@W1x)[p//N], etc.
        a_x = mxu(ex, mxu(u, Wn("m_w1x")))                                   # (NP, 2*REP)
        a_y = mxu(ey, mxu(u, Wn("m_w1y")))
        g_row = mxu(glob, Wn("m_w1g"))                                       # (1, 2*REP)
        a_br = a_x + a_y + g_row + P("m_b1")
        s_br = mxu(mixed, Wn("m_w2")) + P("m_b2")
        h_br = jax.nn.relu(a_br * s_br)
        tok = jax.nn.relu(mxu(h_br, Wn("m_w3")) + P("m_b3"))                 # (NP, 2*REP)

        # ---- comp encoder layer
        # TODO(synk): pocket.models.TransformerEncoderLayer (multi-head) is not
        # provided; approximated as a single-head post-LN encoder layer with
        # invalid / padded pairs masked out of the attention columns.
        scale_p = 1.0 / float(np.sqrt(2 * REP))
        q2 = mxu(tok, Wn("p_wq"))
        k2 = mxu(tok, Wn("p_wk"))
        logits_p = qkt(q2, k2) * scale_p + pair_bias                         # (NP, NP)
        attn2 = softmax_rows(logits_p)
        comp_ref[0] = jnp.concatenate(
            [attn2, jnp.zeros((NP, LANES - NP), f32)], axis=1)               # lane-dense
        v2 = mxu(tok, Wn("p_wv"))
        ctx2 = mxu(mxu(attn2, v2), Wn("p_wo"))
        h2 = layer_norm(tok + ctx2, P("p_g1"), P("p_be1"))
        ff2 = mxu(jax.nn.relu(mxu(h2, Ww("p_w1")) + P("p_b1")),
                  Wn("p_w2")) + P("p_b2")
        tok2 = layer_norm(h2 + ff2, P("p_g2"), P("p_be2"))

        # ---- box-pair predictor, 128-lane dense (sliced to NUM_CLASSES outside)
        logits_ref[0] = mxu(tok2, Wn("pred_w")) + P("pred_b")

    return kernel


# -----------------------------------------------------------------------------
# pallas_call wrapper: one launch, grid over images (parallel -> both v7x TCs)
# -----------------------------------------------------------------------------
def fused_interaction_call(batched, params):
    kernel = _build_kernel(params["wn_off"], params["ww_off"], params["pb_off"])
    per_image = [batched[k] for k in ("spat", "text", "unary", "side")]
    blobs = [params["wn_blob"], params["ww_blob"], params["pb_blob"]]
    nb = per_image[0].shape[0]

    def img_spec(a):
        blk = (1,) + tuple(a.shape[1:])
        nz = a.ndim - 1
        return pl.BlockSpec(blk, lambda b, _n=nz: (b,) + (0,) * _n)

    def full_spec(a):
        nd = a.ndim
        return pl.BlockSpec(tuple(a.shape), lambda b, _n=nd: (0,) * _n)

    in_specs = [img_spec(a) for a in per_image] + [full_spec(a) for a in blobs]
    out_shape = (
        jax.ShapeDtypeStruct((nb, NP, PRED_PAD), jnp.float32),      # logits (padded)
        jax.ShapeDtypeStruct((nb, N_BOXES, LANES), jnp.float32),    # 2 coop attn maps
        jax.ShapeDtypeStruct((nb, NP, LANES), jnp.float32),         # comp attn (padded)
    )
    out_specs = (
        pl.BlockSpec((1, NP, PRED_PAD), lambda b: (b, 0, 0)),
        pl.BlockSpec((1, N_BOXES, LANES), lambda b: (b, 0, 0)),
        pl.BlockSpec((1, NP, LANES), lambda b: (b, 0, 0)),
    )
    return pl.pallas_call(
        kernel,
        out_shape=out_shape,
        grid=(nb,),
        in_specs=in_specs,
        out_specs=out_specs,
        compiler_params=pltpu.CompilerParams(
            dimension_semantics=("parallel",)),          # v7x: 2 TCs get work
        cost_estimate=pl.CostEstimate(
            flops=35_000_000 * nb,
            transcendentals=4_500 * nb,
            bytes_accessed=1_200_000 + 300_000 * nb),
    )(*(per_image + blobs))


# -----------------------------------------------------------------------------
# Plain JAX / numpy glue
# -----------------------------------------------------------------------------
def compute_spatial_encodings(b1, b2, shape, eps=1e-10):
    # pocket.ops.compute_spatial_encodings for a single image's paired boxes
    h, w = shape[0], shape[1]
    c1_x = (b1[:, 0] + b1[:, 2]) / 2; c1_y = (b1[:, 1] + b1[:, 3]) / 2
    c2_x = (b2[:, 0] + b2[:, 2]) / 2; c2_y = (b2[:, 1] + b2[:, 3]) / 2
    b1_w = b1[:, 2] - b1[:, 0]; b1_h = b1[:, 3] - b1[:, 1]
    b2_w = b2[:, 2] - b2[:, 0]; b2_h = b2[:, 3] - b2[:, 1]
    d_x = jnp.abs(c2_x - c1_x) / (b1_w + eps)
    d_y = jnp.abs(c2_y - c1_y) / (b1_h + eps)
    lt = jnp.maximum(b1[:, :2], b2[:, :2])
    rb = jnp.minimum(b1[:, 2:], b2[:, 2:])
    wh = jnp.clip(rb - lt, 0.0)
    inter = wh[:, 0] * wh[:, 1]
    area1 = b1_w * b1_h
    area2 = b2_w * b2_h
    iou = inter / (area1 + area2 - inter + eps)
    f = jnp.stack([
        c1_x / w, c1_y / h, c2_x / w, c2_y / h,
        b1_w / w, b1_h / h, b2_w / w, b2_h / h,
        area1 / (h * w), area2 / (h * w), area2 / (area1 + eps),
        b1_w / (b1_h + eps), b2_w / (b2_h + eps), iou,
        (c2_x > c1_x).astype(jnp.float32) * d_x,
        (c2_x < c1_x).astype(jnp.float32) * d_x,
        (c2_y > c1_y).astype(jnp.float32) * d_y,
        (c2_y < c1_y).astype(jnp.float32) * d_y,
    ], axis=1)
    f36 = jnp.concatenate([f, jnp.log(f + eps)], axis=1)        # (n_pairs, 36)
    # zero-pad 36 -> 128 lanes so the DMA and the first matmul are tile-aligned
    return jnp.pad(f36, ((0, 0), (0, SPAT_PAD - 36)))


def init_params(key):
    ks = iter(jax.random.split(key, 64))

    def nrm(shape):
        return np.asarray(0.02 * jax.random.normal(next(ks), shape, jnp.float32))

    wn = _Packer(128, 16)     # narrow bf16 weight blob (16-row aligned: bf16 tiles)
    ww = _Packer(256, 16)     # wide bf16 weight blob
    pb = _Packer(256, 8)      # f32 bias / LayerNorm / scale blob

    # spatial head (first weight zero-padded to K=128 to match padded encodings)
    sw1 = np.zeros((SPAT_PAD, 128), np.float32); sw1[:36] = nrm((36, 128))
    wn.add("sw1", sw1); pb.add("sb1", nrm((128,)))
    ww.add("sw2", nrm((128, 256))); pb.add("sb2", nrm((256,)))
    wn.add("sw3", nrm((256, REP))); pb.add("sb3", nrm((REP,)))

    # coop encoder (2 layers) + per-layer spatial bias projection
    for l in range(2):
        pfx = "c%d_" % l
        wn.add(pfx + "wq", nrm((HIDDEN, HIDDEN)))
        wn.add(pfx + "wk", nrm((HIDDEN, HIDDEN)))
        wn.add(pfx + "wv", nrm((HIDDEN, HIDDEN)))
        wn.add(pfx + "wo", nrm((HIDDEN, HIDDEN)))
        wn.add(pfx + "w1", nrm((HIDDEN, 2 * HIDDEN))); pb.add(pfx + "b1", nrm((2 * HIDDEN,)))
        wn.add(pfx + "w2", nrm((2 * HIDDEN, HIDDEN))); pb.add(pfx + "b2", nrm((HIDDEN,)))
        pb.add(pfx + "g1", np.ones(HIDDEN, np.float32))
        pb.add(pfx + "be1", np.zeros(HIDDEN, np.float32))
        pb.add(pfx + "g2", np.ones(HIDDEN, np.float32))
        pb.add(pfx + "be2", np.zeros(HIDDEN, np.float32))
        pb.add(pfx + "wbias", nrm((REP,)))

    # one-hot pair-selection matrices (values 0/1 -> exact in bf16)
    wn.add("ex", _EX); wn.add("ey", _EY); wn.add("ext", _EXT)

    # MultiBranchFusion (mbf ++ mbf_g fused via block-concatenated / block-diag weights)
    aw1, ab1 = nrm((2 * HIDDEN, REP)), nrm((REP,))
    aw2, ab2 = nrm((REP, REP)), nrm((REP,))
    aw3, ab3 = nrm((REP, REP)), nrm((REP,))
    gw1, gb1 = nrm((C, REP)), nrm((REP,))
    gw2, gb2 = nrm((REP, REP)), nrm((REP,))
    gw3, gb3 = nrm((REP, REP)), nrm((REP,))
    z = np.zeros
    wn.add("m_w1x", np.concatenate([aw1[:HIDDEN], z((HIDDEN, REP), np.float32)], axis=1))
    wn.add("m_w1y", np.concatenate([aw1[HIDDEN:], z((HIDDEN, REP), np.float32)], axis=1))
    wn.add("m_w1g", np.concatenate([z((C, REP), np.float32), gw1], axis=1))
    wn.add("m_w2", np.concatenate([aw2, gw2], axis=1))
    wn.add("m_w3", np.block([[aw3, z((REP, REP), np.float32)],
                             [z((REP, REP), np.float32), gw3]]))
    pb.add("m_b1", np.concatenate([ab1, gb1]))
    pb.add("m_b2", np.concatenate([ab2, gb2]))
    pb.add("m_b3", np.concatenate([ab3, gb3]))

    # comp encoder
    d2 = 2 * REP
    wn.add("p_wq", nrm((d2, d2)))
    wn.add("p_wk", nrm((d2, d2)))
    wn.add("p_wv", nrm((d2, d2)))
    wn.add("p_wo", nrm((d2, d2)))
    ww.add("p_w1", nrm((d2, 4 * REP))); pb.add("p_b1", nrm((4 * REP,)))
    wn.add("p_w2", nrm((4 * REP, d2))); pb.add("p_b2", nrm((d2,)))
    pb.add("p_g1", np.ones(d2, np.float32)); pb.add("p_be1", np.zeros(d2, np.float32))
    pb.add("p_g2", np.ones(d2, np.float32)); pb.add("p_be2", np.zeros(d2, np.float32))

    # box_pair_predictor, zero-padded to 128 output lanes (sliced to 16 outside)
    pred_w = np.zeros((d2, PRED_PAD), np.float32); pred_w[:, :NUM_CLASSES] = nrm((d2, NUM_CLASSES))
    pred_b = np.zeros(PRED_PAD, np.float32); pred_b[:NUM_CLASSES] = nrm((NUM_CLASSES,))
    wn.add("pred_w", pred_w); pb.add("pred_b", pred_b)

    wn_blob, wn_off = wn.finalize(jnp.bfloat16)
    ww_blob, ww_off = ww.finalize(jnp.bfloat16)
    pb_blob, pb_off = pb.finalize(jnp.float32)

    # TODO(synk): senmatic_spatial_feature definition is not provided;
    # approximated with a deterministic per-object-class embedding lookup.
    label_embed = jnp.asarray(nrm((NUM_OBJ, REP)))

    mask = np.zeros((NUM_OBJ, NUM_CLASSES), np.float32)
    for ci, tgts in enumerate(OBJECT_CLASS_TO_TARGET_CLASS):
        mask[ci, tgts] = 1.0

    return dict(wn_blob=wn_blob, wn_off=wn_off,
                ww_blob=ww_blob, ww_off=ww_off,
                pb_blob=pb_blob, pb_off=pb_off,
                label_embed=label_embed, prior_mask=jnp.asarray(mask))


def _prep_image(params, global_feat_b, image_shape_b, props):
    boxes, scores = props["boxes"], props["scores"]
    labels, unary = np.asarray(props["labels"]), props["hidden_states"]
    is_human = labels == HUMAN_IDX
    n_h = int(is_human.sum())
    n = int(boxes.shape[0])
    assert n <= N_BOXES, "increase N_BOXES"

    if n_h > 0 and not np.all(labels[:n_h] == HUMAN_IDX):
        perm = np.concatenate([np.nonzero(is_human)[0], np.nonzero(~is_human)[0]])
        boxes, scores, unary, labels = boxes[perm], scores[perm], unary[perm], labels[perm]

    valid = not (n_h == 0 or n <= 1)

    pad = N_BOXES - n
    if pad:
        boxes_p = jnp.concatenate(
            [boxes, jnp.tile(jnp.asarray([[0.0, 0.0, 1.0, 1.0]], jnp.float32), (pad, 1))], 0)
        unary_p = jnp.concatenate([unary, jnp.zeros((pad, HIDDEN), jnp.float32)], 0)
        labels_p = np.concatenate([labels, np.zeros((pad,), labels.dtype)])
    else:
        boxes_p, unary_p, labels_p = boxes, unary, labels

    spat = compute_spatial_encodings(boxes_p[_X_ALL], boxes_p[_Y_ALL], image_shape_b)  # (NP, 128)
    text = params["label_embed"][labels_p[_Y_ALL]]                                     # (NP, REP)

    if valid:
        xg, yg = np.meshgrid(np.arange(n), np.arange(n), indexing="ij")
        keep = np.logical_and(xg != yg, xg < n_h)
        x_keep, y_keep = np.nonzero(keep)
        if len(x_keep) == 0:
            raise ValueError("There are no valid human-object pairs")
    else:
        x_keep = np.zeros((0,), np.int64)
        y_keep = np.zeros((0,), np.int64)

    # pack all tiny per-image side data into one lane-dense (8, 128) array
    side = np.zeros((8, LANES), np.float32)
    side[0, :C] = np.asarray(global_feat_b)                  # global feature
    side[1, :N_BOXES] = NEG_BIAS                             # box validity bias
    side[1, :n] = 0.0
    side[2, :NP] = NEG_BIAS                                  # pair validity bias
    side[2, x_keep * N_BOXES + y_keep] = 0.0

    return dict(spat=spat, text=text, unary=unary_p, side=side,
                x_keep=x_keep, y_keep=y_keep, labels=labels, scores=scores,
                valid=valid, n=n)


def interaction_head_forward(params, features, image_shapes, region_props):
    # AdaptiveAvgPool2d(1) + flatten: tiny reduce, plain JAX (no kernel launch)
    global_features = jnp.mean(features, axis=(2, 3))                     # (B, C)

    preps = [_prep_image(params, global_features[b], image_shapes[b], props)
             for b, props in enumerate(region_props)]

    batched = {k: jnp.stack([jnp.asarray(p[k]) for p in preps])
               for k in ("spat", "text", "unary", "side")}

    # single fused Pallas launch, batched over images
    logits_pad, coop_pack, comp_pack = fused_interaction_call(batched, params)

    logits_collated = []
    boxes_h_collated, boxes_o_collated = [], []
    prior_collated, object_class_collated, attn_maps_collated = [], [], []

    for b_idx, p in enumerate(preps):
        if not p["valid"]:
            logits_collated.append(jnp.zeros((0, NUM_CLASSES), jnp.float32))
            boxes_h_collated.append(np.zeros((0,), np.int64))
            boxes_o_collated.append(np.zeros((0,), np.int64))
            object_class_collated.append(np.zeros((0,), np.int64))
            prior_collated.append(jnp.zeros((2, 0, NUM_CLASSES), jnp.float32))
            continue

        x_keep, y_keep = p["x_keep"], p["y_keep"]
        keep_flat = x_keep * N_BOXES + y_keep

        logits_collated.append(logits_pad[b_idx, keep_flat, :NUM_CLASSES])
        boxes_h_collated.append(x_keep.astype(np.int64))
        boxes_o_collated.append(y_keep.astype(np.int64))
        object_class_collated.append(p["labels"][y_keep].astype(np.int64))

        # prior scores: dense validity-mask rewrite of the scatter (eval p=2.8)
        mask = params["prior_mask"][p["labels"][y_keep]]                  # (P, NUM_CLASSES)
        s_h = p["scores"][x_keep] ** P_EVAL
        s_o = p["scores"][y_keep] ** P_EVAL
        prior_collated.append(jnp.stack([mask * s_h[:, None], mask * s_o[:, None]], axis=0))

        n = p["n"]
        unary_attn = [coop_pack[b_idx, :n, l * N_BOXES:l * N_BOXES + n] for l in range(2)]
        pairwise_attn = comp_pack[b_idx, :, :NP][keep_flat][:, keep_flat]
        attn_maps_collated.append((unary_attn, pairwise_attn))

    logits = jnp.concatenate(logits_collated, axis=0)
    return (logits, prior_collated, boxes_h_collated, boxes_o_collated,
            object_class_collated, attn_maps_collated)


# -----------------------------------------------------------------------------
# Main
# -----------------------------------------------------------------------------
def make_region_props(key, labels_np):
    n = labels_np.shape[0]
    k1, k2, k3, k4, k5 = jax.random.split(key, 5)
    x1 = jax.random.uniform(k1, (n, 1), minval=0.0, maxval=500.0)
    y1 = jax.random.uniform(k2, (n, 1), minval=0.0, maxval=360.0)
    wh = jax.random.uniform(k3, (n, 2), minval=20.0, maxval=120.0)
    boxes = jnp.concatenate([x1, y1, x1 + wh[:, :1], y1 + wh[:, 1:]], axis=1).astype(jnp.float32)
    scores = jax.random.uniform(k4, (n,), minval=0.1, maxval=1.0)
    hidden = jax.random.normal(k5, (n, HIDDEN), jnp.float32)
    return dict(boxes=boxes, scores=scores, labels=labels_np, hidden_states=hidden)


def main():
    key = jax.random.PRNGKey(0)
    k_feat, k_par, k_r0, k_r1 = jax.random.split(key, 4)

    params = init_params(k_par)
    features = jax.random.normal(k_feat, (B, C, H, W), jnp.float32)     # NCHW
    image_shapes = jnp.asarray([[480.0, 640.0], [480.0, 640.0]], jnp.float32)

    # image 0: humans not listed first -> exercises the permutation branch
    labels0 = np.array([1, 0, 2, 0, 3, 0, 4, 1], np.int64)
    # image 1: humans already first
    labels1 = np.array([0, 0, 2, 3, 1, 4, 2, 1], np.int64)
    region_props = [make_region_props(k_r0, labels0), make_region_props(k_r1, labels1)]

    outputs = interaction_head_forward(params, features, image_shapes, region_props)
    logits = jax.block_until_ready(outputs[0])
    for pr in outputs[1]:
        jax.block_until_ready(pr)

    assert logits.shape[1] == NUM_CLASSES
    assert np.all(np.isfinite(np.asarray(logits)))
    print("KERNEL_OK")


if __name__ == "__main__":
    main()
</pallas_src>

<mosaic_0001>
module attributes {stable_mosaic.version = 11 : i64} {
  func.func @kernel(%arg0: i32, %arg1: memref<1x64x128xf32, #tpu.memory_space<vmem>>, %arg2: memref<1x64x64xf32, #tpu.memory_space<vmem>>, %arg3: memref<1x8x32xf32, #tpu.memory_space<vmem>>, %arg4: memref<1x8x128xf32, #tpu.memory_space<vmem>>, %arg5: memref<2144x128xbf16, #tpu.memory_space<vmem>>, %arg6: memref<256x256xbf16, #tpu.memory_space<vmem>>, %arg7: memref<216x256xf32, #tpu.memory_space<vmem>>, %arg8: memref<1x64x128xf32, #tpu.memory_space<vmem>>, %arg9: memref<1x8x128xf32, #tpu.memory_space<vmem>>, %arg10: memref<1x64x128xf32, #tpu.memory_space<vmem>>) attributes {dimension_semantics = [#tpu.dimension_semantics<parallel>], iteration_bounds = array<i64: 2>, scalar_prefetch = 0 : i64, scratch_operands = 0 : i64, tpu.core_type = #tpu.core_type<tc>, window_params = [{transform_indices = @transform_0, window_bounds = array<i64: 1, 64, 128>}, {transform_indices = @transform_1, window_bounds = array<i64: 1, 64, 64>}, {transform_indices = @transform_2, window_bounds = array<i64: 1, 8, 32>}, {transform_indices = @transform_3, window_bounds = array<i64: 1, 8, 128>}, {pipeline_mode = #tpu.pipeline_mode<synchronous>, transform_indices = @transform_4, window_bounds = array<i64: 2144, 128>}, {pipeline_mode = #tpu.pipeline_mode<synchronous>, transform_indices = @transform_5, window_bounds = array<i64: 256, 256>}, {pipeline_mode = #tpu.pipeline_mode<synchronous>, transform_indices = @transform_6, window_bounds = array<i64: 216, 256>}, {transform_indices = @transform_7, window_bounds = array<i64: 1, 64, 128>}, {transform_indices = @transform_8, window_bounds = array<i64: 1, 8, 128>}, {transform_indices = @transform_9, window_bounds = array<i64: 1, 64, 128>}]} {
    %c0 = arith.constant 0 : index
    %c0_0 = arith.constant 0 : index
    %c0_1 = arith.constant 0 : index
    %0 = vector.load %arg1[%c0, %c0_0, %c0_1] : memref<1x64x128xf32, #tpu.memory_space<vmem>>, vector<1x64x128xf32>
    %1 = vector.shape_cast %0 : vector<1x64x128xf32> to vector<64x128xf32>
    %c0_2 = arith.constant 0 : index
    %c0_3 = arith.constant 0 : index
    %c0_4 = arith.constant 0 : index
    %2 = vector.load %arg2[%c0_2, %c0_3, %c0_4] : memref<1x64x64xf32, #tpu.memory_space<vmem>>, vector<1x64x64xf32>
    %3 = vector.shape_cast %2 : vector<1x64x64xf32> to vector<64x64xf32>
    %c0_5 = arith.constant 0 : index
    %c0_6 = arith.constant 0 : index
    %c0_7 = arith.constant 0 : index
    %4 = vector.load %arg3[%c0_5, %c0_6, %c0_7] : memref<1x8x32xf32, #tpu.memory_space<vmem>>, vector<1x8x32xf32>
    %5 = vector.shape_cast %4 : vector<1x8x32xf32> to vector<8x32xf32>
    %c0_8 = arith.constant 0 : index
    %c0_9 = arith.constant 0 : index
    %c0_10 = arith.constant 0 : index
    %6 = vector.load %arg4[%c0_8, %c0_9, %c0_10] : memref<1x8x128xf32, #tpu.memory_space<vmem>>, vector<1x8x128xf32>
    %7 = vector.shape_cast %6 : vector<1x8x128xf32> to vector<8x128xf32>
    %8 = vector.extract_strided_slice %7 {offsets = [0, 0], sizes = [1, 8], strides = [1, 1]} : vector<8x128xf32> to vector<1x8xf32>
    %9 = vector.extract_strided_slice %7 {offsets = [1, 0], sizes = [1, 8], strides = [1, 1]} : vector<8x128xf32> to vector<1x8xf32>
    %10 = vector.extract_strided_slice %7 {offsets = [2, 0], sizes = [1, 64], strides = [1, 1]} : vector<8x128xf32> to vector<1x64xf32>
    %c832 = arith.constant 832 : index
    %c0_11 = arith.constant 0 : index
    %11 = vector.load %arg5[%c832, %c0_11] : memref<2144x128xbf16, #tpu.memory_space<vmem>>, vector<64x8xbf16>
    %c896 = arith.constant 896 : index
    %c0_12 = arith.constant 0 : index
    %12 = vector.load %arg5[%c896, %c0_12] : memref<2144x128xbf16, #tpu.memory_space<vmem>>, vector<64x8xbf16>
    %c960 = arith.constant 960 : index
    %c0_13 = arith.constant 0 : index
    %13 = vector.load %arg5[%c960, %c0_13] : memref<2144x128xbf16, #tpu.memory_space<vmem>>, vector<8x64xbf16>
    %c0_14 = arith.constant 0 : index
    %c0_15 = arith.constant 0 : index
    %14 = vector.load %arg5[%c0_14, %c0_15] : memref<2144x128xbf16, #tpu.memory_space<vmem>>, vector<128x128xbf16>
    %15 = arith.truncf %1 : vector<64x128xf32> to vector<64x128xbf16>
    %cst = arith.constant dense<0.000000e+00> : vector<64x128xf32>
    %16 = tpu.matmul %15, %14, %cst {dimension_numbers = #tpu.dot_dimension_numbers<[1], [0], [0], [1], [0, 0, 1, 1], [], []>} : vector<64x128xbf16>, vector<128x128xbf16>, vector<64x128xf32> -> vector<64x128xf32>
    %c0_16 = arith.constant 0 : index
    %c0_17 = arith.constant 0 : index
    %17 = vector.load %arg7[%c0_16, %c0_17] : memref<216x256xf32, #tpu.memory_space<vmem>>, vector<1x128xf32>
    %18 = vector.broadcast %17 : vector<1x128xf32> to vector<64x128xf32>
    %19 = arith.addf %16, %18 : vector<64x128xf32>
    %cst_18 = arith.constant 0.000000e+00 : f32
    %20 = vector.broadcast %cst_18 : f32 to vector<64x128xf32>
    %21 = arith.maximumf %19, %20 : vector<64x128xf32>
    %c0_19 = arith.constant 0 : index
    %c0_20 = arith.constant 0 : index
    %22 = vector.load %arg6[%c0_19, %c0_20] : memref<256x256xbf16, #tpu.memory_space<vmem>>, vector<128x256xbf16>
    %23 = arith.truncf %21 : vector<64x128xf32> to vector<64x128xbf16>
    %cst_21 = arith.constant dense<0.000000e+00> : vector<64x256xf32>
    %24 = tpu.matmul %23, %22, %cst_21 {dimension_numbers = #tpu.dot_dimension_numbers<[1], [0], [0], [1], [0, 0, 1, 1], [], []>} : vector<64x128xbf16>, vector<128x256xbf16>, vector<64x256xf32> -> vector<64x256xf32>
    %c8 = arith.constant 8 : index
    %c0_22 = arith.constant 0 : index
    %25 = vector.load %arg7[%c8, %c0_22] : memref<216x256xf32, #tpu.memory_space<vmem>>, vector<1x256xf32>
    %26 = vector.broadcast %25 : vector<1x256xf32> to vector<64x256xf32>
    %27 = arith.addf %24, %26 : vector<64x256xf32>
    %cst_23 = arith.constant 0.000000e+00 : f32
    %28 = vector.broadcast %cst_23 : f32 to vector<64x256xf32>
    %29 = arith.maximumf %27, %28 : vector<64x256xf32>
    %c128 = arith.constant 128 : index
    %c0_24 = arith.constant 0 : index
    %30 = vector.load %arg5[%c128, %c0_24] : memref<2144x128xbf16, #tpu.memory_space<vmem>>, vector<256x64xbf16>
    %31 = arith.truncf %29 : vector<64x256xf32> to vector<64x256xbf16>
    %cst_25 = arith.constant dense<0.000000e+00> : vector<64x64xf32>
    %32 = tpu.matmul %31, %30, %cst_25 {dimension_numbers = #tpu.dot_dimension_numbers<[1], [0], [0], [1], [0, 0, 1, 1], [], []>} : vector<64x256xbf16>, vector<256x64xbf16>, vector<64x64xf32> -> vector<64x64xf32>
    %c16 = arith.constant 16 : index
    %c0_26 = arith.constant 0 : index
    %33 = vector.load %arg7[%c16, %c0_26] : memref<216x256xf32, #tpu.memory_space<vmem>>, vector<1x64xf32>
    %34 = vector.broadcast %33 : vector<1x64xf32> to vector<64x64xf32>
    %35 = arith.addf %32, %34 : vector<64x64xf32>
    %cst_27 = arith.constant 0.000000e+00 : f32
    %36 = vector.broadcast %cst_27 : f32 to vector<64x64xf32>
    %37 = arith.maximumf %35, %36 : vector<64x64xf32>
    %c72 = arith.constant 72 : index
    %c0_28 = arith.constant 0 : index
    %38 = vector.load %arg7[%c72, %c0_28] : memref<216x256xf32, #tpu.memory_space<vmem>>, vector<1x64xf32>
    %39 = vector.broadcast %38 : vector<1x64xf32> to vector<64x64xf32>
    %40 = arith.mulf %37, %39 : vector<64x64xf32>
    %cst_29 = arith.constant dense<0.000000e+00> : vector<64xf32>
    %41 = vector.multi_reduction <add>, %40, %cst_29 [1] : vector<64x64xf32> to vector<64xf32>
    %42 = vector.shape_cast %41 : vector<64xf32> to vector<64x1xf32>
    %43 = arith.extf %13 : vector<8x64xbf16> to vector<8x64xf32>
    %44 = arith.extf %12 : vector<64x8xbf16> to vector<64x8xf32>
    %45 = vector.broadcast %42 : vector<64x1xf32> to vector<64x8xf32>
    %46 = arith.mulf %44, %45 : vector<64x8xf32>
    %cst_30 = arith.constant dense<0.000000e+00> : vector<8x8xf32>
    %47 = tpu.matmul %43, %46, %cst_30 {dimension_numbers = #tpu.dot_dimension_numbers<[1], [0], [0], [1], [0, 0, 1, 1], [], []>} : vector<8x64xf32>, vector<64x8xf32>, vector<8x8xf32> -> vector<8x8xf32>
    %c384 = arith.constant 384 : index
    %c0_31 = arith.constant 0 : index
    %48 = vector.load %arg5[%c384, %c0_31] : memref<2144x128xbf16, #tpu.memory_space<vmem>>, vector<32x32xbf16>
    %49 = arith.truncf %5 : vector<8x32xf32> to vector<8x32xbf16>
    %cst_32 = arith.constant dense<0.000000e+00> : vector<8x32xf32>
    %50 = tpu.matmul %49, %48, %cst_32 {dimension_numbers = #tpu.dot_dimension_numbers<[1], [0], [0], [1], [0, 0, 1, 1], [], []>} : vector<8x32xbf16>, vector<32x32xbf16>, vector<8x32xf32> -> vector<8x32xf32>
    %c416 = arith.constant 416 : index
    %c0_33 = arith.constant 0 : index
    %51 = vector.load %arg5[%c416, %c0_33] : memref<2144x128xbf16, #tpu.memory_space<vmem>>, vector<32x32xbf16>
    %52 = arith.truncf %5 : vector<8x32xf32> to vector<8x32xbf16>
    %cst_34 = arith.constant dense<0.000000e+00> : vector<8x32xf32>
    %53 = tpu.matmul %52, %51, %cst_34 {dimension_numbers = #tpu.dot_dimension_numbers<[1], [0], [0], [1], [0, 0, 1, 1], [], []>} : vector<8x32xbf16>, vector<32x32xbf16>, vector<8x32xf32> -> vector<8x32xf32>
    %c448 = arith.constant 448 : index
    %c0_35 = arith.constant 0 : index
    %54 = vector.load %arg5[%c448, %c0_35] : memref<2144x128xbf16, #tpu.memory_space<vmem>>, vector<32x32xbf16>
    %55 = arith.truncf %5 : vector<8x32xf32> to vector<8x32xbf16>
    %cst_36 = arith.constant dense<0.000000e+00> : vector<8x32xf32>
    %56 = tpu.matmul %55, %54, %cst_36 {dimension_numbers = #tpu.dot_dimension_numbers<[1], [0], [0], [1], [0, 0, 1, 1], [], []>} : vector<8x32xbf16>, vector<32x32xbf16>, vector<8x32xf32> -> vector<8x32xf32>
    %57 = arith.truncf %50 : vector<8x32xf32> to vector<8x32xbf16>
    %58 = arith.truncf %53 : vector<8x32xf32> to vector<8x32xbf16>
    %cst_37 = arith.constant dense<0.000000e+00> : vector<8x8xf32>
    %59 = tpu.matmul %57, %58, %cst_37 {dimension_numbers = #tpu.dot_dimension_numbers<[1], [1], [0], [0], [0, 0, 1, 0], [], []>} : vector<8x32xbf16>, vector<8x32xbf16>, vector<8x8xf32> -> vector<8x8xf32>
    %cst_38 = arith.constant 0.176776692 : f32
    %60 = vector.broadcast %cst_38 : f32 to vector<8x8xf32>
    %61 = arith.mulf %59, %60 : vector<8x8xf32>
    %62 = arith.addf %61, %47 : vector<8x8xf32>
    %63 = vector.broadcast %9 : vector<1x8xf32> to vector<8x8xf32>
    %64 = arith.addf %62, %63 : vector<8x8xf32>
    %cst_39 = arith.constant dense<0xFF800000> : vector<8xf32>
    %65 = vector.multi_reduction <maximumf>, %64, %cst_39 [1] : vector<8x8xf32> to vector<8xf32>
    %66 = vector.shape_cast %65 : vector<8xf32> to vector<8x1xf32>
    %67 = vector.broadcast %66 : vector<8x1xf32> to vector<8x8xf32>
    %68 = arith.subf %64, %67 : vector<8x8xf32>
    %69 = math.exp %68 : vector<8x8xf32>
    %cst_40 = arith.constant dense<0.000000e+00> : vector<8xf32>
    %70 = vector.multi_reduction <add>, %69, %cst_40 [1] : vector<8x8xf32> to vector<8xf32>
    %71 = vector.shape_cast %70 : vector<8xf32> to vector<8x1xf32>
    %72 = vector.broadcast %71 : vector<8x1xf32> to vector<8x8xf32>
    %73 = arith.divf %69, %72 : vector<8x8xf32>
    %74 = arith.truncf %73 : vector<8x8xf32> to vector<8x8xbf16>
    %75 = arith.truncf %56 : vector<8x32xf32> to vector<8x32xbf16>
    %cst_41 = arith.constant dense<0.000000e+00> : vector<8x32xf32>
    %76 = tpu.matmul %74, %75, %cst_41 {dimension_numbers = #tpu.dot_dimension_numbers<[1], [0], [0], [1], [0, 0, 1, 1], [], []>} : vector<8x8xbf16>, vector<8x32xbf16>, vector<8x32xf32> -> vector<8x32xf32>
    %c480 = arith.constant 480 : index
    %c0_42 = arith.constant 0 : index
    %77 = vector.load %arg5[%c480, %c0_42] : memref<2144x128xbf16, #tpu.memory_space<vmem>>, vector<32x32xbf16>
    %78 = arith.truncf %76 : vector<8x32xf32> to vector<8x32xbf16>
    %cst_43 = arith.constant dense<0.000000e+00> : vector<8x32xf32>
    %79 = tpu.matmul %78, %77, %cst_43 {dimension_numbers = #tpu.dot_dimension_numbers<[1], [0], [0], [1], [0, 0, 1, 1], [], []>} : vector<8x32xbf16>, vector<32x32xbf16>, vector<8x32xf32> -> vector<8x32xf32>
    %80 = arith.addf %5, %79 : vector<8x32xf32>
    %c40 = arith.constant 40 : index
    %c0_44 = arith.constant 0 : index
    %81 = vector.load %arg7[%c40, %c0_44] : memref<216x256xf32, #tpu.memory_space<vmem>>, vector<1x32xf32>
    %c48 = arith.constant 48 : index
    %c0_45 = arith.constant 0 : index
    %82 = vector.load %arg7[%c48, %c0_45] : memref<216x256xf32, #tpu.memory_space<vmem>>, vector<1x32xf32>
    %cst_46 = arith.constant dense<0.000000e+00> : vector<8xf32>
    %83 = vector.multi_reduction <add>, %80, %cst_46 [1] : vector<8x32xf32> to vector<8xf32>
    %84 = vector.shape_cast %83 : vector<8xf32> to vector<8x1xf32>
    %cst_47 = arith.constant 3.200000e+01 : f32
    %85 = vector.broadcast %cst_47 : f32 to vector<8x1xf32>
    %86 = arith.divf %84, %85 : vector<8x1xf32>
    %87 = vector.broadcast %86 : vector<8x1xf32> to vector<8x32xf32>
    %88 = arith.subf %80, %87 : vector<8x32xf32>
    %89 = arith.mulf %88, %88 : vector<8x32xf32>
    %cst_48 = arith.constant dense<0.000000e+00> : vector<8xf32>
    %90 = vector.multi_reduction <add>, %89, %cst_48 [1] : vector<8x32xf32> to vector<8xf32>
    %91 = vector.shape_cast %90 : vector<8xf32> to vector<8x1xf32>
    %cst_49 = arith.constant 3.200000e+01 : f32
    %92 = vector.broadcast %cst_49 : f32 to vector<8x1xf32>
    %93 = arith.divf %91, %92 : vector<8x1xf32>
    %94 = vector.broadcast %86 : vector<8x1xf32> to vector<8x32xf32>
    %95 = arith.subf %80, %94 : vector<8x32xf32>
    %cst_50 = arith.constant 9.99999974E-6 : f32
    %96 = vector.broadcast %cst_50 : f32 to vector<8x1xf32>
    %97 = arith.addf %93, %96 : vector<8x1xf32>
    %98 = math.rsqrt %97 : vector<8x1xf32>
    %99 = vector.broadcast %98 : vector<8x1xf32> to vector<8x32xf32>
    %100 = arith.mulf %95, %99 : vector<8x32xf32>
    %101 = vector.broadcast %81 : vector<1x32xf32> to vector<8x32xf32>
    %102 = arith.mulf %100, %101 : vector<8x32xf32>
    %103 = vector.broadcast %82 : vector<1x32xf32> to vector<8x32xf32>
    %104 = arith.addf %102, %103 : vector<8x32xf32>
    %c512 = arith.constant 512 : index
    %c0_51 = arith.constant 0 : index
    %105 = vector.load %arg5[%c512, %c0_51] : memref<2144x128xbf16, #tpu.memory_space<vmem>>, vector<32x64xbf16>
    %106 = arith.truncf %104 : vector<8x32xf32> to vector<8x32xbf16>
    %cst_52 = arith.constant dense<0.000000e+00> : vector<8x64xf32>
    %107 = tpu.matmul %106, %105, %cst_52 {dimension_numbers = #tpu.dot_dimension_numbers<[1], [0], [0], [1], [0, 0, 1, 1], [], []>} : vector<8x32xbf16>, vector<32x64xbf16>, vector<8x64xf32> -> vector<8x64xf32>
    %c24 = arith.constant 24 : index
    %c0_53 = arith.constant 0 : index
    %108 = vector.load %arg7[%c24, %c0_53] : memref<216x256xf32, #tpu.memory_space<vmem>>, vector<1x64xf32>
    %109 = vector.broadcast %108 : vector<1x64xf32> to vector<8x64xf32>
    %110 = arith.addf %107, %109 : vector<8x64xf32>
    %cst_54 = arith.constant 0.000000e+00 : f32
    %111 = vector.broadcast %cst_54 : f32 to vector<8x64xf32>
    %112 = arith.maximumf %110, %111 : vector<8x64xf32>
    %c544 = arith.constant 544 : index
    %c0_55 = arith.constant 0 : index
    %113 = vector.load %arg5[%c544, %c0_55] : memref<2144x128xbf16, #tpu.memory_space<vmem>>, vector<64x32xbf16>
    %114 = arith.truncf %112 : vector<8x64xf32> to vector<8x64xbf16>
    %cst_56 = arith.constant dense<0.000000e+00> : vector<8x32xf32>
    %115 = tpu.matmul %114, %113, %cst_56 {dimension_numbers = #tpu.dot_dimension_numbers<[1], [0], [0], [1], [0, 0, 1, 1], [], []>} : vector<8x64xbf16>, vector<64x32xbf16>, vector<8x32xf32> -> vector<8x32xf32>
    %c32 = arith.constant 32 : index
    %c0_57 = arith.constant 0 : index
    %116 = vector.load %arg7[%c32, %c0_57] : memref<216x256xf32, #tpu.memory_space<vmem>>, vector<1x32xf32>
    %117 = vector.broadcast %116 : vector<1x32xf32> to vector<8x32xf32>
    %118 = arith.addf %115, %117 : vector<8x32xf32>
    %119 = arith.addf %104, %118 : vector<8x32xf32>
    %c56 = arith.constant 56 : index
    %c0_58 = arith.constant 0 : index
    %120 = vector.load %arg7[%c56, %c0_58] : memref<216x256xf32, #tpu.memory_space<vmem>>, vector<1x32xf32>
    %c64 = arith.constant 64 : index
    %c0_59 = arith.constant 0 : index
    %121 = vector.load %arg7[%c64, %c0_59] : memref<216x256xf32, #tpu.memory_space<vmem>>, vector<1x32xf32>
    %cst_60 = arith.constant dense<0.000000e+00> : vector<8xf32>
    %122 = vector.multi_reduction <add>, %119, %cst_60 [1] : vector<8x32xf32> to vector<8xf32>
    %123 = vector.shape_cast %122 : vector<8xf32> to vector<8x1xf32>
    %cst_61 = arith.constant 3.200000e+01 : f32
    %124 = vector.broadcast %cst_61 : f32 to vector<8x1xf32>
    %125 = arith.divf %123, %124 : vector<8x1xf32>
    %126 = vector.broadcast %125 : vector<8x1xf32> to vector<8x32xf32>
    %127 = arith.subf %119, %126 : vector<8x32xf32>
    %128 = arith.mulf %127, %127 : vector<8x32xf32>
    %cst_62 = arith.constant dense<0.000000e+00> : vector<8xf32>
    %129 = vector.multi_reduction <add>, %128, %cst_62 [1] : vector<8x32xf32> to vector<8xf32>
    %130 = vector.shape_cast %129 : vector<8xf32> to vector<8x1xf32>
    %cst_63 = arith.constant 3.200000e+01 : f32
    %131 = vector.broadcast %cst_63 : f32 to vector<8x1xf32>
    %132 = arith.divf %130, %131 : vector<8x1xf32>
    %133 = vector.broadcast %125 : vector<8x1xf32> to vector<8x32xf32>
    %134 = arith.subf %119, %133 : vector<8x32xf32>
    %cst_64 = arith.constant 9.99999974E-6 : f32
    %135 = vector.broadcast %cst_64 : f32 to vector<8x1xf32>
    %136 = arith.addf %132, %135 : vector<8x1xf32>
    %137 = math.rsqrt %136 : vector<8x1xf32>
    %138 = vector.broadcast %137 : vector<8x1xf32> to vector<8x32xf32>
    %139 = arith.mulf %134, %138 : vector<8x32xf32>
    %140 = vector.broadcast %120 : vector<1x32xf32> to vector<8x32xf32>
    %141 = arith.mulf %139, %140 : vector<8x32xf32>
    %142 = vector.broadcast %121 : vector<1x32xf32> to vector<8x32xf32>
    %143 = arith.addf %141, %142 : vector<8x32xf32>
    %c128_65 = arith.constant 128 : index
    %c0_66 = arith.constant 0 : index
    %144 = vector.load %arg7[%c128_65, %c0_66] : memref<216x256xf32, #tpu.memory_space<vmem>>, vector<1x64xf32>
    %145 = vector.broadcast %144 : vector<1x64xf32> to vector<64x64xf32>
    %146 = arith.mulf %37, %145 : vector<64x64xf32>
    %cst_67 = arith.constant dense<0.000000e+00> : vector<64xf32>
    %147 = vector.multi_reduction <add>, %146, %cst_67 [1] : vector<64x64xf32> to vector<64xf32>
    %148 = vector.shape_cast %147 : vector<64xf32> to vector<64x1xf32>
    %149 = arith.extf %13 : vector<8x64xbf16> to vector<8x64xf32>
    %150 = arith.extf %12 : vector<64x8xbf16> to vector<64x8xf32>
    %151 = vector.broadcast %148 : vector<64x1xf32> to vector<64x8xf32>
    %152 = arith.mulf %150, %151 : vector<64x8xf32>
    %cst_68 = arith.constant dense<0.000000e+00> : vector<8x8xf32>
    %153 = tpu.matmul %149, %152, %cst_68 {dimension_numbers = #tpu.dot_dimension_numbers<[1], [0], [0], [1], [0, 0, 1, 1], [], []>} : vector<8x64xf32>, vector<64x8xf32>, vector<8x8xf32> -> vector<8x8xf32>
    %c608 = arith.constant 608 : index
    %c0_69 = arith.constant 0 : index
    %154 = vector.load %arg5[%c608, %c0_69] : memref<2144x128xbf16, #tpu.memory_space<vmem>>, vector<32x32xbf16>
    %155 = arith.truncf %143 : vector<8x32xf32> to vector<8x32xbf16>
    %cst_70 = arith.constant dense<0.000000e+00> : vector<8x32xf32>
    %156 = tpu.matmul %155, %154, %cst_70 {dimension_numbers = #tpu.dot_dimension_numbers<[1], [0], [0], [1], [0, 0, 1, 1], [], []>} : vector<8x32xbf16>, vector<32x32xbf16>, vector<8x32xf32> -> vector<8x32xf32>
    %c640 = arith.constant 640 : index
    %c0_71 = arith.constant 0 : index
    %157 = vector.load %arg5[%c640, %c0_71] : memref<2144x128xbf16, #tpu.memory_space<vmem>>, vector<32x32xbf16>
    %158 = arith.truncf %143 : vector<8x32xf32> to vector<8x32xbf16>
    %cst_72 = arith.constant dense<0.000000e+00> : vector<8x32xf32>
    %159 = tpu.matmul %158, %157, %cst_72 {dimension_numbers = #tpu.dot_dimension_numbers<[1], [0], [0], [1], [0, 0, 1, 1], [], []>} : vector<8x32xbf16>, vector<32x32xbf16>, vector<8x32xf32> -> vector<8x32xf32>
    %c672 = arith.constant 672 : index
    %c0_73 = arith.constant 0 : index
    %160 = vector.load %arg5[%c672, %c0_73] : memref<2144x128xbf16, #tpu.memory_space<vmem>>, vector<32x32xbf16>
    %161 = arith.truncf %143 : vector<8x32xf32> to vector<8x32xbf16>
    %cst_74 = arith.constant dense<0.000000e+00> : vector<8x32xf32>
    %162 = tpu.matmul %161, %160, %cst_74 {dimension_numbers = #tpu.dot_dimension_numbers<[1], [0], [0], [1], [0, 0, 1, 1], [], []>} : vector<8x32xbf16>, vector<32x32xbf16>, vector<8x32xf32> -> vector<8x32xf32>
    %163 = arith.truncf %156 : vector<8x32xf32> to vector<8x32xbf16>
    %164 = arith.truncf %159 : vector<8x32xf32> to vector<8x32xbf16>
    %cst_75 = arith.constant dense<0.000000e+00> : vector<8x8xf32>
    %165 = tpu.matmul %163, %164, %cst_75 {dimension_numbers = #tpu.dot_dimension_numbers<[1], [1], [0], [0], [0, 0, 1, 0], [], []>} : vector<8x32xbf16>, vector<8x32xbf16>, vector<8x8xf32> -> vector<8x8xf32>
    %cst_76 = arith.constant 0.176776692 : f32
    %166 = vector.broadcast %cst_76 : f32 to vector<8x8xf32>
    %167 = arith.mulf %165, %166 : vector<8x8xf32>
    %168 = arith.addf %167, %153 : vector<8x8xf32>
    %169 = vector.broadcast %9 : vector<1x8xf32> to vector<8x8xf32>
    %170 = arith.addf %168, %169 : vector<8x8xf32>
    %cst_77 = arith.constant dense<0xFF800000> : vector<8xf32>
    %171 = vector.multi_reduction <maximumf>, %170, %cst_77 [1] : vector<8x8xf32> to vector<8xf32>
    %172 = vector.shape_cast %171 : vector<8xf32> to vector<8x1xf32>
    %173 = vector.broadcast %172 : vector<8x1xf32> to vector<8x8xf32>
    %174 = arith.subf %170, %173 : vector<8x8xf32>
    %175 = math.exp %174 : vector<8x8xf32>
    %cst_78 = arith.constant dense<0.000000e+00> : vector<8xf32>
    %176 = vector.multi_reduction <add>, %175, %cst_78 [1] : vector<8x8xf32> to vector<8xf32>
    %177 = vector.shape_cast %176 : vector<8xf32> to vector<8x1xf32>
    %178 = vector.broadcast %177 : vector<8x1xf32> to vector<8x8xf32>
    %179 = arith.divf %175, %178 : vector<8x8xf32>
    %180 = arith.truncf %179 : vector<8x8xf32> to vector<8x8xbf16>
    %181 = arith.truncf %162 : vector<8x32xf32> to vector<8x32xbf16>
    %cst_79 = arith.constant dense<0.000000e+00> : vector<8x32xf32>
    %182 = tpu.matmul %180, %181, %cst_79 {dimension_numbers = #tpu.dot_dimension_numbers<[1], [0], [0], [1], [0, 0, 1, 1], [], []>} : vector<8x8xbf16>, vector<8x32xbf16>, vector<8x32xf32> -> vector<8x32xf32>
    %c704 = arith.constant 704 : index
    %c0_80 = arith.constant 0 : index
    %183 = vector.load %arg5[%c704, %c0_80] : memref<2144x128xbf16, #tpu.memory_space<vmem>>, vector<32x32xbf16>
    %184 = arith.truncf %182 : vector<8x32xf32> to vector<8x32xbf16>
    %cst_81 = arith.constant dense<0.000000e+00> : vector<8x32xf32>
    %185 = tpu.matmul %184, %183, %cst_81 {dimension_numbers = #tpu.dot_dimension_numbers<[1], [0], [0], [1], [0, 0, 1, 1], [], []>} : vector<8x32xbf16>, vector<32x32xbf16>, vector<8x32xf32> -> vector<8x32xf32>
    %186 = arith.addf %143, %185 : vector<8x32xf32>
    %c96 = arith.constant 96 : index
    %c0_82 = arith.constant 0 : index
    %187 = vector.load %arg7[%c96, %c0_82] : memref<216x256xf32, #tpu.memory_space<vmem>>, vector<1x32xf32>
    %c104 = arith.constant 104 : index
    %c0_83 = arith.constant 0 : index
    %188 = vector.load %arg7[%c104, %c0_83] : memref<216x256xf32, #tpu.memory_space<vmem>>, vector<1x32xf32>
    %cst_84 = arith.constant dense<0.000000e+00> : vector<8xf32>
    %189 = vector.multi_reduction <add>, %186, %cst_84 [1] : vector<8x32xf32> to vector<8xf32>
    %190 = vector.shape_cast %189 : vector<8xf32> to vector<8x1xf32>
    %cst_85 = arith.constant 3.200000e+01 : f32
    %191 = vector.broadcast %cst_85 : f32 to vector<8x1xf32>
    %192 = arith.divf %190, %191 : vector<8x1xf32>
    %193 = vector.broadcast %192 : vector<8x1xf32> to vector<8x32xf32>
    %194 = arith.subf %186, %193 : vector<8x32xf32>
    %195 = arith.mulf %194, %194 : vector<8x32xf32>
    %cst_86 = arith.constant dense<0.000000e+00> : vector<8xf32>
    %196 = vector.multi_reduction <add>, %195, %cst_86 [1] : vector<8x32xf32> to vector<8xf32>
    %197 = vector.shape_cast %196 : vector<8xf32> to vector<8x1xf32>
    %cst_87 = arith.constant 3.200000e+01 : f32
    %198 = vector.broadcast %cst_87 : f32 to vector<8x1xf32>
    %199 = arith.divf %197, %198 : vector<8x1xf32>
    %200 = vector.broadcast %192 : vector<8x1xf32> to vector<8x32xf32>
    %201 = arith.subf %186, %200 : vector<8x32xf32>
    %cst_88 = arith.constant 9.99999974E-6 : f32
    %202 = vector.broadcast %cst_88 : f32 to vector<8x1xf32>
    %203 = arith.addf %199, %202 : vector<8x1xf32>
    %204 = math.rsqrt %203 : vector<8x1xf32>
    %205 = vector.broadcast %204 : vector<8x1xf32> to vector<8x32xf32>
    %206 = arith.mulf %201, %205 : vector<8x32xf32>
    %207 = vector.broadcast %187 : vector<1x32xf32> to vector<8x32xf32>
    %208 = arith.mulf %206, %207 : vector<8x32xf32>
    %209 = vector.broadcast %188 : vector<1x32xf32> to vector<8x32xf32>
    %210 = arith.addf %208, %209 : vector<8x32xf32>
    %c736 = arith.constant 736 : index
    %c0_89 = arith.constant 0 : index
    %211 = vector.load %arg5[%c736, %c0_89] : memref<2144x128xbf16, #tpu.memory_space<vmem>>, vector<32x64xbf16>
    %212 = arith.truncf %210 : vector<8x32xf32> to vector<8x32xbf16>
    %cst_90 = arith.constant dense<0.000000e+00> : vector<8x64xf32>
    %213 = tpu.matmul %212, %211, %cst_90 {dimension_numbers = #tpu.dot_dimension_numbers<[1], [0], [0], [1], [0, 0, 1, 1], [], []>} : vector<8x32xbf16>, vector<32x64xbf16>, vector<8x64xf32> -> vector<8x64xf32>
    %c80 = arith.constant 80 : index
    %c0_91 = arith.constant 0 : index
    %214 = vector.load %arg7[%c80, %c0_91] : memref<216x256xf32, #tpu.memory_space<vmem>>, vector<1x64xf32>
    %215 = vector.broadcast %214 : vector<1x64xf32> to vector<8x64xf32>
    %216 = arith.addf %213, %215 : vector<8x64xf32>
    %cst_92 = arith.constant 0.000000e+00 : f32
    %217 = vector.broadcast %cst_92 : f32 to vector<8x64xf32>
    %218 = arith.maximumf %216, %217 : vector<8x64xf32>
    %c768 = arith.constant 768 : index
    %c0_93 = arith.constant 0 : index
    %219 = vector.load %arg5[%c768, %c0_93] : memref<2144x128xbf16, #tpu.memory_space<vmem>>, vector<64x32xbf16>
    %220 = arith.truncf %218 : vector<8x64xf32> to vector<8x64xbf16>
    %cst_94 = arith.constant dense<0.000000e+00> : vector<8x32xf32>
    %221 = tpu.matmul %220, %219, %cst_94 {dimension_numbers = #tpu.dot_dimension_numbers<[1], [0], [0], [1], [0, 0, 1, 1], [], []>} : vector<8x64xbf16>, vector<64x32xbf16>, vector<8x32xf32> -> vector<8x32xf32>
    %c88 = arith.constant 88 : index
    %c0_95 = arith.constant 0 : index
    %222 = vector.load %arg7[%c88, %c0_95] : memref<216x256xf32, #tpu.memory_space<vmem>>, vector<1x32xf32>
    %223 = vector.broadcast %222 : vector<1x32xf32> to vector<8x32xf32>
    %224 = arith.addf %221, %223 : vector<8x32xf32>
    %225 = arith.addf %210, %224 : vector<8x32xf32>
    %c112 = arith.constant 112 : index
    %c0_96 = arith.constant 0 : index
    %226 = vector.load %arg7[%c112, %c0_96] : memref<216x256xf32, #tpu.memory_space<vmem>>, vector<1x32xf32>
    %c120 = arith.constant 120 : index
    %c0_97 = arith.constant 0 : index
    %227 = vector.load %arg7[%c120, %c0_97] : memref<216x256xf32, #tpu.memory_space<vmem>>, vector<1x32xf32>
    %cst_98 = arith.constant dense<0.000000e+00> : vector<8xf32>
    %228 = vector.multi_reduction <add>, %225, %cst_98 [1] : vector<8x32xf32> to vector<8xf32>
    %229 = vector.shape_cast %228 : vector<8xf32> to vector<8x1xf32>
    %cst_99 = arith.constant 3.200000e+01 : f32
    %230 = vector.broadcast %cst_99 : f32 to vector<8x1xf32>
    %231 = arith.divf %229, %230 : vector<8x1xf32>
    %232 = vector.broadcast %231 : vector<8x1xf32> to vector<8x32xf32>
    %233 = arith.subf %225, %232 : vector<8x32xf32>
    %234 = arith.mulf %233, %233 : vector<8x32xf32>
    %cst_100 = arith.constant dense<0.000000e+00> : vector<8xf32>
    %235 = vector.multi_reduction <add>, %234, %cst_100 [1] : vector<8x32xf32> to vector<8xf32>
    %236 = vector.shape_cast %235 : vector<8xf32> to vector<8x1xf32>
    %cst_101 = arith.constant 3.200000e+01 : f32
    %237 = vector.broadcast %cst_101 : f32 to vector<8x1xf32>
    %238 = arith.divf %236, %237 : vector<8x1xf32>
    %239 = vector.broadcast %231 : vector<8x1xf32> to vector<8x32xf32>
    %240 = arith.subf %225, %239 : vector<8x32xf32>
    %cst_102 = arith.constant 9.99999974E-6 : f32
    %241 = vector.broadcast %cst_102 : f32 to vector<8x1xf32>
    %242 = arith.addf %238, %241 : vector<8x1xf32>
    %243 = math.rsqrt %242 : vector<8x1xf32>
    %244 = vector.broadcast %243 : vector<8x1xf32> to vector<8x32xf32>
    %245 = arith.mulf %240, %244 : vector<8x32xf32>
    %246 = vector.broadcast %226 : vector<1x32xf32> to vector<8x32xf32>
    %247 = arith.mulf %245, %246 : vector<8x32xf32>
    %248 = vector.broadcast %227 : vector<1x32xf32> to vector<8x32xf32>
    %249 = arith.addf %247, %248 : vector<8x32xf32>
    %cst_103 = arith.constant 0.000000e+00 : f32
    %250 = vector.broadcast %cst_103 : f32 to vector<8x112xf32>
    %251 = tpu.concatenate %73, %179, %250 in 1 : vector<8x8xf32>, vector<8x8xf32>, vector<8x112xf32> -> vector<8x128xf32>
    %c0_104 = arith.constant 0 : index
    %c0_105 = arith.constant 0 : index
    %c0_106 = arith.constant 0 : index
    %252 = vector.load %arg9[%c0_104, %c0_105, %c0_106] : memref<1x8x128xf32, #tpu.memory_space<vmem>>, vector<1x8x128xf32>
    %253 = vector.shape_cast %252 : vector<1x8x128xf32> to vector<8x128xf32>
    %254 = vector.shape_cast %251 : vector<8x128xf32> to vector<1x8x128xf32>
    tpu.vector_store %arg9[%c0_104, %c0_105, %c0_106], %254 {strides = array<i32>} : memref<1x8x128xf32, #tpu.memory_space<vmem>>, vector<1x8x128xf32>,
    %255 = arith.addf %3, %37 : vector<64x64xf32>
    %c976 = arith.constant 976 : index
    %c0_107 = arith.constant 0 : index
    %256 = vector.load %arg5[%c976, %c0_107] : memref<2144x128xbf16, #tpu.memory_space<vmem>>, vector<32x128xbf16>
    %257 = arith.truncf %249 : vector<8x32xf32> to vector<8x32xbf16>
    %cst_108 = arith.constant dense<0.000000e+00> : vector<8x128xf32>
    %258 = tpu.matmul %257, %256, %cst_108 {dimension_numbers = #tpu.dot_dimension_numbers<[1], [0], [0], [1], [0, 0, 1, 1], [], []>} : vector<8x32xbf16>, vector<32x128xbf16>, vector<8x128xf32> -> vector<8x128xf32>
    %259 = arith.truncf %258 : vector<8x128xf32> to vector<8x128xbf16>
    %cst_109 = arith.constant dense<0.000000e+00> : vector<64x128xf32>
    %260 = tpu.matmul %11, %259, %cst_109 {dimension_numbers = #tpu.dot_dimension_numbers<[1], [0], [0], [1], [0, 0, 1, 1], [], []>} : vector<64x8xbf16>, vector<8x128xbf16>, vector<64x128xf32> -> vector<64x128xf32>
    %c1008 = arith.constant 1008 : index
    %c0_110 = arith.constant 0 : index
    %261 = vector.load %arg5[%c1008, %c0_110] : memref<2144x128xbf16, #tpu.memory_space<vmem>>, vector<32x128xbf16>
    %262 = arith.truncf %249 : vector<8x32xf32> to vector<8x32xbf16>
    %cst_111 = arith.constant dense<0.000000e+00> : vector<8x128xf32>
    %263 = tpu.matmul %262, %261, %cst_111 {dimension_numbers = #tpu.dot_dimension_numbers<[1], [0], [0], [1], [0, 0, 1, 1], [], []>} : vector<8x32xbf16>, vector<32x128xbf16>, vector<8x128xf32> -> vector<8x128xf32>
    %264 = arith.truncf %263 : vector<8x128xf32> to vector<8x128xbf16>
    %cst_112 = arith.constant dense<0.000000e+00> : vector<64x128xf32>
    %265 = tpu.matmul %12, %264, %cst_112 {dimension_numbers = #tpu.dot_dimension_numbers<[1], [0], [0], [1], [0, 0, 1, 1], [], []>} : vector<64x8xbf16>, vector<8x128xbf16>, vector<64x128xf32> -> vector<64x128xf32>
    %c1040 = arith.constant 1040 : index
    %c0_113 = arith.constant 0 : index
    %266 = vector.load %arg5[%c1040, %c0_113] : memref<2144x128xbf16, #tpu.memory_space<vmem>>, vector<8x128xbf16>
    %267 = arith.truncf %8 : vector<1x8xf32> to vector<1x8xbf16>
    %cst_114 = arith.constant dense<0.000000e+00> : vector<1x128xf32>
    %268 = tpu.matmul %267, %266, %cst_114 {dimension_numbers = #tpu.dot_dimension_numbers<[1], [0], [0], [1], [0, 0, 1, 1], [], []>} : vector<1x8xbf16>, vector<8x128xbf16>, vector<1x128xf32> -> vector<1x128xf32>
    %269 = arith.addf %260, %265 : vector<64x128xf32>
    %270 = vector.broadcast %268 : vector<1x128xf32> to vector<64x128xf32>
    %271 = arith.addf %269, %270 : vector<64x128xf32>
    %c136 = arith.constant 136 : index
    %c0_115 = arith.constant 0 : index
    %272 = vector.load %arg7[%c136, %c0_115] : memref<216x256xf32, #tpu.memory_space<vmem>>, vector<1x128xf32>
    %273 = vector.broadcast %272 : vector<1x128xf32> to vector<64x128xf32>
    %274 = arith.addf %271, %273 : vector<64x128xf32>
    %c1056 = arith.constant 1056 : index
    %c0_116 = arith.constant 0 : index
    %275 = vector.load %arg5[%c1056, %c0_116] : memref<2144x128xbf16, #tpu.memory_space<vmem>>, vector<64x128xbf16>
    %276 = arith.truncf %255 : vector<64x64xf32> to vector<64x64xbf16>
    %cst_117 = arith.constant dense<0.000000e+00> : vector<64x128xf32>
    %277 = tpu.matmul %276, %275, %cst_117 {dimension_numbers = #tpu.dot_dimension_numbers<[1], [0], [0], [1], [0, 0, 1, 1], [], []>} : vector<64x64xbf16>, vector<64x128xbf16>, vector<64x128xf32> -> vector<64x128xf32>
    %c144 = arith.constant 144 : index
    %c0_118 = arith.constant 0 : index
    %278 = vector.load %arg7[%c144, %c0_118] : memref<216x256xf32, #tpu.memory_space<vmem>>, vector<1x128xf32>
    %279 = vector.broadcast %278 : vector<1x128xf32> to vector<64x128xf32>
    %280 = arith.addf %277, %279 : vector<64x128xf32>
    %281 = arith.mulf %274, %280 : vector<64x128xf32>
    %cst_119 = arith.constant 0.000000e+00 : f32
    %282 = vector.broadcast %cst_119 : f32 to vector<64x128xf32>
    %283 = arith.maximumf %281, %282 : vector<64x128xf32>
    %c1120 = arith.constant 1120 : index
    %c0_120 = arith.constant 0 : index
    %284 = vector.load %arg5[%c1120, %c0_120] : memref<2144x128xbf16, #tpu.memory_space<vmem>>, vector<128x128xbf16>
    %285 = arith.truncf %283 : vector<64x128xf32> to vector<64x128xbf16>
    %cst_121 = arith.constant dense<0.000000e+00> : vector<64x128xf32>
    %286 = tpu.matmul %285, %284, %cst_121 {dimension_numbers = #tpu.dot_dimension_numbers<[1], [0], [0], [1], [0, 0, 1, 1], [], []>} : vector<64x128xbf16>, vector<128x128xbf16>, vector<64x128xf32> -> vector<64x128xf32>
    %c152 = arith.constant 152 : index
    %c0_122 = arith.constant 0 : index
    %287 = vector.load %arg7[%c152, %c0_122] : memref<216x256xf32, #tpu.memory_space<vmem>>, vector<1x128xf32>
    %288 = vector.broadcast %287 : vector<1x128xf32> to vector<64x128xf32>
    %289 = arith.addf %286, %288 : vector<64x128xf32>
    %cst_123 = arith.constant 0.000000e+00 : f32
    %290 = vector.broadcast %cst_123 : f32 to vector<64x128xf32>
    %291 = arith.maximumf %289, %290 : vector<64x128xf32>
    %c1248 = arith.constant 1248 : index
    %c0_124 = arith.constant 0 : index
    %292 = vector.load %arg5[%c1248, %c0_124] : memref<2144x128xbf16, #tpu.memory_space<vmem>>, vector<128x128xbf16>
    %293 = arith.truncf %291 : vector<64x128xf32> to vector<64x128xbf16>
    %cst_125 = arith.constant dense<0.000000e+00> : vector<64x128xf32>
    %294 = tpu.matmul %293, %292, %cst_125 {dimension_numbers = #tpu.dot_dimension_numbers<[1], [0], [0], [1], [0, 0, 1, 1], [], []>} : vector<64x128xbf16>, vector<128x128xbf16>, vector<64x128xf32> -> vector<64x128xf32>
    %c1376 = arith.constant 1376 : index
    %c0_126 = arith.constant 0 : index
    %295 = vector.load %arg5[%c1376, %c0_126] : memref<2144x128xbf16, #tpu.memory_space<vmem>>, vector<128x128xbf16>
    %296 = arith.truncf %291 : vector<64x128xf32> to vector<64x128xbf16>
    %cst_127 = arith.constant dense<0.000000e+00> : vector<64x128xf32>
    %297 = tpu.matmul %296, %295, %cst_127 {dimension_numbers = #tpu.dot_dimension_numbers<[1], [0], [0], [1], [0, 0, 1, 1], [], []>} : vector<64x128xbf16>, vector<128x128xbf16>, vector<64x128xf32> -> vector<64x128xf32>
    %298 = arith.truncf %294 : vector<64x128xf32> to vector<64x128xbf16>
    %299 = arith.truncf %297 : vector<64x128xf32> to vector<64x128xbf16>
    %cst_128 = arith.constant dense<0.000000e+00> : vector<64x64xf32>
    %300 = tpu.matmul %298, %299, %cst_128 {dimension_numbers = #tpu.dot_dimension_numbers<[1], [1], [0], [0], [0, 0, 1, 0], [], []>} : vector<64x128xbf16>, vector<64x128xbf16>, vector<64x64xf32> -> vector<64x64xf32>
    %cst_129 = arith.constant 0.0883883461 : f32
    %301 = vector.broadcast %cst_129 : f32 to vector<64x64xf32>
    %302 = arith.mulf %300, %301 : vector<64x64xf32>
    %303 = vector.broadcast %10 : vector<1x64xf32> to vector<64x64xf32>
    %304 = arith.addf %302, %303 : vector<64x64xf32>
    %cst_130 = arith.constant dense<0xFF800000> : vector<64xf32>
    %305 = vector.multi_reduction <maximumf>, %304, %cst_130 [1] : vector<64x64xf32> to vector<64xf32>
    %306 = vector.shape_cast %305 : vector<64xf32> to vector<64x1xf32>
    %307 = vector.broadcast %306 : vector<64x1xf32> to vector<64x64xf32>
    %308 = arith.subf %304, %307 : vector<64x64xf32>
    %309 = math.exp %308 : vector<64x64xf32>
    %cst_131 = arith.constant dense<0.000000e+00> : vector<64xf32>
    %310 = vector.multi_reduction <add>, %309, %cst_131 [1] : vector<64x64xf32> to vector<64xf32>
    %311 = vector.shape_cast %310 : vector<64xf32> to vector<64x1xf32>
    %312 = vector.broadcast %311 : vector<64x1xf32> to vector<64x64xf32>
    %313 = arith.divf %309, %312 : vector<64x64xf32>
    %cst_132 = arith.constant 0.000000e+00 : f32
    %314 = vector.broadcast %cst_132 : f32 to vector<64x64xf32>
    %315 = tpu.concatenate %313, %314 in 1 : vector<64x64xf32>, vector<64x64xf32> -> vector<64x128xf32>
    %c0_133 = arith.constant 0 : index
    %c0_134 = arith.constant 0 : index
    %c0_135 = arith.constant 0 : index
    %316 = vector.load %arg10[%c0_133, %c0_134, %c0_135] : memref<1x64x128xf32, #tpu.memory_space<vmem>>, vector<1x64x128xf32>
    %317 = vector.shape_cast %316 : vector<1x64x128xf32> to vector<64x128xf32>
    %318 = vector.shape_cast %315 : vector<64x128xf32> to vector<1x64x128xf32>
    tpu.vector_store %arg10[%c0_133, %c0_134, %c0_135], %318 {strides = array<i32>} : memref<1x64x128xf32, #tpu.memory_space<vmem>>, vector<1x64x128xf32>,
    %c1504 = arith.constant 1504 : index
    %c0_136 = arith.constant 0 : index
    %319 = vector.load %arg5[%c1504, %c0_136] : memref<2144x128xbf16, #tpu.memory_space<vmem>>, vector<128x128xbf16>
    %320 = arith.truncf %291 : vector<64x128xf32> to vector<64x128xbf16>
    %cst_137 = arith.constant dense<0.000000e+00> : vector<64x128xf32>
    %321 = tpu.matmul %320, %319, %cst_137 {dimension_numbers = #tpu.dot_dimension_numbers<[1], [0], [0], [1], [0, 0, 1, 1], [], []>} : vector<64x128xbf16>, vector<128x128xbf16>, vector<64x128xf32> -> vector<64x128xf32>
    %322 = arith.truncf %313 : vector<64x64xf32> to vector<64x64xbf16>
    %323 = arith.truncf %321 : vector<64x128xf32> to vector<64x128xbf16>
    %cst_138 = arith.constant dense<0.000000e+00> : vector<64x128xf32>
    %324 = tpu.matmul %322, %323, %cst_138 {dimension_numbers = #tpu.dot_dimension_numbers<[1], [0], [0], [1], [0, 0, 1, 1], [], []>} : vector<64x64xbf16>, vector<64x128xbf16>, vector<64x128xf32> -> vector<64x128xf32>
    %c1632 = arith.constant 1632 : index
    %c0_139 = arith.constant 0 : index
    %325 = vector.load %arg5[%c1632, %c0_139] : memref<2144x128xbf16, #tpu.memory_space<vmem>>, vector<128x128xbf16>
    %326 = arith.truncf %324 : vector<64x128xf32> to vector<64x128xbf16>
    %cst_140 = arith.constant dense<0.000000e+00> : vector<64x128xf32>
    %327 = tpu.matmul %326, %325, %cst_140 {dimension_numbers = #tpu.dot_dimension_numbers<[1], [0], [0], [1], [0, 0, 1, 1], [], []>} : vector<64x128xbf16>, vector<128x128xbf16>, vector<64x128xf32> -> vector<64x128xf32>
    %328 = arith.addf %291, %327 : vector<64x128xf32>
    %c176 = arith.constant 176 : index
    %c0_141 = arith.constant 0 : index
    %329 = vector.load %arg7[%c176, %c0_141] : memref<216x256xf32, #tpu.memory_space<vmem>>, vector<1x128xf32>
    %c184 = arith.constant 184 : index
    %c0_142 = arith.constant 0 : index
    %330 = vector.load %arg7[%c184, %c0_142] : memref<216x256xf32, #tpu.memory_space<vmem>>, vector<1x128xf32>
    %cst_143 = arith.constant dense<0.000000e+00> : vector<64xf32>
    %331 = vector.multi_reduction <add>, %328, %cst_143 [1] : vector<64x128xf32> to vector<64xf32>
    %332 = vector.shape_cast %331 : vector<64xf32> to vector<64x1xf32>
    %cst_144 = arith.constant 1.280000e+02 : f32
    %333 = vector.broadcast %cst_144 : f32 to vector<64x1xf32>
    %334 = arith.divf %332, %333 : vector<64x1xf32>
    %335 = vector.broadcast %334 : vector<64x1xf32> to vector<64x128xf32>
    %336 = arith.subf %328, %335 : vector<64x128xf32>
    %337 = arith.mulf %336, %336 : vector<64x128xf32>
    %cst_145 = arith.constant dense<0.000000e+00> : vector<64xf32>
    %338 = vector.multi_reduction <add>, %337, %cst_145 [1] : vector<64x128xf32> to vector<64xf32>
    %339 = vector.shape_cast %338 : vector<64xf32> to vector<64x1xf32>
    %cst_146 = arith.constant 1.280000e+02 : f32
    %340 = vector.broadcast %cst_146 : f32 to vector<64x1xf32>
    %341 = arith.divf %339, %340 : vector<64x1xf32>
    %342 = vector.broadcast %334 : vector<64x1xf32> to vector<64x128xf32>
    %343 = arith.subf %328, %342 : vector<64x128xf32>
    %cst_147 = arith.constant 9.99999974E-6 : f32
    %344 = vector.broadcast %cst_147 : f32 to vector<64x1xf32>
    %345 = arith.addf %341, %344 : vector<64x1xf32>
    %346 = math.rsqrt %345 : vector<64x1xf32>
    %347 = vector.broadcast %346 : vector<64x1xf32> to vector<64x128xf32>
    %348 = arith.mulf %343, %347 : vector<64x128xf32>
    %349 = vector.broadcast %329 : vector<1x128xf32> to vector<64x128xf32>
    %350 = arith.mulf %348, %349 : vector<64x128xf32>
    %351 = vector.broadcast %330 : vector<1x128xf32> to vector<64x128xf32>
    %352 = arith.addf %350, %351 : vector<64x128xf32>
    %c128_148 = arith.constant 128 : index
    %c0_149 = arith.constant 0 : index
    %353 = vector.load %arg6[%c128_148, %c0_149] : memref<256x256xbf16, #tpu.memory_space<vmem>>, vector<128x256xbf16>
    %354 = arith.truncf %352 : vector<64x128xf32> to vector<64x128xbf16>
    %cst_150 = arith.constant dense<0.000000e+00> : vector<64x256xf32>
    %355 = tpu.matmul %354, %353, %cst_150 {dimension_numbers = #tpu.dot_dimension_numbers<[1], [0], [0], [1], [0, 0, 1, 1], [], []>} : vector<64x128xbf16>, vector<128x256xbf16>, vector<64x256xf32> -> vector<64x256xf32>
    %c160 = arith.constant 160 : index
    %c0_151 = arith.constant 0 : index
    %356 = vector.load %arg7[%c160, %c0_151] : memref<216x256xf32, #tpu.memory_space<vmem>>, vector<1x256xf32>
    %357 = vector.broadcast %356 : vector<1x256xf32> to vector<64x256xf32>
    %358 = arith.addf %355, %357 : vector<64x256xf32>
    %cst_152 = arith.constant 0.000000e+00 : f32
    %359 = vector.broadcast %cst_152 : f32 to vector<64x256xf32>
    %360 = arith.maximumf %358, %359 : vector<64x256xf32>
    %c1760 = arith.constant 1760 : index
    %c0_153 = arith.constant 0 : index
    %361 = vector.load %arg5[%c1760, %c0_153] : memref<2144x128xbf16, #tpu.memory_space<vmem>>, vector<256x128xbf16>
    %362 = arith.truncf %360 : vector<64x256xf32> to vector<64x256xbf16>
    %cst_154 = arith.constant dense<0.000000e+00> : vector<64x128xf32>
    %363 = tpu.matmul %362, %361, %cst_154 {dimension_numbers = #tpu.dot_dimension_numbers<[1], [0], [0], [1], [0, 0, 1, 1], [], []>} : vector<64x256xbf16>, vector<256x128xbf16>, vector<64x128xf32> -> vector<64x128xf32>
    %c168 = arith.constant 168 : index
    %c0_155 = arith.constant 0 : index
    %364 = vector.load %arg7[%c168, %c0_155] : memref<216x256xf32, #tpu.memory_space<vmem>>, vector<1x128xf32>
    %365 = vector.broadcast %364 : vector<1x128xf32> to vector<64x128xf32>
    %366 = arith.addf %363, %365 : vector<64x128xf32>
    %367 = arith.addf %352, %366 : vector<64x128xf32>
    %c192 = arith.constant 192 : index
    %c0_156 = arith.constant 0 : index
    %368 = vector.load %arg7[%c192, %c0_156] : memref<216x256xf32, #tpu.memory_space<vmem>>, vector<1x128xf32>
    %c200 = arith.constant 200 : index
    %c0_157 = arith.constant 0 : index
    %369 = vector.load %arg7[%c200, %c0_157] : memref<216x256xf32, #tpu.memory_space<vmem>>, vector<1x128xf32>
    %cst_158 = arith.constant dense<0.000000e+00> : vector<64xf32>
    %370 = vector.multi_reduction <add>, %367, %cst_158 [1] : vector<64x128xf32> to vector<64xf32>
    %371 = vector.shape_cast %370 : vector<64xf32> to vector<64x1xf32>
    %cst_159 = arith.constant 1.280000e+02 : f32
    %372 = vector.broadcast %cst_159 : f32 to vector<64x1xf32>
    %373 = arith.divf %371, %372 : vector<64x1xf32>
    %374 = vector.broadcast %373 : vector<64x1xf32> to vector<64x128xf32>
    %375 = arith.subf %367, %374 : vector<64x128xf32>
    %376 = arith.mulf %375, %375 : vector<64x128xf32>
    %cst_160 = arith.constant dense<0.000000e+00> : vector<64xf32>
    %377 = vector.multi_reduction <add>, %376, %cst_160 [1] : vector<64x128xf32> to vector<64xf32>
    %378 = vector.shape_cast %377 : vector<64xf32> to vector<64x1xf32>
    %cst_161 = arith.constant 1.280000e+02 : f32
    %379 = vector.broadcast %cst_161 : f32 to vector<64x1xf32>
    %380 = arith.divf %378, %379 : vector<64x1xf32>
    %381 = vector.broadcast %373 : vector<64x1xf32> to vector<64x128xf32>
    %382 = arith.subf %367, %381 : vector<64x128xf32>
    %cst_162 = arith.constant 9.99999974E-6 : f32
    %383 = vector.broadcast %cst_162 : f32 to vector<64x1xf32>
    %384 = arith.addf %380, %383 : vector<64x1xf32>
    %385 = math.rsqrt %384 : vector<64x1xf32>
    %386 = vector.broadcast %385 : vector<64x1xf32> to vector<64x128xf32>
    %387 = arith.mulf %382, %386 : vector<64x128xf32>
    %388 = vector.broadcast %368 : vector<1x128xf32> to vector<64x128xf32>
    %389 = arith.mulf %387, %388 : vector<64x128xf32>
    %390 = vector.broadcast %369 : vector<1x128xf32> to vector<64x128xf32>
    %391 = arith.addf %389, %390 : vector<64x128xf32>
    %c2016 = arith.constant 2016 : index
    %c0_163 = arith.constant 0 : index
    %392 = vector.load %arg5[%c2016, %c0_163] : memref<2144x128xbf16, #tpu.memory_space<vmem>>, vector<128x128xbf16>
    %393 = arith.truncf %391 : vector<64x128xf32> to vector<64x128xbf16>
    %cst_164 = arith.constant dense<0.000000e+00> : vector<64x128xf32>
    %394 = tpu.matmul %393, %392, %cst_164 {dimension_numbers = #tpu.dot_dimension_numbers<[1], [0], [0], [1], [0, 0, 1, 1], [], []>} : vector<64x128xbf16>, vector<128x128xbf16>, vector<64x128xf32> -> vector<64x128xf32>
    %c208 = arith.constant 208 : index
    %c0_165 = arith.constant 0 : index
    %395 = vector.load %arg7[%c208, %c0_165] : memref<216x256xf32, #tpu.memory_space<vmem>>, vector<1x128xf32>
    %396 = vector.broadcast %395 : vector<1x128xf32> to vector<64x128xf32>
    %397 = arith.addf %394, %396 : vector<64x128xf32>
    %c0_166 = arith.constant 0 : index
    %c0_167 = arith.constant 0 : index
    %c0_168 = arith.constant 0 : index
    %398 = vector.load %arg8[%c0_166, %c0_167, %c0_168] : memref<1x64x128xf32, #tpu.memory_space<vmem>>, vector<1x64x128xf32>
    %399 = vector.shape_cast %398 : vector<1x64x128xf32> to vector<64x128xf32>
    %400 = vector.shape_cast %397 : vector<64x128xf32> to vector<1x64x128xf32>
    tpu.vector_store %arg8[%c0_166, %c0_167, %c0_168], %400 {strides = array<i32>} : memref<1x64x128xf32, #tpu.memory_space<vmem>>, vector<1x64x128xf32>,
    return
  }
  func.func @transform_0(%arg0: i32) -> (i32, i32, i32) {
    %c0_i32 = arith.constant 0 : i32
    %c0_i32_0 = arith.constant 0 : i32
    %c0_i32_1 = arith.constant 0 : i32
    return %arg0, %c0_i32, %c0_i32_0 : i32, i32, i32
  }
  func.func @transform_1(%arg0: i32) -> (i32, i32, i32) {
    %c0_i32 = arith.constant 0 : i32
    %c0_i32_0 = arith.constant 0 : i32
    %c0_i32_1 = arith.constant 0 : i32
    return %arg0, %c0_i32, %c0_i32_0 : i32, i32, i32
  }
  func.func @transform_2(%arg0: i32) -> (i32, i32, i32) {
    %c0_i32 = arith.constant 0 : i32
    %c0_i32_0 = arith.constant 0 : i32
    %c0_i32_1 = arith.constant 0 : i32
    return %arg0, %c0_i32, %c0_i32_0 : i32, i32, i32
  }
  func.func @transform_3(%arg0: i32) -> (i32, i32, i32) {
    %c0_i32 = arith.constant 0 : i32
    %c0_i32_0 = arith.constant 0 : i32
    %c0_i32_1 = arith.constant 0 : i32
    return %arg0, %c0_i32, %c0_i32_0 : i32, i32, i32
  }
  func.func @transform_4(%arg0: i32) -> (i32, i32) {
    %c0_i32 = arith.constant 0 : i32
    %c0_i32_0 = arith.constant 0 : i32
    %c0_i32_1 = arith.constant 0 : i32
    return %c0_i32, %c0_i32_0 : i32, i32
  }
  func.func @transform_5(%arg0: i32) -> (i32, i32) {
    %c0_i32 = arith.constant 0 : i32
    %c0_i32_0 = arith.constant 0 : i32
    %c0_i32_1 = arith.constant 0 : i32
    return %c0_i32, %c0_i32_0 : i32, i32
  }
  func.func @transform_6(%arg0: i32) -> (i32, i32) {
    %c0_i32 = arith.constant 0 : i32
    %c0_i32_0 = arith.constant 0 : i32
    %c0_i32_1 = arith.constant 0 : i32
    return %c0_i32, %c0_i32_0 : i32, i32
  }
  func.func @transform_7(%arg0: i32) -> (i32, i32, i32) {
    %c0_i32 = arith.constant 0 : i32
    %c0_i32_0 = arith.constant 0 : i32
    %c0_i32_1 = arith.constant 0 : i32
    return %arg0, %c0_i32, %c0_i32_0 : i32, i32, i32
  }
  func.func @transform_8(%arg0: i32) -> (i32, i32, i32) {
    %c0_i32 = arith.constant 0 : i32
    %c0_i32_0 = arith.constant 0 : i32
    %c0_i32_1 = arith.constant 0 : i32
    return %arg0, %c0_i32, %c0_i32_0 : i32, i32, i32
  }
  func.func @transform_9(%arg0: i32) -> (i32, i32, i32) {
    %c0_i32 = arith.constant 0 : i32
    %c0_i32_0 = arith.constant 0 : i32
    %c0_i32_1 = arith.constant 0 : i32
    return %arg0, %c0_i32, %c0_i32_0 : i32, i32, i32
  }
}

</mosaic_0001>

<llo_original>
// kernel: tpu_custom_call.1
$region0: #{tpu_custom_call.1}
  #allocation0 [shape = 'u32[]', space=smem, size = 0x4, offset = 0x4, fixed_abs, tag = 'smem constant byte address 0x4 - core index']
  #allocation1 [shape = 'u32[72,128]{1,0:T(1,128)}', space=vmem, size = 0x9000, scoped, tag = 'internal scratch']
  %s0 = inlined_call_operand.hbm [shape: f32[2,64,128], index: 0, kind: input, shape index: {}]
  %s1 = inlined_call_operand.hbm [shape: f32[2,64,64], index: 1, kind: input, shape index: {}]
  %s2 = inlined_call_operand.hbm [shape: f32[2,8,32], index: 2, kind: input, shape index: {}]
  %s3 = inlined_call_operand.hbm [shape: f32[2,8,128], index: 3, kind: input, shape index: {}]
  %s4 = inlined_call_operand.hbm [shape: bf16[2144,128], index: 4, kind: input, shape index: {}]
  %s5 = inlined_call_operand.hbm [shape: bf16[256,256], index: 5, kind: input, shape index: {}]
  %s6 = inlined_call_operand.hbm [shape: f32[216,256], index: 6, kind: input, shape index: {}]
  %s7 = inlined_call_operand.hbm [shape: f32[2,64,128], index: 7, kind: output, shape index: {0}]
  %s8 = inlined_call_operand.hbm [shape: f32[2,8,128], index: 8, kind: output, shape index: {1}]
  %s9 = inlined_call_operand.hbm [shape: f32[2,64,128], index: 9, kind: output, shape index: {2}]
  %10 = xla_tuple %s7, %s8, %s9
  %s11 = sld [smem:[#allocation0]]
  $region105: #{tpu_custom_call.1} parent=0
    _
  %s13 = ssub.s32 1, %s11
  %s14 = scalar_select 0, %s13, %s11
  $region1: #{tpu_custom_call.1} parent=0
    #allocation2 [shape = 'u8[65536]{0}', space=vmem, size = 0x10000, scoped, tag = 'input window, operand 0']
    #allocation3 [shape = 's32[2]{0}', space=sflag, size = 0x8, scoped, tag = 'scoped memory for tpu_custom_call.1']
    #allocation4 [shape = 's32[2]{0}', space=sflag, size = 0x8, scoped, tag = 'scoped memory for tpu_custom_call.1']
    #allocation5 [shape = 'u8[65536]{0}', space=vmem, size = 0x10000, scoped, tag = 'input window, operand 1']
    #allocation6 [shape = 's32[2]{0}', space=sflag, size = 0x8, scoped, tag = 'scoped memory for tpu_custom_call.1']
    #allocation7 [shape = 'u8[8192]{0}', space=vmem, size = 0x2000, scoped, tag = 'input window, operand 2']
    #allocation8 [shape = 'u8[8192]{0}', space=vmem, size = 0x2000, scoped, tag = 'input window, operand 3']
    #allocation9 [shape = 's32[2]{0}', space=sflag, size = 0x8, scoped, tag = 'scoped memory for tpu_custom_call.1']
    #allocation10 [shape = 'u8[548864]{0}', space=vmem, size = 0x86000, scoped, tag = 'input window, operand 4, single buffered']
    #allocation11 [shape = 'u8[131072]{0}', space=vmem, size = 0x20000, scoped, tag = 'input window, operand 5, single buffered']
    #allocation12 [shape = 's32[1]{0}', space=sflag, size = 0x4, scoped, tag = 'scoped memory for tpu_custom_call.1']
    #allocation13 [shape = 'u8[221184]{0}', space=vmem, size = 0x36000, scoped, tag = 'input window, operand 6, single buffered']
    #allocation14 [shape = 'u8[65536]{0}', space=vmem, size = 0x10000, scoped, tag = 'output window, operand 0']
    #allocation15 [shape = 'u8[8192]{0}', space=vmem, size = 0x2000, scoped, tag = 'output window, operand 1']
    #allocation16 [shape = 's32[2]{0}', space=sflag, size = 0x8, scoped, tag = 'scoped memory for tpu_custom_call.1']
    #allocation17 [shape = 'u8[65536]{0}', space=vmem, size = 0x10000, scoped, tag = 'output window, operand 2']
    %15 = vsyncpa [#allocation3], 0
    %s16 = scalar_lea.sflag [#allocation3], 1
    %17 = vsyncpa %s16, 0
    %18 = vsyncpa [#allocation6], 0
    %s19 = scalar_lea.sflag [#allocation6], 1
    %20 = vsyncpa %s19, 0
    %21 = vsyncpa [#allocation9], 0
    %s22 = scalar_lea.sflag [#allocation9], 1
    %23 = vsyncpa %s22, 0
    %24 = vsyncpa [#allocation12], 0
    %25 = vsyncpa [#allocation4], 0
    %s26 = scalar_lea.sflag [#allocation4], 1
    %27 = vsyncpa %s26, 0
    %28 = vsyncpa [#allocation16], 0
    %s29 = scalar_lea.sflag [#allocation16], 1
    %30 = vsyncpa %s29, 0
    loop: start=0, step=1, limit=4
    $region2: #{tpu_custom_call.1} parent=1 // loop_pre_header
      _
    $region3: #{tpu_custom_call.1} parent=1 // loop_header
      %s32 = sphi 0, %s36
      %p33 = scmp.ge.s32.totalorder %s32, 4
      %s42 = sphi 0, %s44
      %s45 = sphi 0, %s42
      %s46 = sphi 0, %s45
      %s62 = sphi 0, %s46
      %s68 = sphi 0, %s70
      %s71 = sphi 0, %s68
      %s72 = sphi 0, %s71
      %s88 = sphi 0, %s72
      %s94 = sphi 0, %s96
      %s97 = sphi 0, %s94
      %s98 = sphi 0, %s97
      %s114 = sphi 0, %s98
      %s120 = sphi 0, %s122
      %s123 = sphi 0, %s120
      %s124 = sphi 0, %s123
      %s140 = sphi 0, %s124
      %s144 = sphi 0, %s144
      %s146 = sphi 0, %s144
      %s147 = sphi 0, %s146
      %s161 = sphi 0, %s147
      %s165 = sphi 0, %s165
      %s167 = sphi 0, %s165
      %s168 = sphi 0, %s167
      %s182 = sphi 0, %s168
      %s186 = sphi 0, %s186
      %s188 = sphi 0, %s186
      %s189 = sphi 0, %s188
      %s203 = sphi 0, %s189
      %s209 = sphi 0, %s211
      %s212 = sphi 0, %s209
      %s213 = sphi 0, %s212
      %s229 = sphi 0, %s213
      %s235 = sphi 0, %s237
      %s238 = sphi 0, %s235
      %s239 = sphi 0, %s238
      %s255 = sphi 0, %s239
      %s261 = sphi 0, %s263
      %s264 = sphi 0, %s261
      %s265 = sphi 0, %s264
      %s281 = sphi 0, %s265
    $region4: #{tpu_custom_call.1} parent=1 // loop_header_branch
      %35 = sbr.rel (%p33) target = $region8
    $region5: #{tpu_custom_call.1} parent=1 // loop_body
      %s37 = ssub.s32 %s32, 1
      %s38 = ssub.s32 %s32, 2
      %s39 = sadd.s32 %s32, 1
      %s40 = ssub.s32 %s32, %s39
      %p41 = scmp.eq.s32.totalorder %s40, 0
      %s43 = sadd.s32 %s42, 1
      %s44 = scalar_select %p41, %s42, %s43
      %p47 = pneg %p41
      %p48 = scmp.eq.s32.totalorder %s32, 1
      %p49 = por %p47, %p48
      %p50 = scmp.ne.s32.totalorder %s42, %s45
      %p51 = scmp.eq.s32.totalorder %s32, 0
      %p52 = por %p50, %p51
      %p53 = scmp.ne.s32.totalorder %s42, %s45
      %p54 = scmp.eq.s32.totalorder %s37, 1
      %p55 = por %p53, %p54
      %p56 = scmp.ne.s32.totalorder %s45, %s46
      %p57 = scmp.eq.s32.totalorder %s37, 0
      %p58 = por %p56, %p57
      %p59 = scmp.ne.s32.totalorder %s45, %s46
      %p60 = scmp.eq.s32.totalorder %s38, 1
      %p61 = por %p59, %p60
      %p63 = scmp.ne.s32.totalorder %s46, %s62
      %p64 = scmp.eq.s32.totalorder %s38, 0
      %p65 = por %p63, %p64
      %s66 = ssub.s32 %s32, %s39
      %p67 = scmp.eq.s32.totalorder %s66, 0
      %s69 = sadd.s32 %s68, 1
      %s70 = scalar_select %p67, %s68, %s69
      %p73 = pneg %p67
      %p74 = scmp.eq.s32.totalorder %s32, 1
      %p75 = por %p73, %p74
      %p76 = scmp.ne.s32.totalorder %s68, %s71
      %p77 = scmp.eq.s32.totalorder %s32, 0
      %p78 = por %p76, %p77
      %p79 = scmp.ne.s32.totalorder %s68, %s71
      %p80 = scmp.eq.s32.totalorder %s37, 1
      %p81 = por %p79, %p80
      %p82 = scmp.ne.s32.totalorder %s71, %s72
      %p83 = scmp.eq.s32.totalorder %s37, 0
      %p84 = por %p82, %p83
      %p85 = scmp.ne.s32.totalorder %s71, %s72
      %p86 = scmp.eq.s32.totalorder %s38, 1
      %p87 = por %p85, %p86
      %p89 = scmp.ne.s32.totalorder %s72, %s88
      %p90 = scmp.eq.s32.totalorder %s38, 0
      %p91 = por %p89, %p90
      %s92 = ssub.s32 %s32, %s39
      %p93 = scmp.eq.s32.totalorder %s92, 0
      %s95 = sadd.s32 %s94, 1
      %s96 = scalar_select %p93, %s94, %s95
      %p99 = pneg %p93
      %p100 = scmp.eq.s32.totalorder %s32, 1
      %p101 = por %p99, %p100
      %p102 = scmp.ne.s32.totalorder %s94, %s97
      %p103 = scmp.eq.s32.totalorder %s32, 0
      %p104 = por %p102, %p103
      %p105 = scmp.ne.s32.totalorder %s94, %s97
      %p106 = scmp.eq.s32.totalorder %s37, 1
      %p107 = por %p105, %p106
      %p108 = scmp.ne.s32.totalorder %s97, %s98
      %p109 = scmp.eq.s32.totalorder %s37, 0
      %p110 = por %p108, %p109
      %p111 = scmp.ne.s32.totalorder %s97, %s98
      %p112 = scmp.eq.s32.totalorder %s38, 1
      %p113 = por %p111, %p112
      %p115 = scmp.ne.s32.totalorder %s98, %s114
      %p116 = scmp.eq.s32.totalorder %s38, 0
      %p117 = por %p115, %p116
      %s118 = ssub.s32 %s32, %s39
      %p119 = scmp.eq.s32.totalorder %s118, 0
      %s121 = sadd.s32 %s120, 1
      %s122 = scalar_select %p119, %s120, %s121
      %p125 = pneg %p119
      %p126 = scmp.eq.s32.totalorder %s32, 1
      %p127 = por %p125, %p126
      %p128 = scmp.ne.s32.totalorder %s120, %s123
      %p129 = scmp.eq.s32.totalorder %s32, 0
      %p130 = por %p128, %p129
      %p131 = scmp.ne.s32.totalorder %s120, %s123
      %p132 = scmp.eq.s32.totalorder %s37, 1
      %p133 = por %p131, %p132
      %p134 = scmp.ne.s32.totalorder %s123, %s124
      %p135 = scmp.eq.s32.totalorder %s37, 0
      %p136 = por %p134, %p135
      %p137 = scmp.ne.s32.totalorder %s123, %s124
      %p138 = scmp.eq.s32.totalorder %s38, 1
      %p139 = por %p137, %p138
      %p141 = scmp.ne.s32.totalorder %s124, %s140
      %p142 = scmp.eq.s32.totalorder %s38, 0
      %p143 = por %p141, %p142
      %s145 = sadd.s32 %s144, 1
      %p148 = scmp.eq.s32.totalorder %s32, 1
      %p149 = scmp.ne.s32.totalorder %s144, %s146
      %p150 = scmp.eq.s32.totalorder %s32, 0
      %p151 = por %p149, %p150
      %p152 = scmp.ne.s32.totalorder %s144, %s146
      %p153 = scmp.eq.s32.totalorder %s37, 1
      %p154 = por %p152, %p153
      %p155 = scmp.ne.s32.totalorder %s146, %s147
      %p156 = scmp.eq.s32.totalorder %s37, 0
      %p157 = por %p155, %p156
      %p158 = scmp.ne.s32.totalorder %s146, %s147
      %p159 = scmp.eq.s32.totalorder %s38, 1
      %p160 = por %p158, %p159
      %p162 = scmp.ne.s32.totalorder %s147, %s161
      %p163 = scmp.eq.s32.totalorder %s38, 0
      %p164 = por %p162, %p163
      %s166 = sadd.s32 %s165, 1
      %p169 = scmp.eq.s32.totalorder %s32, 1
      %p170 = scmp.ne.s32.totalorder %s165, %s167
      %p171 = scmp.eq.s32.totalorder %s32, 0
      %p172 = por %p170, %p171
      %p173 = scmp.ne.s32.totalorder %s165, %s167
      %p174 = scmp.eq.s32.totalorder %s37, 1
      %p175 = por %p173, %p174
      %p176 = scmp.ne.s32.totalorder %s167, %s168
      %p177 = scmp.eq.s32.totalorder %s37, 0
      %p178 = por %p176, %p177
      %p179 = scmp.ne.s32.totalorder %s167, %s168
      %p180 = scmp.eq.s32.totalorder %s38, 1
      %p181 = por %p179, %p180
      %p183 = scmp.ne.s32.totalorder %s168, %s182
      %p184 = scmp.eq.s32.totalorder %s38, 0
      %p185 = por %p183, %p184
      %s187 = sadd.s32 %s186, 1
      %p190 = scmp.eq.s32.totalorder %s32, 1
      %p191 = scmp.ne.s32.totalorder %s186, %s188
      %p192 = scmp.eq.s32.totalorder %s32, 0
      %p193 = por %p191, %p192
      %p194 = scmp.ne.s32.totalorder %s186, %s188
      %p195 = scmp.eq.s32.totalorder %s37, 1
      %p196 = por %p194, %p195
      %p197 = scmp.ne.s32.totalorder %s188, %s189
      %p198 = scmp.eq.s32.totalorder %s37, 0
      %p199 = por %p197, %p198
      %p200 = scmp.ne.s32.totalorder %s188, %s189
      %p201 = scmp.eq.s32.totalorder %s38, 1
      %p202 = por %p200, %p201
      %p204 = scmp.ne.s32.totalorder %s189, %s203
      %p205 = scmp.eq.s32.totalorder %s38, 0
      %p206 = por %p204, %p205
      %s207 = ssub.s32 %s32, %s39
      %p208 = scmp.eq.s32.totalorder %s207, 0
      %s210 = sadd.s32 %s209, 1
      %s211 = scalar_select %p208, %s209, %s210
      %p214 = pneg %p208
      %p215 = scmp.eq.s32.totalorder %s32, 1
      %p216 = por %p214, %p215
      %p217 = scmp.ne.s32.totalorder %s209, %s212
      %p218 = scmp.eq.s32.totalorder %s32, 0
      %p219 = por %p217, %p218
      %p220 = scmp.ne.s32.totalorder %s209, %s212
      %p221 = scmp.eq.s32.totalorder %s37, 1
      %p222 = por %p220, %p221
      %p223 = scmp.ne.s32.totalorder %s212, %s213
      %p224 = scmp.eq.s32.totalorder %s37, 0
      %p225 = por %p223, %p224
      %p226 = scmp.ne.s32.totalorder %s212, %s213
      %p227 = scmp.eq.s32.totalorder %s38, 1
      %p228 = por %p226, %p227
      %p230 = scmp.ne.s32.totalorder %s213, %s229
      %p231 = scmp.eq.s32.totalorder %s38, 0
      %p232 = por %p230, %p231
      %s233 = ssub.s32 %s32, %s39
      %p234 = scmp.eq.s32.totalorder %s233, 0
      %s236 = sadd.s32 %s235, 1
      %s237 = scalar_select %p234, %s235, %s236
      %p240 = pneg %p234
      %p241 = scmp.eq.s32.totalorder %s32, 1
      %p242 = por %p240, %p241
      %p243 = scmp.ne.s32.totalorder %s235, %s238
      %p244 = scmp.eq.s32.totalorder %s32, 0
      %p245 = por %p243, %p244
      %p246 = scmp.ne.s32.totalorder %s235, %s238
      %p247 = scmp.eq.s32.totalorder %s37, 1
      %p248 = por %p246, %p247
      %p249 = scmp.ne.s32.totalorder %s238, %s239
      %p250 = scmp.eq.s32.totalorder %s37, 0
      %p251 = por %p249, %p250
      %p252 = scmp.ne.s32.totalorder %s238, %s239
      %p253 = scmp.eq.s32.totalorder %s38, 1
      %p254 = por %p252, %p253
      %p256 = scmp.ne.s32.totalorder %s239, %s255
      %p257 = scmp.eq.s32.totalorder %s38, 0
      %p258 = por %p256, %p257
      %s259 = ssub.s32 %s32, %s39
      %p260 = scmp.eq.s32.totalorder %s259, 0
      %s262 = sadd.s32 %s261, 1
      %s263 = scalar_select %p260, %s261, %s262
      %p266 = pneg %p260
      %p267 = scmp.eq.s32.totalorder %s32, 1
      %p268 = por %p266, %p267
      %p269 = scmp.ne.s32.totalorder %s261, %s264
      %p270 = scmp.eq.s32.totalorder %s32, 0
      %p271 = por %p269, %p270
      %p272 = scmp.ne.s32.totalorder %s261, %s264
      %p273 = scmp.eq.s32.totalorder %s37, 1
      %p274 = por %p272, %p273
      %p275 = scmp.ne.s32.totalorder %s264, %s265
      %p276 = scmp.eq.s32.totalorder %s37, 0
      %p277 = por %p275, %p276
      %p278 = scmp.ne.s32.totalorder %s264, %s265
      %p279 = scmp.eq.s32.totalorder %s38, 1
      %p280 = por %p278, %p279
      %p282 = scmp.ne.s32.totalorder %s265, %s281
      %p283 = scmp.eq.s32.totalorder %s38, 0
      %p284 = por %p282, %p283
      %p285 = scmp.le.s32.totalorder 1, %s32
      %p286 = scmp.lt.s32.totalorder %s32, 3
      %p287 = pnand %p285, %p286
      %p288 = pneg %p287
      // Predicated region
      $region9: #{tpu_custom_call.1} parent=5 // pred_check
        _
      $region10: #{tpu_custom_call.1} parent=5 // pred_check_branch
        %290 = sbr.rel (%p287) target = $region12
      $region11: #{tpu_custom_call.1} parent=5 // pred_region
        %s291 = ssub.s32 %s32, 1
        // Predicated region
        $region13: #{tpu_custom_call.1} parent=11 // pred_check
          %p292 = pneg %p157
        $region14: #{tpu_custom_call.1} parent=11 // pred_check_branch
          %294 = sbr.rel (%p292) target = $region16
        $region15: #{tpu_custom_call.1} parent=11 // pred_region
          %296 = vsyncadd [#allocation9], 0
          %s297 = sshll.u32 %s4, 4
          %s298 = int_to_ptr.hbm [resolvable:$true] %s297
          %s299 = sshll.u32 [#allocation10], 4
          %s300 = int_to_ptr.vmem [resolvable:$true] %s299
          %305 = dma.hbm_to_vmem [thread:$0]  %s298, 17152, %s300, [#allocation9], 64, 64, 4
        $region16: #{tpu_custom_call.1} parent=11 // pred_fallthru
          _
        // Predicated region
        $region17: #{tpu_custom_call.1} parent=11 // pred_check
          %p306 = pneg %p178
        $region18: #{tpu_custom_call.1} parent=11 // pred_check_branch
          %308 = sbr.rel (%p306) target = $region20
        $region19: #{tpu_custom_call.1} parent=11 // pred_region
          %310 = vsyncadd [#allocation12], 0
          %s311 = sshll.u32 %s5, 4
          %s312 = int_to_ptr.hbm [resolvable:$true] %s311
          %s313 = sshll.u32 [#allocation11], 4
          %s314 = int_to_ptr.vmem [resolvable:$true] %s313
          %319 = dma.hbm_to_vmem [thread:$0]  %s312, 4096, %s314, [#allocation12], 128, 128, 8
        $region20: #{tpu_custom_call.1} parent=11 // pred_fallthru
          _
        // Predicated region
        $region21: #{tpu_custom_call.1} parent=11 // pred_check
          %p320 = pneg %p199
        $region22: #{tpu_custom_call.1} parent=11 // pred_check_branch
          %322 = sbr.rel (%p320) target = $region24
        $region23: #{tpu_custom_call.1} parent=11 // pred_region
          %324 = vsyncadd [#allocation12], 0
          %s325 = sshll.u32 %s6, 4
          %s326 = int_to_ptr.hbm [resolvable:$true] %s325
          %s327 = sshll.u32 [#allocation13], 4
          %s328 = int_to_ptr.vmem [resolvable:$true] %s327
          %333 = dma.hbm_to_vmem [thread:$0]  %s326, 6912, %s328, [#allocation12], 256, 256, 16
        $region24: #{tpu_custom_call.1} parent=11 // pred_fallthru
          _
      $region12: #{tpu_custom_call.1} parent=5 // pred_fallthru
        _
      %p334 = scmp.lt.s32.totalorder %s32, 2
      // Predicated region
      $region25: #{tpu_custom_call.1} parent=5 // pred_check
        %p335 = pneg %p334
      $region26: #{tpu_custom_call.1} parent=5 // pred_check_branch
        %337 = sbr.rel (%p335) target = $region28
      $region27: #{tpu_custom_call.1} parent=5 // pred_region
        // Predicated region
        $region29: #{tpu_custom_call.1} parent=27 // pred_check
          %p338 = pneg %p52
        $region30: #{tpu_custom_call.1} parent=27 // pred_check_branch
          %340 = sbr.rel (%p338) target = $region32
        $region31: #{tpu_custom_call.1} parent=27 // pred_region
          %s341 = sand.u32 %s42, 1
          %s342 = scalar_lea.sflag [#allocation3], %s341
          %s343 = sand.u32 %s42, 1
          %s344 = smul.addr %s343, 64
          %s345 = scalar_lea.vmem [#allocation2], %s344
          %347 = vsyncadd %s342, 0
          %s348 = smul.addr %s32, 8
          %s349 = smul.addr %s348, 8
          %s350 = scalar_lea.hbm %s0, %s349
          %s351 = sshll.u32 %s350, 4
          %s352 = int_to_ptr.hbm [resolvable:$true] %s351
          %s353 = sshll.u32 %s345, 4
          %s354 = int_to_ptr.vmem [resolvable:$true] %s353
          %359 = dma.hbm_to_vmem [thread:$0]  %s352, 1024, %s354, %s342, 128, 128, 8
        $region32: #{tpu_custom_call.1} parent=27 // pred_fallthru
          _
        // Predicated region
        $region33: #{tpu_custom_call.1} parent=27 // pred_check
          %p360 = pneg %p78
        $region34: #{tpu_custom_call.1} parent=27 // pred_check_branch
          %362 = sbr.rel (%p360) target = $region36
        $region35: #{tpu_custom_call.1} parent=27 // pred_region
          %s363 = sand.u32 %s32, 1
          %s364 = scalar_lea.sflag [#allocation6], %s363
          %s365 = sand.u32 %s68, 1
          %s366 = smul.addr %s365, 64
          %s367 = scalar_lea.vmem [#allocation5], %s366
          %369 = vsyncadd %s364, 0
          %s370 = smul.addr %s32, 8
          %s371 = smul.addr %s370, 8
          %s372 = scalar_lea.hbm %s1, %s371
          %s373 = sshll.u32 %s372, 4
          %s374 = int_to_ptr.hbm [resolvable:$true] %s373
          %s375 = sshll.u32 %s367, 4
          %s376 = int_to_ptr.vmem [resolvable:$true] %s375
          %381 = dma.hbm_to_vmem [thread:$0]  %s374, 1024, %s376, %s364, 128, 128, 8
        $region36: #{tpu_custom_call.1} parent=27 // pred_fallthru
          _
        // Predicated region
        $region37: #{tpu_custom_call.1} parent=27 // pred_check
          %p382 = pneg %p104
        $region38: #{tpu_custom_call.1} parent=27 // pred_check_branch
          %384 = sbr.rel (%p382) target = $region40
        $region39: #{tpu_custom_call.1} parent=27 // pred_region
          %s385 = sand.u32 %s32, 1
          %s386 = scalar_lea.sflag [#allocation6], %s385
          %s387 = sand.u32 %s94, 1
          %s388 = smul.addr %s387, 8
          %s389 = scalar_lea.vmem [#allocation7], %s388
          %391 = vsyncadd %s386, 0
          %s392 = smul.addr %s32, 8
          %s393 = scalar_lea.hbm %s2, %s392
          %s395 = sshll.u32 %s393, 4
          %s396 = int_to_ptr.hbm [resolvable:$true] %s395
          %s397 = sshll.u32 %s389, 4
          %s398 = int_to_ptr.vmem [resolvable:$true] %s397
          %400 = dma.hbm_to_vmem [thread:$0]  %s396, 128, %s398, %s386
        $region40: #{tpu_custom_call.1} parent=27 // pred_fallthru
          _
        // Predicated region
        $region41: #{tpu_custom_call.1} parent=27 // pred_check
          %p401 = pneg %p130
        $region42: #{tpu_custom_call.1} parent=27 // pred_check_branch
          %403 = sbr.rel (%p401) target = $region44
        $region43: #{tpu_custom_call.1} parent=27 // pred_region
          %s404 = sand.u32 %s32, 1
          %s405 = scalar_lea.sflag [#allocation9], %s404
          %s406 = sand.u32 %s120, 1
          %s407 = smul.addr %s406, 8
          %s408 = scalar_lea.vmem [#allocation8], %s407
          %410 = vsyncadd %s405, 0
          %s411 = smul.addr %s32, 8
          %s412 = scalar_lea.hbm %s3, %s411
          %s414 = sshll.u32 %s412, 4
          %s415 = int_to_ptr.hbm [resolvable:$true] %s414
          %s416 = sshll.u32 %s408, 4
          %s417 = int_to_ptr.vmem [resolvable:$true] %s416
          %419 = dma.hbm_to_vmem [thread:$0]  %s415, 128, %s417, %s405
        $region44: #{tpu_custom_call.1} parent=27 // pred_fallthru
          _
      $region28: #{tpu_custom_call.1} parent=5 // pred_fallthru
        _
      %p420 = scmp.le.s32.totalorder 1, %s32
      %p421 = scmp.lt.s32.totalorder %s32, 3
      %p422 = pnand %p420, %p421
      %p423 = pneg %p422
      // Predicated region
      $region45: #{tpu_custom_call.1} parent=5 // pred_check
        _
      $region46: #{tpu_custom_call.1} parent=5 // pred_check_branch
        %425 = sbr.rel (%p422) target = $region48
      $region47: #{tpu_custom_call.1} parent=5 // pred_region
        %s426 = ssub.s32 %s32, 1
        %s427 = sand.u32 %s45, 1
        %s428 = scalar_lea.sflag [#allocation3], %s427
        %s429 = sand.u32 %s45, 1
        %s430 = smul.addr %s429, 64
        %s431 = scalar_lea.vmem [#allocation2], %s430
        // Predicated region
        $region49: #{tpu_custom_call.1} parent=47 // pred_check
          %p432 = pneg %p58
        $region50: #{tpu_custom_call.1} parent=47 // pred_check_branch
          %434 = sbr.rel (%p432) target = $region52
        $region51: #{tpu_custom_call.1} parent=47 // pred_region
          %436 = dma.done %s428, 1024
        $region52: #{tpu_custom_call.1} parent=47 // pred_fallthru
          _
        %s437 = sand.u32 %s37, 1
        %s438 = scalar_lea.sflag [#allocation6], %s437
        %s439 = sand.u32 %s71, 1
        %s440 = smul.addr %s439, 64
        %s441 = scalar_lea.vmem [#allocation5], %s440
        // Predicated region
        $region53: #{tpu_custom_call.1} parent=47 // pred_check
          %p442 = pneg %p84
        $region54: #{tpu_custom_call.1} parent=47 // pred_check_branch
          %444 = sbr.rel (%p442) target = $region56
        $region55: #{tpu_custom_call.1} parent=47 // pred_region
          %446 = dma.done %s438, 1024
        $region56: #{tpu_custom_call.1} parent=47 // pred_fallthru
          _
        %s447 = sand.u32 %s37, 1
        %s448 = scalar_lea.sflag [#allocation6], %s447
        %s449 = sand.u32 %s97, 1
        %s450 = smul.addr %s449, 8
        %s451 = scalar_lea.vmem [#allocation7], %s450
        // Predicated region
        $region57: #{tpu_custom_call.1} parent=47 // pred_check
          %p452 = pneg %p110
        $region58: #{tpu_custom_call.1} parent=47 // pred_check_branch
          %454 = sbr.rel (%p452) target = $region60
        $region59: #{tpu_custom_call.1} parent=47 // pred_region
          %456 = dma.done %s448, 128
        $region60: #{tpu_custom_call.1} parent=47 // pred_fallthru
          _
        %s457 = sand.u32 %s37, 1
        %s458 = scalar_lea.sflag [#allocation9], %s457
        %s459 = sand.u32 %s123, 1
        %s460 = smul.addr %s459, 8
        %s461 = scalar_lea.vmem [#allocation8], %s460
        // Predicated region
        $region61: #{tpu_custom_call.1} parent=47 // pred_check
          %p462 = pneg %p136
        $region62: #{tpu_custom_call.1} parent=47 // pred_check_branch
          %464 = sbr.rel (%p462) target = $region64
        $region63: #{tpu_custom_call.1} parent=47 // pred_region
          %466 = dma.done %s458, 128
        $region64: #{tpu_custom_call.1} parent=47 // pred_fallthru
          _
        // Predicated region
        $region65: #{tpu_custom_call.1} parent=47 // pred_check
          %p467 = pneg %p157
        $region66: #{tpu_custom_call.1} parent=47 // pred_check_branch
          %469 = sbr.rel (%p467) target = $region68
        $region67: #{tpu_custom_call.1} parent=47 // pred_region
          %471 = dma.done [#allocation9], 17152
        $region68: #{tpu_custom_call.1} parent=47 // pred_fallthru
          _
        // Predicated region
        $region69: #{tpu_custom_call.1} parent=47 // pred_check
          %p472 = pneg %p178
        $region70: #{tpu_custom_call.1} parent=47 // pred_check_branch
          %474 = sbr.rel (%p472) target = $region72
        $region71: #{tpu_custom_call.1} parent=47 // pred_region
          %476 = dma.done [#allocation12], 4096
        $region72: #{tpu_custom_call.1} parent=47 // pred_fallthru
          _
        // Predicated region
        $region73: #{tpu_custom_call.1} parent=47 // pred_check
          %p477 = pneg %p199
        $region74: #{tpu_custom_call.1} parent=47 // pred_check_branch
          %479 = sbr.rel (%p477) target = $region76
        $region75: #{tpu_custom_call.1} parent=47 // pred_region
          %481 = dma.done [#allocation12], 6912
        $region76: #{tpu_custom_call.1} parent=47 // pred_fallthru
          _
        %s482 = sand.u32 %s45, 1
        %s483 = scalar_lea.sflag [#allocation3], %s482
        %s484 = sand.u32 %s45, 1
        %s485 = smul.addr %s484, 64
        %s486 = scalar_lea.vmem [#allocation2], %s485
        %p487 = pneg %p58
        %p488 = pneg %p55
        %s489 = sand.u32 %s37, 1
        %s490 = scalar_lea.sflag [#allocation6], %s489
        %s491 = sand.u32 %s71, 1
        %s492 = smul.addr %s491, 64
        %s493 = scalar_lea.vmem [#allocation5], %s492
        %p494 = pneg %p84
        %p495 = pneg %p81
        %s496 = sand.u32 %s37, 1
        %s497 = scalar_lea.sflag [#allocation6], %s496
        %s498 = sand.u32 %s97, 1
        %s499 = smul.addr %s498, 8
        %s500 = scalar_lea.vmem [#allocation7], %s499
        %p501 = pneg %p110
        %p502 = pneg %p107
        %s503 = sand.u32 %s37, 1
        %s504 = scalar_lea.sflag [#allocation9], %s503
        %s505 = sand.u32 %s123, 1
        %s506 = smul.addr %s505, 8
        %s507 = scalar_lea.vmem [#allocation8], %s506
        %p508 = pneg %p136
        %p509 = pneg %p133
        %p510 = pneg %p157
        %p511 = pneg %p154
        %p512 = pneg %p178
        %p513 = pneg %p175
        %p514 = pneg %p199
        %p515 = pneg %p196
        %p516 = pneg %p225
        %p517 = pneg %p222
        %s518 = sand.u32 %s212, 1
        %s519 = scalar_lea.sflag [#allocation4], %s518
        %s520 = sand.u32 %s212, 1
        %s521 = smul.addr %s520, 64
        %s522 = scalar_lea.vmem [#allocation14], %s521
        %p523 = pneg %p251
        %p524 = pneg %p248
        %s525 = sand.u32 %s37, 1
        %s526 = scalar_lea.sflag [#allocation16], %s525
        %s527 = sand.u32 %s238, 1
        %s528 = smul.addr %s527, 8
        %s529 = scalar_lea.vmem [#allocation15], %s528
        %p530 = pneg %p277
        %p531 = pneg %p274
        %s532 = sand.u32 %s37, 1
        %s533 = scalar_lea.sflag [#allocation16], %s532
        %s534 = sand.u32 %s264, 1
        %s535 = smul.addr %s534, 64
        %s536 = scalar_lea.vmem [#allocation17], %s535
        %v538 = vld [vmem:[%s431] sm:$0xff]
        %v539 = vld [vmem:[%s431 + $0x8] sm:$0xff]
        %v540 = vld [vmem:[%s431 + $0x10] sm:$0xff]
        %v541 = vld [vmem:[%s431 + $0x18] sm:$0xff]
        %v542 = vld [vmem:[%s431 + $0x20] sm:$0xff]
        %v543 = vld [vmem:[%s431 + $0x28] sm:$0xff]
        %v544 = vld [vmem:[%s431 + $0x30] sm:$0xff]
        %v545 = vld [vmem:[%s431 + $0x38] sm:$0xff]
        %v546 = vld [vmem:[%s441] sm:$0xff]
        %v547 = vld [vmem:[%s441 + $0x8] sm:$0xff]
        %v548 = vld [vmem:[%s441 + $0x10] sm:$0xff]
        %v549 = vld [vmem:[%s441 + $0x18] sm:$0xff]
        %v550 = vld [vmem:[%s441 + $0x20] sm:$0xff]
        %v551 = vld [vmem:[%s441 + $0x28] sm:$0xff]
        %v552 = vld [vmem:[%s441 + $0x30] sm:$0xff]
        %v553 = vld [vmem:[%s441 + $0x38] sm:$0xff]
        %v554 = vld [vmem:[%s451] sm:$0xff]
        %v555 = vld [vmem:[%s461] sm:$0xff]
        %v556 = vld [vmem:[#allocation10 + $0x1a0] sm:$0xf]
        %v557 = vld [vmem:[#allocation10 + $0x1a4] sm:$0xf]
        %v558 = vld [vmem:[#allocation10 + $0x1a8] sm:$0xf]
        %v559 = vld [vmem:[#allocation10 + $0x1ac] sm:$0xf]
        %v560 = vld [vmem:[#allocation10 + $0x1b0] sm:$0xf]
        %v561 = vld [vmem:[#allocation10 + $0x1b4] sm:$0xf]
        %v562 = vld [vmem:[#allocation10 + $0x1b8] sm:$0xf]
        %v563 = vld [vmem:[#allocation10 + $0x1bc] sm:$0xf]
        %v564 = vld [vmem:[#allocation10 + $0x1c0] sm:$0xf]
        %v565 = vld [vmem:[#allocation10 + $0x1c4] sm:$0xf]
        %v566 = vld [vmem:[#allocation10 + $0x1c8] sm:$0xf]
        %v567 = vld [vmem:[#allocation10 + $0x1cc] sm:$0xf]
        %v568 = vld [vmem:[#allocation10 + $0x1d0] sm:$0xf]
        %v569 = vld [vmem:[#allocation10 + $0x1d4] sm:$0xf]
        %v570 = vld [vmem:[#allocation10 + $0x1d8] sm:$0xf]
        %v571 = vld [vmem:[#allocation10 + $0x1dc] sm:$0xf]
        %v572 = vld [vmem:[#allocation10 + $0x1e0] sm:$0xf]
        %v573 = vld [vmem:[#allocation10] sm:$0xf]
        %v574 = vld [vmem:[#allocation10 + $0x4] sm:$0xf]
        %v575 = vld [vmem:[#allocation10 + $0x8] sm:$0xf]
        %v576 = vld [vmem:[#allocation10 + $0xc] sm:$0xf]
        %v577 = vld [vmem:[#allocation10 + $0x10] sm:$0xf]
        %v578 = vld [vmem:[#allocation10 + $0x14] sm:$0xf]
        %v579 = vld [vmem:[#allocation10 + $0x18] sm:$0xf]
        %v580 = vld [vmem:[#allocation10 + $0x1c] sm:$0xf]
        %v581 = vld [vmem:[#allocation10 + $0x20] sm:$0xf]
        %v582 = vld [vmem:[#allocation10 + $0x24] sm:$0xf]
        %v583 = vld [vmem:[#allocation10 + $0x28] sm:$0xf]
        %v584 = vld [vmem:[#allocation10 + $0x2c] sm:$0xf]
        %v585 = vld [vmem:[#allocation10 + $0x30] sm:$0xf]
        %v586 = vld [vmem:[#allocation10 + $0x34] sm:$0xf]
        %v587 = vld [vmem:[#allocation10 + $0x38] sm:$0xf]
        %v588 = vld [vmem:[#allocation10 + $0x3c] sm:$0xf]
        %v589 = vpack.c.bf16 %v539, %v538
        %v590 = vpack.c.bf16 %v541, %v540
        %v591 = vpack.c.bf16 %v543, %v542
        %v592 = vpack.c.bf16 %v545, %v544
        %v593 = vld [vmem:[#allocation13] ss:$0 sm:$0xff]
        %v610 = vunpack.c.l.b16 %v573
        %v611 = vunpack.c.l.b16 %v574
        %v612 = vunpack.c.l.b16 %v575
        %v613 = vunpack.c.l.b16 %v576
        %v614 = vunpack.c.l.b16 %v577
        %v615 = vunpack.c.l.b16 %v578
        %v616 = vunpack.c.l.b16 %v579
        %v617 = vunpack.c.l.b16 %v580
        %v618 = vunpack.c.l.b16 %v581
        %v619 = vunpack.c.l.b16 %v582
        %v620 = vunpack.c.l.b16 %v583
        %v621 = vunpack.c.l.b16 %v584
        %v622 = vunpack.c.l.b16 %v585
        %v623 = vunpack.c.l.b16 %v586
        %v624 = vunpack.c.l.b16 %v587
        %v625 = vunpack.c.l.b16 %v588
        %v626 = vpack.c.b16 %v611, %v610
        %v627 = vpack.c.b16 %v613, %v612
        %v628 = vpack.c.b16 %v615, %v614
        %v629 = vpack.c.b16 %v617, %v616
        %v630 = vpack.c.b16 %v619, %v618
        %v631 = vpack.c.b16 %v621, %v620
        %v632 = vpack.c.b16 %v623, %v622
        %v633 = vpack.c.b16 %v625, %v624
        %642 = vmatpush.bf16.msra.mxu0 %v633
        %643 = vmatpush.bf16.msra.mxu0 %v632
        %644 = vmatpush.bf16.msra.mxu0 %v631
        %645 = vmatpush.bf16.msra.mxu0 %v630
        %646 = vmatpush.bf16.msra.mxu0 %v629
        %647 = vmatpush.bf16.msra.mxu0 %v628
        %648 = vmatpush.bf16.msra.mxu0 %v627
        %649 = vmatpush.bf16.msra.mxu0 %v626
        %650 = vmatmul.bf16.gmra.mxu0 %v589
        %v651 = vpop.f32.mrf.mxu0
        %v652 = vadd.f32 %v593, %v651
        %v653 = vpop.f32.mrf.mxu0
        %v654 = vadd.f32 %v593, %v653
        %655 = vmatmul.bf16.gmra.mxu0 %v590
        %v656 = vpop.f32.mrf.mxu0
        %v657 = vadd.f32 %v593, %v656
        %v658 = vpop.f32.mrf.mxu0
        %v659 = vadd.f32 %v593, %v658
        %660 = vmatmul.bf16.gmra.mxu0 %v591
        %v661 = vpop.f32.mrf.mxu0
        %v662 = vadd.f32 %v593, %v661
        %v663 = vpop.f32.mrf.mxu0
        %v664 = vadd.f32 %v593, %v663
        %665 = vmatmul.bf16.gmra.mxu0 %v592
        %v666 = vpop.f32.mrf.mxu0
        %v667 = vadd.f32 %v593, %v666
        %v668 = vpop.f32.mrf.mxu0
        %v669 = vadd.f32 %v593, %v668
        %670 = vdwg.mxu0
        %v671 = vmax.f32 %v652, 0.0
        %v672 = vmax.f32 %v654, 0.0
        %v673 = vmax.f32 %v657, 0.0
        %v674 = vmax.f32 %v659, 0.0
        %v675 = vmax.f32 %v662, 0.0
        %v676 = vmax.f32 %v664, 0.0
        %v677 = vmax.f32 %v667, 0.0
        %v678 = vmax.f32 %v669, 0.0
        %v679 = vld [vmem:[#allocation11] sm:$0xff]
        %v680 = vld [vmem:[#allocation11 + $0x8] sm:$0xff]
        %v681 = vld [vmem:[#allocation11 + $0x10] sm:$0xff]
        %v682 = vld [vmem:[#allocation11 + $0x18] sm:$0xff]
        %v683 = vld [vmem:[#allocation11 + $0x20] sm:$0xff]
        %v684 = vld [vmem:[#allocation11 + $0x28] sm:$0xff]
        %v685 = vld [vmem:[#allocation11 + $0x30] sm:$0xff]
        %v686 = vld [vmem:[#allocation11 + $0x38] sm:$0xff]
        %v687 = vld [vmem:[#allocation11 + $0x40] sm:$0xff]
        %v688 = vld [vmem:[#allocation11 + $0x48] sm:$0xff]
        %v689 = vld [vmem:[#allocation11 + $0x50] sm:$0xff]
        %v690 = vld [vmem:[#allocation11 + $0x58] sm:$0xff]
        %v691 = vld [vmem:[#allocation11 + $0x60] sm:$0xff]
        %v692 = vld [vmem:[#allocation11 + $0x68] sm:$0xff]
        %v693 = vld [vmem:[#allocation11 + $0x70] sm:$0xff]
        %v694 = vld [vmem:[#allocation11 + $0x78] sm:$0xff]
        %v695 = vpack.c.bf16 %v672, %v671
        %v696 = vpack.c.bf16 %v674, %v673
        %v697 = vpack.c.bf16 %v676, %v675
        %v698 = vpack.c.bf16 %v678, %v677
        %s699 = scalar_lea.vmem [#allocation13], 16
        %v700 = vld [vmem:[%s699] ss:$8 sm:$0x3]
        %v702 = vperm.slane %v700, 0
        %v703 = vperm.slane %v700, 1
        %v722 = vunpack.c.l.b16 %v679
        %v723 = vunpack.c.h.b16 %v679
        %v724 = vunpack.c.l.b16 %v680
        %v725 = vunpack.c.h.b16 %v680
        %v726 = vunpack.c.l.b16 %v681
        %v727 = vunpack.c.h.b16 %v681
        %v728 = vunpack.c.l.b16 %v682
        %v729 = vunpack.c.h.b16 %v682
        %v730 = vunpack.c.l.b16 %v683
        %v731 = vunpack.c.h.b16 %v683
        %v732 = vunpack.c.l.b16 %v684
        %v733 = vunpack.c.h.b16 %v684
        %v734 = vunpack.c.l.b16 %v685
        %v735 = vunpack.c.h.b16 %v685
        %v736 = vunpack.c.l.b16 %v686
        %v737 = vunpack.c.h.b16 %v686
        %v738 = vunpack.c.l.b16 %v687
        %v739 = vunpack.c.h.b16 %v687
        %v740 = vunpack.c.l.b16 %v688
        %v741 = vunpack.c.h.b16 %v688
        %v742 = vunpack.c.l.b16 %v689
        %v743 = vunpack.c.h.b16 %v689
        %v744 = vunpack.c.l.b16 %v690
        %v745 = vunpack.c.h.b16 %v690
        %v746 = vunpack.c.l.b16 %v691
        %v747 = vunpack.c.h.b16 %v691
        %v748 = vunpack.c.l.b16 %v692
        %v749 = vunpack.c.h.b16 %v692
        %v750 = vunpack.c.l.b16 %v693
        %v751 = vunpack.c.h.b16 %v693
        %v752 = vunpack.c.l.b16 %v694
        %v753 = vunpack.c.h.b16 %v694
        %v754 = vpack.c.b16 %v724, %v722
        %v755 = vpack.c.b16 %v725, %v723
        %v756 = vpack.c.b16 %v728, %v726
        %v757 = vpack.c.b16 %v729, %v727
        %v758 = vpack.c.b16 %v732, %v730
        %v759 = vpack.c.b16 %v733, %v731
        %v760 = vpack.c.b16 %v736, %v734
        %v761 = vpack.c.b16 %v737, %v735
        %v762 = vpack.c.b16 %v740, %v738
        %v763 = vpack.c.b16 %v741, %v739
        %v764 = vpack.c.b16 %v744, %v742
        %v765 = vpack.c.b16 %v745, %v743
        %v766 = vpack.c.b16 %v748, %v746
        %v767 = vpack.c.b16 %v749, %v747
        %v768 = vpack.c.b16 %v752, %v750
        %v769 = vpack.c.b16 %v753, %v751
        %786 = vmatpush.bf16.msra.mxu0 %v768
        %787 = vmatpush.bf16.msra.mxu0 %v766
        %788 = vmatpush.bf16.msra.mxu0 %v764
        %789 = vmatpush.bf16.msra.mxu0 %v762
        %790 = vmatpush.bf16.msra.mxu0 %v760
        %791 = vmatpush.bf16.msra.mxu0 %v758
        %792 = vmatpush.bf16.msra.mxu0 %v756
        %793 = vmatpush.bf16.msra.mxu0 %v754
        %794 = vmatmul.bf16.gmra.mxu0 %v695
        %v795 = vpop.f32.mrf.mxu0
        %v796 = vadd.f32 %v702, %v795
        %v797 = vpop.f32.mrf.mxu0
        %v798 = vadd.f32 %v702, %v797
        %799 = vmatmul.bf16.gmra.mxu0 %v696
        %v800 = vpop.f32.mrf.mxu0
        %v801 = vadd.f32 %v702, %v800
        %v802 = vpop.f32.mrf.mxu0
        %v803 = vadd.f32 %v702, %v802
        %804 = vmatmul.bf16.gmra.mxu0 %v697
        %v805 = vpop.f32.mrf.mxu0
        %v806 = vadd.f32 %v702, %v805
        %v807 = vpop.f32.mrf.mxu0
        %v808 = vadd.f32 %v702, %v807
        %809 = vmatmul.bf16.gmra.mxu0 %v698
        %v810 = vpop.f32.mrf.mxu0
        %v811 = vadd.f32 %v702, %v810
        %v812 = vpop.f32.mrf.mxu0
        %v813 = vadd.f32 %v702, %v812
        %814 = vdwg.mxu0
        %815 = vmatpush.bf16.msra.mxu0 %v769
        %816 = vmatpush.bf16.msra.mxu0 %v767
        %817 = vmatpush.bf16.msra.mxu0 %v765
        %818 = vmatpush.bf16.msra.mxu0 %v763
        %819 = vmatpush.bf16.msra.mxu0 %v761
        %820 = vmatpush.bf16.msra.mxu0 %v759
        %821 = vmatpush.bf16.msra.mxu0 %v757
        %822 = vmatpush.bf16.msra.mxu0 %v755
        %823 = vmatmul.bf16.gmra.mxu0 %v695
        %v824 = vpop.f32.mrf.mxu0
        %v825 = vadd.f32 %v703, %v824
        %v826 = vpop.f32.mrf.mxu0
        %v827 = vadd.f32 %v703, %v826
        %828 = vmatmul.bf16.gmra.mxu0 %v696
        %v829 = vpop.f32.mrf.mxu0
        %v830 = vadd.f32 %v703, %v829
        %v831 = vpop.f32.mrf.mxu0
        %v832 = vadd.f32 %v703, %v831
        %833 = vmatmul.bf16.gmra.mxu0 %v697
        %v834 = vpop.f32.mrf.mxu0
        %v835 = vadd.f32 %v703, %v834
        %v836 = vpop.f32.mrf.mxu0
        %v837 = vadd.f32 %v703, %v836
        %838 = vmatmul.bf16.gmra.mxu0 %v698
        %v839 = vpop.f32.mrf.mxu0
        %v840 = vadd.f32 %v703, %v839
        %v841 = vpop.f32.mrf.mxu0
        %v842 = vadd.f32 %v703, %v841
        %843 = vdwg.mxu0
        %v844 = vmax.f32 %v796, 0.0
        %v845 = vmax.f32 %v825, 0.0
        %v846 = vmax.f32 %v798, 0.0
        %v847 = vmax.f32 %v827, 0.0
        %v848 = vmax.f32 %v801, 0.0
        %v849 = vmax.f32 %v830, 0.0
        %v850 = vmax.f32 %v803, 0.0
        %v851 = vmax.f32 %v832, 0.0
        %v852 = vmax.f32 %v806, 0.0
        %v853 = vmax.f32 %v835, 0.0
        %v854 = vmax.f32 %v808, 0.0
        %v855 = vmax.f32 %v837, 0.0
        %v856 = vmax.f32 %v811, 0.0
        %v857 = vmax.f32 %v840, 0.0
        %v858 = vmax.f32 %v813, 0.0
        %v859 = vmax.f32 %v842, 0.0
        %v860 = vld [vmem:[#allocation10 + $0x40] sm:$0xf]
        %v861 = vld [vmem:[#allocation10 + $0x44] sm:$0xf]
        %v862 = vld [vmem:[#allocation10 + $0x48] sm:$0xf]
        %v863 = vld [vmem:[#allocation10 + $0x4c] sm:$0xf]
        %v864 = vld [vmem:[#allocation10 + $0x50] sm:$0xf]
        %v865 = vld [vmem:[#allocation10 + $0x54] sm:$0xf]
        %v866 = vld [vmem:[#allocation10 + $0x58] sm:$0xf]
        %v867 = vld [vmem:[#allocation10 + $0x5c] sm:$0xf]
        %v868 = vld [vmem:[#allocation10 + $0x60] sm:$0xf]
        %v869 = vld [vmem:[#allocation10 + $0x64] sm:$0xf]
        %v870 = vld [vmem:[#allocation10 + $0x68] sm:$0xf]
        %v871 = vld [vmem:[#allocation10 + $0x6c] sm:$0xf]
        %v872 = vld [vmem:[#allocation10 + $0x70] sm:$0xf]
        %v873 = vld [vmem:[#allocation10 + $0x74] sm:$0xf]
        %v874 = vld [vmem:[#allocation10 + $0x78] sm:$0xf]
        %v875 = vld [vmem:[#allocation10 + $0x7c] sm:$0xf]
        %v876 = vld [vmem:[#allocation10 + $0x80] sm:$0xf]
        %v877 = vld [vmem:[#allocation10 + $0x84] sm:$0xf]
        %v878 = vld [vmem:[#allocation10 + $0x88] sm:$0xf]
        %v879 = vld [vmem:[#allocation10 + $0x8c] sm:$0xf]
        %v880 = vld [vmem:[#allocation10 + $0x90] sm:$0xf]
        %v881 = vld [vmem:[#allocation10 + $0x94] sm:$0xf]
        %v882 = vld [vmem:[#allocation10 + $0x98] sm:$0xf]
        %v883 = vld [vmem:[#allocation10 + $0x9c] sm:$0xf]
        %v884 = vld [vmem:[#allocation10 + $0xa0] sm:$0xf]
        %v885 = vld [vmem:[#allocation10 + $0xa4] sm:$0xf]
        %v886 = vld [vmem:[#allocation10 + $0xa8] sm:$0xf]
        %v887 = vld [vmem:[#allocation10 + $0xac] sm:$0xf]
        %v888 = vld [vmem:[#allocation10 + $0xb0] sm:$0xf]
        %v889 = vld [vmem:[#allocation10 + $0xb4] sm:$0xf]
        %v890 = vld [vmem:[#allocation10 + $0xb8] sm:$0xf]
        %v891 = vld [vmem:[#allocation10 + $0xbc] sm:$0xf]
        %v892 = vpack.c.bf16 %v846, %v844
        %v893 = vpack.c.bf16 %v847, %v845
        %v894 = vpack.c.bf16 %v850, %v848
        %v895 = vpack.c.bf16 %v851, %v849
        %v896 = vpack.c.bf16 %v854, %v852
        %v897 = vpack.c.bf16 %v855, %v853
        %v898 = vpack.c.bf16 %v858, %v856
        %v899 = vpack.c.bf16 %v859, %v857
        %v900 = vld [vmem:[#allocation13 + $0x20] ss:$0 sm:$0xff]
        %v933 = vunpack.c.l.b16 %v860
        %v934 = vunpack.c.l.b16 %v861
        %v935 = vunpack.c.l.b16 %v862
        %v936 = vunpack.c.l.b16 %v863
        %v937 = vunpack.c.l.b16 %v864
        %v938 = vunpack.c.l.b16 %v865
        %v939 = vunpack.c.l.b16 %v866
        %v940 = vunpack.c.l.b16 %v867
        %v941 = vunpack.c.l.b16 %v868
        %v942 = vunpack.c.l.b16 %v869
        %v943 = vunpack.c.l.b16 %v870
        %v944 = vunpack.c.l.b16 %v871
        %v945 = vunpack.c.l.b16 %v872
        %v946 = vunpack.c.l.b16 %v873
        %v947 = vunpack.c.l.b16 %v874
        %v948 = vunpack.c.l.b16 %v875
        %v949 = vunpack.c.l.b16 %v876
        %v950 = vunpack.c.l.b16 %v877
        %v951 = vunpack.c.l.b16 %v878
        %v952 = vunpack.c.l.b16 %v879
        %v953 = vunpack.c.l.b16 %v880
        %v954 = vunpack.c.l.b16 %v881
        %v955 = vunpack.c.l.b16 %v882
        %v956 = vunpack.c.l.b16 %v883
        %v957 = vunpack.c.l.b16 %v884
        %v958 = vunpack.c.l.b16 %v885
        %v959 = vunpack.c.l.b16 %v886
        %v960 = vunpack.c.l.b16 %v887
        %v961 = vunpack.c.l.b16 %v888
        %v962 = vunpack.c.l.b16 %v889
        %v963 = vunpack.c.l.b16 %v890
        %v964 = vunpack.c.l.b16 %v891
        %v965 = vpack.c.b16 %v934, %v933
        %v966 = vpack.c.b16 %v936, %v935
        %v967 = vpack.c.b16 %v938, %v937
        %v968 = vpack.c.b16 %v940, %v939
        %v969 = vpack.c.b16 %v942, %v941
        %v970 = vpack.c.b16 %v944, %v943
        %v971 = vpack.c.b16 %v946, %v945
        %v972 = vpack.c.b16 %v948, %v947
        %v973 = vpack.c.b16 %v950, %v949
        %v974 = vpack.c.b16 %v952, %v951
        %v975 = vpack.c.b16 %v954, %v953
        %v976 = vpack.c.b16 %v956, %v955
        %v977 = vpack.c.b16 %v958, %v957
        %v978 = vpack.c.b16 %v960, %v959
        %v979 = vpack.c.b16 %v962, %v961
        %v980 = vpack.c.b16 %v964, %v963
        %997 = vmatpush.bf16.msra.mxu0 %v972
        %998 = vmatpush.bf16.msra.mxu0 %v971
        %999 = vmatpush.bf16.msra.mxu0 %v970
        %1000 = vmatpush.bf16.msra.mxu0 %v969
        %1001 = vmatpush.bf16.msra.mxu0 %v968
        %1002 = vmatpush.bf16.msra.mxu0 %v967
        %1003 = vmatpush.bf16.msra.mxu0 %v966
        %1004 = vmatpush.bf16.msra.mxu0 %v965
        %1005 = vmatmul.bf16.gmra.mxu0 %v892
        %v1006 = vpop.f32.mrf.mxu0
        %v1007 = vadd.f32 %v900, %v1006
        %v1008 = vpop.f32.mrf.mxu0
        %v1009 = vadd.f32 %v900, %v1008
        %1010 = vmatmul.bf16.gmra.mxu0 %v894
        %v1011 = vpop.f32.mrf.mxu0
        %v1012 = vadd.f32 %v900, %v1011
        %v1013 = vpop.f32.mrf.mxu0
        %v1014 = vadd.f32 %v900, %v1013
        %1015 = vmatmul.bf16.gmra.mxu0 %v896
        %v1016 = vpop.f32.mrf.mxu0
        %v1017 = vadd.f32 %v900, %v1016
        %v1018 = vpop.f32.mrf.mxu0
        %v1019 = vadd.f32 %v900, %v1018
        %1020 = vmatmul.bf16.gmra.mxu0 %v898
        %v1021 = vpop.f32.mrf.mxu0
        %v1022 = vadd.f32 %v900, %v1021
        %v1023 = vpop.f32.mrf.mxu0
        %v1024 = vadd.f32 %v900, %v1023
        %1025 = vdwg.mxu0
        %1026 = vmatpush.bf16.msra.mxu0 %v980
        %1027 = vmatpush.bf16.msra.mxu0 %v979
        %1028 = vmatpush.bf16.msra.mxu0 %v978
        %1029 = vmatpush.bf16.msra.mxu0 %v977
        %1030 = vmatpush.bf16.msra.mxu0 %v976
        %1031 = vmatpush.bf16.msra.mxu0 %v975
        %1032 = vmatpush.bf16.msra.mxu0 %v974
        %1033 = vmatpush.bf16.msra.mxu0 %v973
        %1034 = vmatmul.bf16.gmra.mxu0 %v893
        %v1035 = vpop.f32.mrf.mxu0
        %v1036 = vadd.f32 %v1007, %v1035
        %v1037 = vpop.f32.mrf.mxu0
        %v1038 = vadd.f32 %v1009, %v1037
        %1039 = vmatmul.bf16.gmra.mxu0 %v895
        %v1040 = vpop.f32.mrf.mxu0
        %v1041 = vadd.f32 %v1012, %v1040
        %v1042 = vpop.f32.mrf.mxu0
        %v1043 = vadd.f32 %v1014, %v1042
        %1044 = vmatmul.bf16.gmra.mxu0 %v897
        %v1045 = vpop.f32.mrf.mxu0
        %v1046 = vadd.f32 %v1017, %v1045
        %v1047 = vpop.f32.mrf.mxu0
        %v1048 = vadd.f32 %v1019, %v1047
        %1049 = vmatmul.bf16.gmra.mxu0 %v899
        %v1050 = vpop.f32.mrf.mxu0
        %v1051 = vadd.f32 %v1022, %v1050
        %v1052 = vpop.f32.mrf.mxu0
        %v1053 = vadd.f32 %v1024, %v1052
        %1054 = vdwg.mxu0
        %v1055 = vmax.f32 %v1036, 0.0
        %v1056 = vmax.f32 %v1038, 0.0
        %v1057 = vmax.f32 %v1041, 0.0
        %v1058 = vmax.f32 %v1043, 0.0
        %v1059 = vmax.f32 %v1046, 0.0
        %v1060 = vmax.f32 %v1048, 0.0
        %v1061 = vmax.f32 %v1051, 0.0
        %v1062 = vmax.f32 %v1053, 0.0
        %v1063 = vld [vmem:[#allocation13 + $0x90] ss:$0 sm:$0xff]
        %v1064 = vmul.f32 %v1055, %v1063
        %v1065 = vmul.f32 %v1056, %v1063
        %v1066 = vmul.f32 %v1057, %v1063
        %v1067 = vmul.f32 %v1058, %v1063
        %v1068 = vmul.f32 %v1059, %v1063
        %v1069 = vmul.f32 %v1060, %v1063
        %v1070 = vmul.f32 %v1061, %v1063
        %v1071 = vmul.f32 %v1062, %v1063
        %vm1072 = vcmask 523264
        %v1073 = vsel %vm1072, %v1064, 0.0
        %1074 = vadd.xlane.f32.xlu0 %v1073
        %v1075 = vpop.xlane.xlu0 %1074
        %v1076 = vsel %vm1072, %v1065, 0.0
        %1077 = vadd.xlane.f32.xlu0 %v1076
        %v1078 = vpop.xlane.xlu0 %1077
        %v1079 = vsel %vm1072, %v1066, 0.0
        %1080 = vadd.xlane.f32.xlu0 %v1079
        %v1081 = vpop.xlane.xlu0 %1080
        %v1082 = vsel %vm1072, %v1067, 0.0
        %1083 = vadd.xlane.f32.xlu0 %v1082
        %v1084 = vpop.xlane.xlu0 %1083
        %v1085 = vsel %vm1072, %v1068, 0.0
        %1086 = vadd.xlane.f32.xlu0 %v1085
        %v1087 = vpop.xlane.xlu0 %1086
        %v1088 = vsel %vm1072, %v1069, 0.0
        %1089 = vadd.xlane.f32.xlu0 %v1088
        %v1090 = vpop.xlane.xlu0 %1089
        %v1091 = vsel %vm1072, %v1070, 0.0
        %1092 = vadd.xlane.f32.xlu0 %v1091
        %v1093 = vpop.xlane.xlu0 %1092
        %v1094 = vsel %vm1072, %v1071, 0.0
        %1095 = vadd.xlane.f32.xlu0 %v1094
        %v1096 = vpop.xlane.xlu0 %1095
        %v1097 = vunpack.c.l.bf16 %v572
        %v1098 = vunpack.c.l.bf16 %v564
        %v1099 = vunpack.c.l.bf16 %v565
        %v1100 = vunpack.c.l.bf16 %v566
        %v1101 = vunpack.c.l.bf16 %v567
        %v1102 = vunpack.c.l.bf16 %v568
        %v1103 = vunpack.c.l.bf16 %v569
        %v1104 = vunpack.c.l.bf16 %v570
        %v1105 = vunpack.c.l.bf16 %v571
        %v1106 = vmul.f32 %v1098, %v1075
        %v1107 = vmul.f32 %v1099, %v1078
        %v1108 = vmul.f32 %v1100, %v1081
        %v1109 = vmul.f32 %v1101, %v1084
        %v1110 = vmul.f32 %v1102, %v1087
        %v1111 = vmul.f32 %v1103, %v1090
        %v1112 = vmul.f32 %v1104, %v1093
        %v1113 = vmul.f32 %v1105, %v1096
        %v1115 = vsel %vm1072, %v1097, 0
        %1117 = vmatpush.msra.mxu0 0.0
        %1118 = vmatpush.msra.mxu0 0.0
        %1119 = vmatpush.msra.mxu0 0.0
        %1120 = vmatpush.msra.mxu0 0.0
        %1121 = vmatpush.msra.mxu0 0.0
        %1122 = vmatpush.msra.mxu0 0.0
        %1123 = vmatpush.msra.mxu0 0.0
        %1124 = vmatpush.msra.mxu0 0.0
        %1125 = vmatpush.msra.mxu0 %v1113
        %1126 = vmatpush.msra.mxu0 %v1112
        %1127 = vmatpush.msra.mxu0 %v1111
        %1128 = vmatpush.msra.mxu0 %v1110
        %1129 = vmatpush.msra.mxu0 %v1109
        %1130 = vmatpush.msra.mxu0 %v1108
        %1131 = vmatpush.msra.mxu0 %v1107
        %1132 = vmatpush.msra.mxu0 %v1106
        %1133 = vmatmul.f32.gmra.mxu0 %v1115
        %v1134 = vpop.f32.mrf.mxu0
        %v1135 = vadd.f32 0.0, %v1134
        %1136 = vdwg.mxu0
        %v1137 = vld [vmem:[#allocation10 + $0xc0] sm:$0xf]
        %v1138 = vld [vmem:[#allocation10 + $0xc4] sm:$0xf]
        %v1139 = vld [vmem:[#allocation10 + $0xc8] sm:$0xf]
        %v1140 = vld [vmem:[#allocation10 + $0xcc] sm:$0xf]
        %v1141 = vpack.c.bf16 %v554, %v554
        %v1146 = vunpack.c.l.b16 %v1137
        %v1147 = vunpack.c.l.b16 %v1138
        %v1148 = vunpack.c.l.b16 %v1139
        %v1149 = vunpack.c.l.b16 %v1140
        %v1150 = vpack.c.b16 %v1147, %v1146
        %v1151 = vpack.c.b16 %v1149, %v1148
        %vm1154 = vcmask 261120
        %v1156 = vsel %vm1154, %v1141, 0
        %1158 = vmatpush.bf16.msra.mxu0 0
        %1159 = vmatpush.bf16.msra.mxu0 0
        %1160 = vmatpush.bf16.msra.mxu0 0
        %1161 = vmatpush.bf16.msra.mxu0 0
        %1162 = vmatpush.bf16.msra.mxu0 0
        %1163 = vmatpush.bf16.msra.mxu0 0
        %1164 = vmatpush.bf16.msra.mxu0 %v1151
        %1165 = vmatpush.bf16.msra.mxu0 %v1150
        %1166 = vmatmul.bf16.gmra.mxu0 %v1156
        %v1167 = vpop.f32.mrf.mxu0
        %v1168 = vadd.f32 0.0, %v1167
        %v1169 = vpop.f32.mrf.mxu0
        %1170 = vdwg.mxu0
        %v1171 = vld [vmem:[#allocation10 + $0xd0] sm:$0xf]
        %v1172 = vld [vmem:[#allocation10 + $0xd4] sm:$0xf]
        %v1173 = vld [vmem:[#allocation10 + $0xd8] sm:$0xf]
        %v1174 = vld [vmem:[#allocation10 + $0xdc] sm:$0xf]
        %v1179 = vunpack.c.l.b16 %v1171
        %v1180 = vunpack.c.l.b16 %v1172
        %v1181 = vunpack.c.l.b16 %v1173
        %v1182 = vunpack.c.l.b16 %v1174
        %v1183 = vpack.c.b16 %v1180, %v1179
        %v1184 = vpack.c.b16 %v1182, %v1181
        %1187 = vmatpush.bf16.msra.mxu0 0
        %1188 = vmatpush.bf16.msra.mxu0 0
        %1189 = vmatpush.bf16.msra.mxu0 0
        %1190 = vmatpush.bf16.msra.mxu0 0
        %1191 = vmatpush.bf16.msra.mxu0 0
        %1192 = vmatpush.bf16.msra.mxu0 0
        %1193 = vmatpush.bf16.msra.mxu0 %v1184
        %1194 = vmatpush.bf16.msra.mxu0 %v1183
        %1195 = vmatmul.bf16.gmra.mxu0 %v1156
        %v1196 = vpop.f32.mrf.mxu0
        %v1197 = vadd.f32 0.0, %v1196
        %v1198 = vpop.f32.mrf.mxu0
        %1199 = vdwg.mxu0
        %v1200 = vld [vmem:[#allocation10 + $0xe0] sm:$0xf]
        %v1201 = vld [vmem:[#allocation10 + $0xe4] sm:$0xf]
        %v1202 = vld [vmem:[#allocation10 + $0xe8] sm:$0xf]
        %v1203 = vld [vmem:[#allocation10 + $0xec] sm:$0xf]
        %v1208 = vunpack.c.l.b16 %v1200
        %v1209 = vunpack.c.l.b16 %v1201
        %v1210 = vunpack.c.l.b16 %v1202
        %v1211 = vunpack.c.l.b16 %v1203
        %v1212 = vpack.c.b16 %v1209, %v1208
        %v1213 = vpack.c.b16 %v1211, %v1210
        %1216 = vmatpush.bf16.msra.mxu0 0
        %1217 = vmatpush.bf16.msra.mxu0 0
        %1218 = vmatpush.bf16.msra.mxu0 0
        %1219 = vmatpush.bf16.msra.mxu0 0
        %1220 = vmatpush.bf16.msra.mxu0 0
        %1221 = vmatpush.bf16.msra.mxu0 0
        %1222 = vmatpush.bf16.msra.mxu0 %v1213
        %1223 = vmatpush.bf16.msra.mxu0 %v1212
        %1224 = vmatmul.bf16.gmra.mxu0 %v1156
        %v1225 = vpop.f32.mrf.mxu0
        %v1226 = vadd.f32 0.0, %v1225
        %v1227 = vpop.f32.mrf.mxu0
        %1228 = vdwg.mxu0
        %v1229 = vpack.c.bf16 %v1168, %v1168
        %v1230 = vpack.c.bf16 %v1197, %v1197
        %v1232 = vsel %vm1154, %v1229, 0
        %v1235 = vsel %vm1154, %v1230, 0
        %1237 = vmatpush.bf16.xpose.msra.mxu0 0
        %1238 = vmatpush.bf16.xpose.msra.mxu0 0
        %1239 = vmatpush.bf16.xpose.msra.mxu0 0
        %1240 = vmatpush.bf16.xpose.msra.mxu0 0
        %1241 = vmatpush.bf16.xpose.msra.mxu0 0
        %1242 = vmatpush.bf16.xpose.msra.mxu0 0
        %1243 = vmatpush.bf16.xpose.msra.mxu0 0
        %1244 = vmatpush.bf16.xpose.msra.mxu0 %v1235
        %1245 = vmatmul.bf16.gmra.mxu0 %v1232
        %v1246 = vpop.f32.mrf.mxu0
        %v1247 = vadd.f32 0.0, %v1246
        %v1248 = vpop.f32.mrf.mxu0
        %1249 = vdwg.mxu0
        %v1250 = vmul.f32 %v1247, 0.17677669
        %v1251 = vadd.f32 %v1250, %v1135
        %v1252 = vperm.slane %v555, 1
        %v1253 = vadd.f32 %v1251, %v1252
        %vm1254 = vcmask 64512
        %v1255 = vsel %vm1254, %v1253, -inf
        %1256 = vmax.xlane.f32.xlu0 %v1255
        %v1257 = vpop.xlane.xlu0 %1256
        %v1258 = vsub.f32 %v1253, %v1257
        %v1259 = vmul.f32 %v1258, 1.442695
        %v1260 = vpow.pop %v1259
        %v1261 = vsel %vm1254, %v1260, 0.0
        %1262 = vadd.xlane.f32.xlu0 %v1261
        %v1263 = vpop.xlane.xlu0 %1262
        %v1264 = vrcp.pop %v1263
        %v1265 = vmul.f32 %v1263, %v1264
        %v1266 = vsub.f32 1.0, %v1265
        %v1267 = vmul.f32 %v1264, %v1266
        %v1268 = vadd.f32 %v1264, %v1267
        %vm1269 = vweird.f32 %v1263
        %vm1270 = vweird.f32 %v1264
        %vm1271 = vmor %vm1269, %vm1270
        %v1272 = vsel %vm1271, %v1264, %v1268
        %v1273 = vand.u32 2147483647, %v1263
        %vm1274 = vcmp.eq.f32.partialorder %v1273, 8.507059e+37
        %v1275 = vand.u32 %v1263, 2147483648
        %v1276 = vor.u32 1.1754944e-38, %v1275
        %v1277 = vsel %vm1274, %v1276, %v1272
        %v1278 = vmul.f32 %v1260, %v1277
        %v1279 = vpack.c.bf16 %v1278, %v1278
        %v1280 = vpack.c.bf16 %v1226, %v1226
        %v1282 = vsel %vm1254, %v1279, 0
        %vm1284 = vcmask 1043456
        %v1286 = vsel %vm1284, %v1280, 0
        %1288 = vmatpush.bf16.msra.mxu0 0
        %1289 = vmatpush.bf16.msra.mxu0 0
        %1290 = vmatpush.bf16.msra.mxu0 0
        %1291 = vmatpush.bf16.msra.mxu0 0
        %1292 = vmatpush.bf16.msra.mxu0 0
        %1293 = vmatpush.bf16.msra.mxu0 0
        %1294 = vmatpush.bf16.msra.mxu0 0
        %1295 = vmatpush.bf16.msra.mxu0 %v1286
        %1296 = vmatmul.bf16.gmra.mxu0 %v1282
        %v1297 = vpop.f32.mrf.mxu0
        %v1298 = vadd.f32 0.0, %v1297
        %v1299 = vpop.f32.mrf.mxu0
        %1300 = vdwg.mxu0
        %v1301 = vld [vmem:[#allocation10 + $0xf0] sm:$0xf]
        %v1302 = vld [vmem:[#allocation10 + $0xf4] sm:$0xf]
        %v1303 = vld [vmem:[#allocation10 + $0xf8] sm:$0xf]
        %v1304 = vld [vmem:[#allocation10 + $0xfc] sm:$0xf]
        %v1305 = vpack.c.bf16 %v1298, %v1298
        %v1310 = vunpack.c.l.b16 %v1301
        %v1311 = vunpack.c.l.b16 %v1302
        %v1312 = vunpack.c.l.b16 %v1303
        %v1313 = vunpack.c.l.b16 %v1304
        %v1314 = vpack.c.b16 %v1311, %v1310
        %v1315 = vpack.c.b16 %v1313, %v1312
        %v1319 = vsel %vm1154, %v1305, 0
        %1321 = vmatpush.bf16.msra.mxu0 0
        %1322 = vmatpush.bf16.msra.mxu0 0
        %1323 = vmatpush.bf16.msra.mxu0 0
        %1324 = vmatpush.bf16.msra.mxu0 0
        %1325 = vmatpush.bf16.msra.mxu0 0
        %1326 = vmatpush.bf16.msra.mxu0 0
        %1327 = vmatpush.bf16.msra.mxu0 %v1315
        %1328 = vmatpush.bf16.msra.mxu0 %v1314
        %1329 = vmatmul.bf16.gmra.mxu0 %v1319
        %v1330 = vpop.f32.mrf.mxu0
        %v1331 = vadd.f32 0.0, %v1330
        %v1332 = vpop.f32.mrf.mxu0
        %1333 = vdwg.mxu0
        %v1334 = vadd.f32 %v554, %v1331
        %v1335 = vld [vmem:[#allocation13 + $0x50] ss:$0 sm:$0xff]
        %v1336 = vld [vmem:[#allocation13 + $0x60] ss:$0 sm:$0xff]
        %v1337 = vsel %vm1154, %v1334, 0.0
        %1338 = vadd.xlane.f32.xlu0 %v1337
        %v1339 = vpop.xlane.xlu0 %1338
        %v1340 = vrcp.pop 32.0
        %v1341 = vmul.f32 32.0, %v1340
        %v1342 = vsub.f32 1.0, %v1341
        %v1343 = vmul.f32 %v1340, %v1342
        %v1344 = vadd.f32 %v1340, %v1343
        %vm1345 = vweird.f32 %v1340
        %v1346 = vsel %vm1345, %v1340, %v1344
        %v1347 = vmul.f32 %v1339, %v1346
        %v1348 = vsub.f32 %v1334, %v1347
        %v1349 = vmul.f32 %v1348, %v1348
        %v1350 = vsel %vm1154, %v1349, 0.0
        %1351 = vadd.xlane.f32.xlu0 %v1350
        %v1352 = vpop.xlane.xlu0 %1351
        %v1353 = vmul.f32 %v1352, %v1346
        %v1354 = vadd.f32 %v1353, 1e-05
        %v1355 = vrsqrt.pop %v1354
        %v1356 = vmul.f32 %v1355, %v1354
        %v1357 = vmul.f32 %v1356, %v1355
        %v1358 = vmul.f32 0.5, %v1357
        %v1359 = vsub.f32 1.5, %v1358
        %v1360 = vmul.f32 %v1355, %v1359
        %vm1361 = vweird.f32 %v1354
        %vm1362 = vweird.f32 %v1355
        %vm1363 = vmor %vm1361, %vm1362
        %v1364 = vsel %vm1363, %v1355, %v1360
        %v1365 = vmul.f32 %v1348, %v1364
        %v1366 = vmul.f32 %v1365, %v1335
        %v1367 = vadd.f32 %v1366, %v1336
        %v1368 = vld [vmem:[#allocation10 + $0x100] sm:$0xf]
        %v1369 = vld [vmem:[#allocation10 + $0x104] sm:$0xf]
        %v1370 = vld [vmem:[#allocation10 + $0x108] sm:$0xf]
        %v1371 = vld [vmem:[#allocation10 + $0x10c] sm:$0xf]
        %v1372 = vpack.c.bf16 %v1367, %v1367
        %v1373 = vld [vmem:[#allocation13 + $0x30] ss:$0 sm:$0xff]
        %v1378 = vunpack.c.l.b16 %v1368
        %v1379 = vunpack.c.l.b16 %v1369
        %v1380 = vunpack.c.l.b16 %v1370
        %v1381 = vunpack.c.l.b16 %v1371
        %v1382 = vpack.c.b16 %v1379, %v1378
        %v1383 = vpack.c.b16 %v1381, %v1380
        %v1387 = vsel %vm1154, %v1372, 0
        %1389 = vmatpush.bf16.msra.mxu0 0
        %1390 = vmatpush.bf16.msra.mxu0 0
        %1391 = vmatpush.bf16.msra.mxu0 0
        %1392 = vmatpush.bf16.msra.mxu0 0
        %1393 = vmatpush.bf16.msra.mxu0 0
        %1394 = vmatpush.bf16.msra.mxu0 0
        %1395 = vmatpush.bf16.msra.mxu0 %v1383
        %1396 = vmatpush.bf16.msra.mxu0 %v1382
        %1397 = vmatmul.bf16.gmra.mxu0 %v1387
        %v1398 = vpop.f32.mrf.mxu0
        %v1399 = vadd.f32 %v1373, %v1398
        %v1400 = vpop.f32.mrf.mxu0
        %1401 = vdwg.mxu0
        %v1402 = vmax.f32 %v1399, 0.0
        %v1403 = vld [vmem:[#allocation10 + $0x110] sm:$0xf]
        %v1404 = vld [vmem:[#allocation10 + $0x114] sm:$0xf]
        %v1405 = vld [vmem:[#allocation10 + $0x118] sm:$0xf]
        %v1406 = vld [vmem:[#allocation10 + $0x11c] sm:$0xf]
        %v1407 = vld [vmem:[#allocation10 + $0x120] sm:$0xf]
        %v1408 = vld [vmem:[#allocation10 + $0x124] sm:$0xf]
        %v1409 = vld [vmem:[#allocation10 + $0x128] sm:$0xf]
        %v1410 = vld [vmem:[#allocation10 + $0x12c] sm:$0xf]
        %v1411 = vpack.c.bf16 %v1402, %v1402
        %v1412 = vld [vmem:[#allocation13 + $0x40] ss:$0 sm:$0xff]
        %v1421 = vunpack.c.l.b16 %v1403
        %v1422 = vunpack.c.l.b16 %v1404
        %v1423 = vunpack.c.l.b16 %v1405
        %v1424 = vunpack.c.l.b16 %v1406
        %v1425 = vunpack.c.l.b16 %v1407
        %v1426 = vunpack.c.l.b16 %v1408
        %v1427 = vunpack.c.l.b16 %v1409
        %v1428 = vunpack.c.l.b16 %v1410
        %v1429 = vpack.c.b16 %v1422, %v1421
        %v1430 = vpack.c.b16 %v1424, %v1423
        %v1431 = vpack.c.b16 %v1426, %v1425
        %v1432 = vpack.c.b16 %v1428, %v1427
        %v1438 = vsel %vm1072, %v1411, 0
        %1440 = vmatpush.bf16.msra.mxu0 0
        %1441 = vmatpush.bf16.msra.mxu0 0
        %1442 = vmatpush.bf16.msra.mxu0 0
        %1443 = vmatpush.bf16.msra.mxu0 0
        %1444 = vmatpush.bf16.msra.mxu0 %v1432
        %1445 = vmatpush.bf16.msra.mxu0 %v1431
        %1446 = vmatpush.bf16.msra.mxu0 %v1430
        %1447 = vmatpush.bf16.msra.mxu0 %v1429
        %1448 = vmatmul.bf16.gmra.mxu0 %v1438
        %v1449 = vpop.f32.mrf.mxu0
        %v1450 = vadd.f32 %v1412, %v1449
        %v1451 = vpop.f32.mrf.mxu0
        %1452 = vdwg.mxu0
        %v1453 = vadd.f32 %v1367, %v1450
        %v1454 = vld [vmem:[#allocation13 + $0x70] ss:$0 sm:$0xff]
        %v1455 = vld [vmem:[#allocation13 + $0x80] ss:$0 sm:$0xff]
        %v1456 = vsel %vm1154, %v1453, 0.0
        %1457 = vadd.xlane.f32.xlu0 %v1456
        %v1458 = vpop.xlane.xlu0 %1457
        %v1459 = vmul.f32 %v1458, %v1346
        %v1460 = vsub.f32 %v1453, %v1459
        %v1461 = vmul.f32 %v1460, %v1460
        %v1462 = vsel %vm1154, %v1461, 0.0
        %1463 = vadd.xlane.f32.xlu0 %v1462
        %v1464 = vpop.xlane.xlu0 %1463
        %v1465 = vmul.f32 %v1464, %v1346
        %v1466 = vadd.f32 %v1465, 1e-05
        %v1467 = vrsqrt.pop %v1466
        %v1468 = vmul.f32 %v1467, %v1466
        %v1469 = vmul.f32 %v1468, %v1467
        %v1470 = vmul.f32 0.5, %v1469
        %v1471 = vsub.f32 1.5, %v1470
        %v1472 = vmul.f32 %v1467, %v1471
        %vm1473 = vweird.f32 %v1466
        %vm1474 = vweird.f32 %v1467
        %vm1475 = vmor %vm1473, %vm1474
        %v1476 = vsel %vm1475, %v1467, %v1472
        %v1477 = vmul.f32 %v1460, %v1476
        %v1478 = vmul.f32 %v1477, %v1454
        %v1479 = vadd.f32 %v1478, %v1455
        %v1480 = vld [vmem:[#allocation13 + $0x100] ss:$0 sm:$0xff]
        %v1481 = vmul.f32 %v1055, %v1480
        %v1482 = vmul.f32 %v1056, %v1480
        %v1483 = vmul.f32 %v1057, %v1480
        %v1484 = vmul.f32 %v1058, %v1480
        %v1485 = vmul.f32 %v1059, %v1480
        %v1486 = vmul.f32 %v1060, %v1480
        %v1487 = vmul.f32 %v1061, %v1480
        %v1488 = vmul.f32 %v1062, %v1480
        %v1489 = vsel %vm1072, %v1481, 0.0
        %1490 = vadd.xlane.f32.xlu0 %v1489
        %v1491 = vpop.xlane.xlu0 %1490
        %v1492 = vsel %vm1072, %v1482, 0.0
        %1493 = vadd.xlane.f32.xlu0 %v1492
        %v1494 = vpop.xlane.xlu0 %1493
        %v1495 = vsel %vm1072, %v1483, 0.0
        %1496 = vadd.xlane.f32.xlu0 %v1495
        %v1497 = vpop.xlane.xlu0 %1496
        %v1498 = vsel %vm1072, %v1484, 0.0
        %1499 = vadd.xlane.f32.xlu0 %v1498
        %v1500 = vpop.xlane.xlu0 %1499
        %v1501 = vsel %vm1072, %v1485, 0.0
        %1502 = vadd.xlane.f32.xlu0 %v1501
        %v1503 = vpop.xlane.xlu0 %1502
        %v1504 = vsel %vm1072, %v1486, 0.0
        %1505 = vadd.xlane.f32.xlu0 %v1504
        %v1506 = vpop.xlane.xlu0 %1505
        %v1507 = vsel %vm1072, %v1487, 0.0
        %1508 = vadd.xlane.f32.xlu0 %v1507
        %v1509 = vpop.xlane.xlu0 %1508
        %v1510 = vsel %vm1072, %v1488, 0.0
        %1511 = vadd.xlane.f32.xlu0 %v1510
        %v1512 = vpop.xlane.xlu0 %1511
        %v1513 = vmul.f32 %v1098, %v1491
        %v1514 = vmul.f32 %v1099, %v1494
        %v1515 = vmul.f32 %v1100, %v1497
        %v1516 = vmul.f32 %v1101, %v1500
        %v1517 = vmul.f32 %v1102, %v1503
        %v1518 = vmul.f32 %v1103, %v1506
        %v1519 = vmul.f32 %v1104, %v1509
        %v1520 = vmul.f32 %v1105, %v1512
        %1521 = vmatpush.msra.mxu0 0.0
        %1522 = vmatpush.msra.mxu0 0.0
        %1523 = vmatpush.msra.mxu0 0.0
        %1524 = vmatpush.msra.mxu0 0.0
        %1525 = vmatpush.msra.mxu0 0.0
        %1526 = vmatpush.msra.mxu0 0.0
        %1527 = vmatpush.msra.mxu0 0.0
        %1528 = vmatpush.msra.mxu0 0.0
        %1529 = vmatpush.msra.mxu0 %v1520
        %1530 = vmatpush.msra.mxu0 %v1519
        %1531 = vmatpush.msra.mxu0 %v1518
        %1532 = vmatpush.msra.mxu0 %v1517
        %1533 = vmatpush.msra.mxu0 %v1516
        %1534 = vmatpush.msra.mxu0 %v1515
        %1535 = vmatpush.msra.mxu0 %v1514
        %1536 = vmatpush.msra.mxu0 %v1513
        %1537 = vmatmul.f32.gmra.mxu0 %v1115
        %v1538 = vpop.f32.mrf.mxu0
        %v1539 = vadd.f32 0.0, %v1538
        %1540 = vdwg.mxu0
        %v1541 = vld [vmem:[#allocation10 + $0x130] sm:$0xf]
        %v1542 = vld [vmem:[#allocation10 + $0x134] sm:$0xf]
        %v1543 = vld [vmem:[#allocation10 + $0x138] sm:$0xf]
        %v1544 = vld [vmem:[#allocation10 + $0x13c] sm:$0xf]
        %v1545 = vpack.c.bf16 %v1479, %v1479
        %v1550 = vunpack.c.l.b16 %v1541
        %v1551 = vunpack.c.l.b16 %v1542
        %v1552 = vunpack.c.l.b16 %v1543
        %v1553 = vunpack.c.l.b16 %v1544
        %v1554 = vpack.c.b16 %v1551, %v1550
        %v1555 = vpack.c.b16 %v1553, %v1552
        %v1559 = vsel %vm1154, %v1545, 0
        %1561 = vmatpush.bf16.msra.mxu0 0
        %1562 = vmatpush.bf16.msra.mxu0 0
        %1563 = vmatpush.bf16.msra.mxu0 0
        %1564 = vmatpush.bf16.msra.mxu0 0
        %1565 = vmatpush.bf16.msra.mxu0 0
        %1566 = vmatpush.bf16.msra.mxu0 0
        %1567 = vmatpush.bf16.msra.mxu0 %v1555
        %1568 = vmatpush.bf16.msra.mxu0 %v1554
        %1569 = vmatmul.bf16.gmra.mxu0 %v1559
        %v1570 = vpop.f32.mrf.mxu0
        %v1571 = vadd.f32 0.0, %v1570
        %v1572 = vpop.f32.mrf.mxu0
        %1573 = vdwg.mxu0
        %v1574 = vld [vmem:[#allocation10 + $0x140] sm:$0xf]
        %v1575 = vld [vmem:[#allocation10 + $0x144] sm:$0xf]
        %v1576 = vld [vmem:[#allocation10 + $0x148] sm:$0xf]
        %v1577 = vld [vmem:[#allocation10 + $0x14c] sm:$0xf]
        %v1582 = vunpack.c.l.b16 %v1574
        %v1583 = vunpack.c.l.b16 %v1575
        %v1584 = vunpack.c.l.b16 %v1576
        %v1585 = vunpack.c.l.b16 %v1577
        %v1586 = vpack.c.b16 %v1583, %v1582
        %v1587 = vpack.c.b16 %v1585, %v1584
        %1590 = vmatpush.bf16.msra.mxu0 0
        %1591 = vmatpush.bf16.msra.mxu0 0
        %1592 = vmatpush.bf16.msra.mxu0 0
        %1593 = vmatpush.bf16.msra.mxu0 0
        %1594 = vmatpush.bf16.msra.mxu0 0
        %1595 = vmatpush.bf16.msra.mxu0 0
        %1596 = vmatpush.bf16.msra.mxu0 %v1587
        %1597 = vmatpush.bf16.msra.mxu0 %v1586
        %1598 = vmatmul.bf16.gmra.mxu0 %v1559
        %v1599 = vpop.f32.mrf.mxu0
        %v1600 = vadd.f32 0.0, %v1599
        %v1601 = vpop.f32.mrf.mxu0
        %1602 = vdwg.mxu0
        %v1603 = vld [vmem:[#allocation10 + $0x150] sm:$0xf]
        %v1604 = vld [vmem:[#allocation10 + $0x154] sm:$0xf]
        %v1605 = vld [vmem:[#allocation10 + $0x158] sm:$0xf]
        %v1606 = vld [vmem:[#allocation10 + $0x15c] sm:$0xf]
        %v1611 = vunpack.c.l.b16 %v1603
        %v1612 = vunpack.c.l.b16 %v1604
        %v1613 = vunpack.c.l.b16 %v1605
        %v1614 = vunpack.c.l.b16 %v1606
        %v1615 = vpack.c.b16 %v1612, %v1611
        %v1616 = vpack.c.b16 %v1614, %v1613
        %1619 = vmatpush.bf16.msra.mxu0 0
        %1620 = vmatpush.bf16.msra.mxu0 0
        %1621 = vmatpush.bf16.msra.mxu0 0
        %1622 = vmatpush.bf16.msra.mxu0 0
        %1623 = vmatpush.bf16.msra.mxu0 0
        %1624 = vmatpush.bf16.msra.mxu0 0
        %1625 = vmatpush.bf16.msra.mxu0 %v1616
        %1626 = vmatpush.bf16.msra.mxu0 %v1615
        %1627 = vmatmul.bf16.gmra.mxu0 %v1559
        %v1628 = vpop.f32.mrf.mxu0
        %v1629 = vadd.f32 0.0, %v1628
        %v1630 = vpop.f32.mrf.mxu0
        %1631 = vdwg.mxu0
        %v1632 = vpack.c.bf16 %v1571, %v1571
        %v1633 = vpack.c.bf16 %v1600, %v1600
        %v1635 = vsel %vm1154, %v1632, 0
        %v1638 = vsel %vm1154, %v1633, 0
        %1640 = vmatpush.bf16.xpose.msra.mxu0 0
        %1641 = vmatpush.bf16.xpose.msra.mxu0 0
        %1642 = vmatpush.bf16.xpose.msra.mxu0 0
        %1643 = vmatpush.bf16.xpose.msra.mxu0 0
        %1644 = vmatpush.bf16.xpose.msra.mxu0 0
        %1645 = vmatpush.bf16.xpose.msra.mxu0 0
        %1646 = vmatpush.bf16.xpose.msra.mxu0 0
        %1647 = vmatpush.bf16.xpose.msra.mxu0 %v1638
        %1648 = vmatmul.bf16.gmra.mxu0 %v1635
        %v1649 = vpop.f32.mrf.mxu0
        %v1650 = vadd.f32 0.0, %v1649
        %v1651 = vpop.f32.mrf.mxu0
        %1652 = vdwg.mxu0
        %v1653 = vmul.f32 %v1650, 0.17677669
        %v1654 = vadd.f32 %v1653, %v1539
        %v1655 = vadd.f32 %v1654, %v1252
        %v1656 = vsel %vm1254, %v1655, -inf
        %1657 = vmax.xlane.f32.xlu0 %v1656
        %v1658 = vpop.xlane.xlu0 %1657
        %v1659 = vsub.f32 %v1655, %v1658
        %v1660 = vmul.f32 %v1659, 1.442695
        %v1661 = vpow.pop %v1660
        %v1662 = vsel %vm1254, %v1661, 0.0
        %1663 = vadd.xlane.f32.xlu0 %v1662
        %v1664 = vpop.xlane.xlu0 %1663
        %v1665 = vrcp.pop %v1664
        %v1666 = vmul.f32 %v1664, %v1665
        %v1667 = vsub.f32 1.0, %v1666
        %v1668 = vmul.f32 %v1665, %v1667
        %v1669 = vadd.f32 %v1665, %v1668
        %vm1670 = vweird.f32 %v1664
        %vm1671 = vweird.f32 %v1665
        %vm1672 = vmor %vm1670, %vm1671
        %v1673 = vsel %vm1672, %v1665, %v1669
        %v1674 = vand.u32 2147483647, %v1664
        %vm1675 = vcmp.eq.f32.partialorder %v1674, 8.507059e+37
        %v1676 = vand.u32 %v1664, 2147483648
        %v1677 = vor.u32 1.1754944e-38, %v1676
        %v1678 = vsel %vm1675, %v1677, %v1673
        %v1679 = vmul.f32 %v1661, %v1678
        %v1680 = vpack.c.bf16 %v1679, %v1679
        %v1681 = vpack.c.bf16 %v1629, %v1629
        %v1683 = vsel %vm1254, %v1680, 0
        %v1686 = vsel %vm1284, %v1681, 0
        %1688 = vmatpush.bf16.msra.mxu0 0
        %1689 = vmatpush.bf16.msra.mxu0 0
        %1690 = vmatpush.bf16.msra.mxu0 0
        %1691 = vmatpush.bf16.msra.mxu0 0
        %1692 = vmatpush.bf16.msra.mxu0 0
        %1693 = vmatpush.bf16.msra.mxu0 0
        %1694 = vmatpush.bf16.msra.mxu0 0
        %1695 = vmatpush.bf16.msra.mxu0 %v1686
        %1696 = vmatmul.bf16.gmra.mxu0 %v1683
        %v1697 = vpop.f32.mrf.mxu0
        %v1698 = vadd.f32 0.0, %v1697
        %v1699 = vpop.f32.mrf.mxu0
        %1700 = vdwg.mxu0
        %v1701 = vld [vmem:[#allocation10 + $0x160] sm:$0xf]
        %v1702 = vld [vmem:[#allocation10 + $0x164] sm:$0xf]
        %v1703 = vld [vmem:[#allocation10 + $0x168] sm:$0xf]
        %v1704 = vld [vmem:[#allocation10 + $0x16c] sm:$0xf]
        %v1705 = vpack.c.bf16 %v1698, %v1698
        %v1710 = vunpack.c.l.b16 %v1701
        %v1711 = vunpack.c.l.b16 %v1702
        %v1712 = vunpack.c.l.b16 %v1703
        %v1713 = vunpack.c.l.b16 %v1704
        %v1714 = vpack.c.b16 %v1711, %v1710
        %v1715 = vpack.c.b16 %v1713, %v1712
        %v1719 = vsel %vm1154, %v1705, 0
        %1721 = vmatpush.bf16.msra.mxu0 0
        %1722 = vmatpush.bf16.msra.mxu0 0
        %1723 = vmatpush.bf16.msra.mxu0 0
        %1724 = vmatpush.bf16.msra.mxu0 0
        %1725 = vmatpush.bf16.msra.mxu0 0
        %1726 = vmatpush.bf16.msra.mxu0 0
        %1727 = vmatpush.bf16.msra.mxu0 %v1715
        %1728 = vmatpush.bf16.msra.mxu0 %v1714
        %1729 = vmatmul.bf16.gmra.mxu0 %v1719
        %v1730 = vpop.f32.mrf.mxu0
        %v1731 = vadd.f32 0.0, %v1730
        %v1732 = vpop.f32.mrf.mxu0
        %1733 = vdwg.mxu0
        %v1734 = vadd.f32 %v1479, %v1731
        %v1735 = vld [vmem:[#allocation13 + $0xc0] ss:$0 sm:$0xff]
        %v1736 = vld [vmem:[#allocation13 + $0xd0] ss:$0 sm:$0xff]
        %v1737 = vsel %vm1154, %v1734, 0.0
        %1738 = vadd.xlane.f32.xlu0 %v1737
        %v1739 = vpop.xlane.xlu0 %1738
        %v1740 = vmul.f32 %v1739, %v1346
        %v1741 = vsub.f32 %v1734, %v1740
        %v1742 = vmul.f32 %v1741, %v1741
        %v1743 = vsel %vm1154, %v1742, 0.0
        %1744 = vadd.xlane.f32.xlu0 %v1743
        %v1745 = vpop.xlane.xlu0 %1744
        %v1746 = vmul.f32 %v1745, %v1346
        %v1747 = vadd.f32 %v1746, 1e-05
        %v1748 = vrsqrt.pop %v1747
        %v1749 = vmul.f32 %v1748, %v1747
        %v1750 = vmul.f32 %v1749, %v1748
        %v1751 = vmul.f32 0.5, %v1750
        %v1752 = vsub.f32 1.5, %v1751
        %v1753 = vmul.f32 %v1748, %v1752
        %vm1754 = vweird.f32 %v1747
        %vm1755 = vweird.f32 %v1748
        %vm1756 = vmor %vm1754, %vm1755
        %v1757 = vsel %vm1756, %v1748, %v1753
        %v1758 = vmul.f32 %v1741, %v1757
        %v1759 = vmul.f32 %v1758, %v1735
        %v1760 = vadd.f32 %v1759, %v1736
        %v1761 = vld [vmem:[#allocation10 + $0x170] sm:$0xf]
        %v1762 = vld [vmem:[#allocation10 + $0x174] sm:$0xf]
        %v1763 = vld [vmem:[#allocation10 + $0x178] sm:$0xf]
        %v1764 = vld [vmem:[#allocation10 + $0x17c] sm:$0xf]
        %v1765 = vpack.c.bf16 %v1760, %v1760
        %v1766 = vld [vmem:[#allocation13 + $0xa0] ss:$0 sm:$0xff]
        %v1771 = vunpack.c.l.b16 %v1761
        %v1772 = vunpack.c.l.b16 %v1762
        %v1773 = vunpack.c.l.b16 %v1763
        %v1774 = vunpack.c.l.b16 %v1764
        %v1775 = vpack.c.b16 %v1772, %v1771
        %v1776 = vpack.c.b16 %v1774, %v1773
        %v1780 = vsel %vm1154, %v1765, 0
        %1782 = vmatpush.bf16.msra.mxu0 0
        %1783 = vmatpush.bf16.msra.mxu0 0
        %1784 = vmatpush.bf16.msra.mxu0 0
        %1785 = vmatpush.bf16.msra.mxu0 0
        %1786 = vmatpush.bf16.msra.mxu0 0
        %1787 = vmatpush.bf16.msra.mxu0 0
        %1788 = vmatpush.bf16.msra.mxu0 %v1776
        %1789 = vmatpush.bf16.msra.mxu0 %v1775
        %1790 = vmatmul.bf16.gmra.mxu0 %v1780
        %v1791 = vpop.f32.mrf.mxu0
        %v1792 = vadd.f32 %v1766, %v1791
        %v1793 = vpop.f32.mrf.mxu0
        %1794 = vdwg.mxu0
        %v1795 = vmax.f32 %v1792, 0.0
        %v1796 = vld [vmem:[#allocation10 + $0x180] sm:$0xf]
        %v1797 = vld [vmem:[#allocation10 + $0x184] sm:$0xf]
        %v1798 = vld [vmem:[#allocation10 + $0x188] sm:$0xf]
        %v1799 = vld [vmem:[#allocation10 + $0x18c] sm:$0xf]
        %v1800 = vld [vmem:[#allocation10 + $0x190] sm:$0xf]
        %v1801 = vld [vmem:[#allocation10 + $0x194] sm:$0xf]
        %v1802 = vld [vmem:[#allocation10 + $0x198] sm:$0xf]
        %v1803 = vld [vmem:[#allocation10 + $0x19c] sm:$0xf]
        %v1804 = vpack.c.bf16 %v1795, %v1795
        %v1805 = vld [vmem:[#allocation13 + $0xb0] ss:$0 sm:$0xff]
        %v1814 = vunpack.c.l.b16 %v1796
        %v1815 = vunpack.c.l.b16 %v1797
        %v1816 = vunpack.c.l.b16 %v1798
        %v1817 = vunpack.c.l.b16 %v1799
        %v1818 = vunpack.c.l.b16 %v1800
        %v1819 = vunpack.c.l.b16 %v1801
        %v1820 = vunpack.c.l.b16 %v1802
        %v1821 = vunpack.c.l.b16 %v1803
        %v1822 = vpack.c.b16 %v1815, %v1814
        %v1823 = vpack.c.b16 %v1817, %v1816
        %v1824 = vpack.c.b16 %v1819, %v1818
        %v1825 = vpack.c.b16 %v1821, %v1820
        %v1831 = vsel %vm1072, %v1804, 0
        %1833 = vmatpush.bf16.msra.mxu0 0
        %1834 = vmatpush.bf16.msra.mxu0 0
        %1835 = vmatpush.bf16.msra.mxu0 0
        %1836 = vmatpush.bf16.msra.mxu0 0
        %1837 = vmatpush.bf16.msra.mxu0 %v1825
        %1838 = vmatpush.bf16.msra.mxu0 %v1824
        %1839 = vmatpush.bf16.msra.mxu0 %v1823
        %1840 = vmatpush.bf16.msra.mxu0 %v1822
        %1841 = vmatmul.bf16.gmra.mxu0 %v1831
        %v1842 = vpop.f32.mrf.mxu0
        %v1843 = vadd.f32 %v1805, %v1842
        %v1844 = vpop.f32.mrf.mxu0
        %1845 = vdwg.mxu0
        %v1846 = vadd.f32 %v1760, %v1843
        %v1847 = vld [vmem:[#allocation13 + $0xe0] ss:$0 sm:$0xff]
        %v1848 = vld [vmem:[#allocation13 + $0xf0] ss:$0 sm:$0xff]
        %v1849 = vsel %vm1154, %v1846, 0.0
        %1850 = vadd.xlane.f32.xlu0 %v1849
        %v1851 = vpop.xlane.xlu0 %1850
        %v1852 = vmul.f32 %v1851, %v1346
        %v1853 = vsub.f32 %v1846, %v1852
        %v1854 = vmul.f32 %v1853, %v1853
        %v1855 = vsel %vm1154, %v1854, 0.0
        %1856 = vadd.xlane.f32.xlu0 %v1855
        %v1857 = vpop.xlane.xlu0 %1856
        %v1858 = vmul.f32 %v1857, %v1346
        %v1859 = vadd.f32 %v1858, 1e-05
        %v1860 = vrsqrt.pop %v1859
        %v1861 = vmul.f32 %v1860, %v1859
        %v1862 = vmul.f32 %v1861, %v1860
        %v1863 = vmul.f32 0.5, %v1862
        %v1864 = vsub.f32 1.5, %v1863
        %v1865 = vmul.f32 %v1860, %v1864
        %vm1866 = vweird.f32 %v1859
        %vm1867 = vweird.f32 %v1860
        %vm1868 = vmor %vm1866, %vm1867
        %v1869 = vsel %vm1868, %v1860, %v1865
        %v1870 = vmul.f32 %v1853, %v1869
        %v1871 = vmul.f32 %v1870, %v1847
        %v1872 = vadd.f32 %v1871, %v1848
        %1874 = vrot.lane.b32.xlu0 %v1679, 8
        %v1875 = vpop.permute.xlu0 %1874
        %v1877 = vsel %vm1254, %v1278, %v1875
        %vm1878 = vcmask 130048
        %v1879 = vsel %vm1878, %v1877, 0.0
        %1880 = vst [vmem:[%s529] sm:$0xff] %v1879
        %v1881 = vadd.f32 %v546, %v1055
        %v1882 = vadd.f32 %v547, %v1056
        %v1883 = vadd.f32 %v548, %v1057
        %v1884 = vadd.f32 %v549, %v1058
        %v1885 = vadd.f32 %v550, %v1059
        %v1886 = vadd.f32 %v551, %v1060
        %v1887 = vadd.f32 %v552, %v1061
        %v1888 = vadd.f32 %v553, %v1062
        %v1889 = vld [vmem:[#allocation10 + $0x1e8] sm:$0xf]
        %v1890 = vld [vmem:[#allocation10 + $0x1ec] sm:$0xf]
        %v1891 = vld [vmem:[#allocation10 + $0x1f0] sm:$0xf]
        %v1892 = vld [vmem:[#allocation10 + $0x1f4] sm:$0xf]
        %v1893 = vpack.c.bf16 %v1872, %v1872
        %v1898 = vunpack.c.l.b16 %v1889
        %v1899 = vunpack.c.l.b16 %v1890
        %v1900 = vunpack.c.l.b16 %v1891
        %v1901 = vunpack.c.l.b16 %v1892
        %v1902 = vpack.c.b16 %v1899, %v1898
        %v1903 = vpack.c.b16 %v1901, %v1900
        %v1907 = vsel %vm1154, %v1893, 0
        %1909 = vmatpush.bf16.msra.mxu0 0
        %1910 = vmatpush.bf16.msra.mxu0 0
        %1911 = vmatpush.bf16.msra.mxu0 0
        %1912 = vmatpush.bf16.msra.mxu0 0
        %1913 = vmatpush.bf16.msra.mxu0 0
        %1914 = vmatpush.bf16.msra.mxu0 0
        %1915 = vmatpush.bf16.msra.mxu0 %v1903
        %1916 = vmatpush.bf16.msra.mxu0 %v1902
        %1917 = vmatmul.bf16.gmra.mxu0 %v1907
        %v1918 = vpop.f32.mrf.mxu0
        %v1919 = vadd.f32 0.0, %v1918
        %v1920 = vpop.f32.mrf.mxu0
        %1921 = vdwg.mxu0
        %v1922 = vpack.c.bf16 %v1919, %v1919
        %v1923 = vld [vmem:[#allocation10 + $0x1f8] sm:$0xf]
        %v1924 = vld [vmem:[#allocation10 + $0x1fc] sm:$0xf]
        %v1925 = vld [vmem:[#allocation10 + $0x200] sm:$0xf]
        %v1926 = vld [vmem:[#allocation10 + $0x204] sm:$0xf]
        %v1931 = vunpack.c.l.b16 %v1923
        %v1932 = vunpack.c.l.b16 %v1924
        %v1933 = vunpack.c.l.b16 %v1925
        %v1934 = vunpack.c.l.b16 %v1926
        %v1935 = vpack.c.b16 %v1932, %v1931
        %v1936 = vpack.c.b16 %v1934, %v1933
        %1939 = vmatpush.bf16.msra.mxu0 0
        %1940 = vmatpush.bf16.msra.mxu0 0
        %1941 = vmatpush.bf16.msra.mxu0 0
        %1942 = vmatpush.bf16.msra.mxu0 0
        %1943 = vmatpush.bf16.msra.mxu0 0
        %1944 = vmatpush.bf16.msra.mxu0 0
        %1945 = vmatpush.bf16.msra.mxu0 %v1936
        %1946 = vmatpush.bf16.msra.mxu0 %v1935
        %1947 = vmatmul.bf16.gmra.mxu0 %v1907
        %v1948 = vpop.f32.mrf.mxu0
        %v1949 = vadd.f32 0.0, %v1948
        %v1950 = vpop.f32.mrf.mxu0
        %1951 = vdwg.mxu0
        %v1952 = vpack.c.bf16 %v1949, %v1949
        %v1961 = vunpack.c.l.b16 %v564
        %v1962 = vunpack.c.l.b16 %v565
        %v1963 = vunpack.c.l.b16 %v566
        %v1964 = vunpack.c.l.b16 %v567
        %v1965 = vunpack.c.l.b16 %v568
        %v1966 = vunpack.c.l.b16 %v569
        %v1967 = vunpack.c.l.b16 %v570
        %v1968 = vunpack.c.l.b16 %v571
        %v1969 = vpack.c.b16 %v1962, %v1961
        %v1970 = vpack.c.b16 %v1964, %v1963
        %v1971 = vpack.c.b16 %v1966, %v1965
        %v1972 = vpack.c.b16 %v1968, %v1967
        %v1974 = vsel %vm1254, %v1969, 0
        %v1977 = vsel %vm1254, %v1970, 0
        %v1980 = vsel %vm1254, %v1971, 0
        %v1983 = vsel %vm1254, %v1972, 0
        %v1986 = vsel %vm1284, %v1952, 0
        %1988 = vmatpush.bf16.msra.mxu0 0
        %1989 = vmatpush.bf16.msra.mxu0 0
        %1990 = vmatpush.bf16.msra.mxu0 0
        %1991 = vmatpush.bf16.msra.mxu0 0
        %1992 = vmatpush.bf16.msra.mxu0 0
        %1993 = vmatpush.bf16.msra.mxu0 0
        %1994 = vmatpush.bf16.msra.mxu0 0
        %1995 = vmatpush.bf16.msra.mxu0 %v1986
        %1996 = vmatmul.bf16.gmra.mxu0 %v1974
        %v1997 = vpop.f32.mrf.mxu0
        %v1998 = vadd.f32 0.0, %v1997
        %v1999 = vpop.f32.mrf.mxu0
        %v2000 = vadd.f32 0.0, %v1999
        %2001 = vmatmul.bf16.gmra.mxu0 %v1977
        %v2002 = vpop.f32.mrf.mxu0
        %v2003 = vadd.f32 0.0, %v2002
        %v2004 = vpop.f32.mrf.mxu0
        %v2005 = vadd.f32 0.0, %v2004
        %2006 = vmatmul.bf16.gmra.mxu0 %v1980
        %v2007 = vpop.f32.mrf.mxu0
        %v2008 = vadd.f32 0.0, %v2007
        %v2009 = vpop.f32.mrf.mxu0
        %v2010 = vadd.f32 0.0, %v2009
        %2011 = vmatmul.bf16.gmra.mxu0 %v1983
        %v2012 = vpop.f32.mrf.mxu0
        %v2013 = vadd.f32 0.0, %v2012
        %v2014 = vpop.f32.mrf.mxu0
        %v2015 = vadd.f32 0.0, %v2014
        %2016 = vdwg.mxu0
        %v2017 = vld [vmem:[#allocation10 + $0x208] sm:$0xf]
        %v2018 = vpack.c.bf16 %v555, %v555
        %v2020 = vsel %vm1254, %v2018, 0
        %v2023 = vsel %vm1284, %v2017, 0
        %2025 = vmatpush.bf16.msra.mxu0 0
        %2026 = vmatpush.bf16.msra.mxu0 0
        %2027 = vmatpush.bf16.msra.mxu0 0
        %2028 = vmatpush.bf16.msra.mxu0 0
        %2029 = vmatpush.bf16.msra.mxu0 0
        %2030 = vmatpush.bf16.msra.mxu0 0
        %2031 = vmatpush.bf16.msra.mxu0 0
        %2032 = vmatpush.bf16.msra.mxu0 %v2023
        %2033 = vmatmul.bf16.gmra.mxu0 %v2020
        %v2034 = vpop.f32.mrf.mxu0
        %v2035 = vadd.f32 0.0, %v2034
        %v2036 = vpop.f32.mrf.mxu0
        %2037 = vdwg.mxu0
        %v2046 = vunpack.c.l.b16 %v556
        %v2047 = vunpack.c.l.b16 %v557
        %v2048 = vunpack.c.l.b16 %v558
        %v2049 = vunpack.c.l.b16 %v559
        %v2050 = vunpack.c.l.b16 %v560
        %v2051 = vunpack.c.l.b16 %v561
        %v2052 = vunpack.c.l.b16 %v562
        %v2053 = vunpack.c.l.b16 %v563
        %v2054 = vpack.c.b16 %v2047, %v2046
        %v2055 = vpack.c.b16 %v2049, %v2048
        %v2056 = vpack.c.b16 %v2051, %v2050
        %v2057 = vpack.c.b16 %v2053, %v2052
        %v2059 = vsel %vm1254, %v2054, 0
        %v2062 = vsel %vm1254, %v2055, 0
        %v2065 = vsel %vm1254, %v2056, 0
        %v2068 = vsel %vm1254, %v2057, 0
        %v2071 = vsel %vm1284, %v1922, 0
        %2073 = vmatpush.bf16.msra.mxu0 0
        %2074 = vmatpush.bf16.msra.mxu0 0
        %2075 = vmatpush.bf16.msra.mxu0 0
        %2076 = vmatpush.bf16.msra.mxu0 0
        %2077 = vmatpush.bf16.msra.mxu0 0
        %2078 = vmatpush.bf16.msra.mxu0 0
        %2079 = vmatpush.bf16.msra.mxu0 0
        %2080 = vmatpush.bf16.msra.mxu0 %v2071
        %2081 = vmatmul.bf16.gmra.mxu0 %v2059
        %v2082 = vpop.f32.mrf.mxu0
        %v2083 = vadd.f32 %v1998, %v2082
        %v2084 = vpop.f32.mrf.mxu0
        %v2085 = vadd.f32 %v2000, %v2084
        %2086 = vmatmul.bf16.gmra.mxu0 %v2062
        %v2087 = vpop.f32.mrf.mxu0
        %v2088 = vadd.f32 %v2003, %v2087
        %v2089 = vpop.f32.mrf.mxu0
        %v2090 = vadd.f32 %v2005, %v2089
        %2091 = vmatmul.bf16.gmra.mxu0 %v2065
        %v2092 = vpop.f32.mrf.mxu0
        %v2093 = vadd.f32 %v2008, %v2092
        %v2094 = vpop.f32.mrf.mxu0
        %v2095 = vadd.f32 %v2010, %v2094
        %2096 = vmatmul.bf16.gmra.mxu0 %v2068
        %v2097 = vpop.f32.mrf.mxu0
        %v2098 = vadd.f32 %v2013, %v2097
        %v2099 = vpop.f32.mrf.mxu0
        %v2100 = vadd.f32 %v2015, %v2099
        %2101 = vdwg.mxu0
        %v2102 = vperm.slane %v2035, 0
        %v2103 = vadd.f32 %v2083, %v2102
        %v2104 = vadd.f32 %v2085, %v2102
        %v2105 = vadd.f32 %v2088, %v2102
        %v2106 = vadd.f32 %v2090, %v2102
        %v2107 = vadd.f32 %v2093, %v2102
        %v2108 = vadd.f32 %v2095, %v2102
        %v2109 = vadd.f32 %v2098, %v2102
        %v2110 = vadd.f32 %v2100, %v2102
        %v2111 = vld [vmem:[#allocation13 + $0x110] ss:$0 sm:$0xff]
        %v2112 = vadd.f32 %v2103, %v2111
        %v2113 = vadd.f32 %v2104, %v2111
        %v2114 = vadd.f32 %v2105, %v2111
        %v2115 = vadd.f32 %v2106, %v2111
        %v2116 = vadd.f32 %v2107, %v2111
        %v2117 = vadd.f32 %v2108, %v2111
        %v2118 = vadd.f32 %v2109, %v2111
        %v2119 = vadd.f32 %v2110, %v2111
        %v2120 = vld [vmem:[#allocation10 + $0x210] sm:$0xf]
        %v2121 = vld [vmem:[#allocation10 + $0x214] sm:$0xf]
        %v2122 = vld [vmem:[#allocation10 + $0x218] sm:$0xf]
        %v2123 = vld [vmem:[#allocation10 + $0x21c] sm:$0xf]
        %v2124 = vld [vmem:[#allocation10 + $0x220] sm:$0xf]
        %v2125 = vld [vmem:[#allocation10 + $0x224] sm:$0xf]
        %v2126 = vld [vmem:[#allocation10 + $0x228] sm:$0xf]
        %v2127 = vld [vmem:[#allocation10 + $0x22c] sm:$0xf]
        %v2128 = vpack.c.bf16 %v1882, %v1881
        %v2129 = vpack.c.bf16 %v1884, %v1883
        %v2130 = vpack.c.bf16 %v1886, %v1885
        %v2131 = vpack.c.bf16 %v1888, %v1887
        %v2132 = vld [vmem:[#allocation13 + $0x120] ss:$0 sm:$0xff]
        %v2141 = vunpack.c.l.b16 %v2120
        %v2142 = vunpack.c.l.b16 %v2121
        %v2143 = vunpack.c.l.b16 %v2122
        %v2144 = vunpack.c.l.b16 %v2123
        %v2145 = vunpack.c.l.b16 %v2124
        %v2146 = vunpack.c.l.b16 %v2125
        %v2147 = vunpack.c.l.b16 %v2126
        %v2148 = vunpack.c.l.b16 %v2127
        %v2149 = vpack.c.b16 %v2142, %v2141
        %v2150 = vpack.c.b16 %v2144, %v2143
        %v2151 = vpack.c.b16 %v2146, %v2145
        %v2152 = vpack.c.b16 %v2148, %v2147
        %v2158 = vsel %vm1072, %v2128, 0
        %v2161 = vsel %vm1072, %v2129, 0
        %v2164 = vsel %vm1072, %v2130, 0
        %v2167 = vsel %vm1072, %v2131, 0
        %2169 = vmatpush.bf16.msra.mxu0 0
        %2170 = vmatpush.bf16.msra.mxu0 0
        %2171 = vmatpush.bf16.msra.mxu0 0
        %2172 = vmatpush.bf16.msra.mxu0 0
        %2173 = vmatpush.bf16.msra.mxu0 %v2152
        %2174 = vmatpush.bf16.msra.mxu0 %v2151
        %2175 = vmatpush.bf16.msra.mxu0 %v2150
        %2176 = vmatpush.bf16.msra.mxu0 %v2149
        %2177 = vmatmul.bf16.gmra.mxu0 %v2158
        %v2178 = vpop.f32.mrf.mxu0
        %v2179 = vadd.f32 %v2132, %v2178
        %v2180 = vpop.f32.mrf.mxu0
        %v2181 = vadd.f32 %v2132, %v2180
        %2182 = vmatmul.bf16.gmra.mxu0 %v2161
        %v2183 = vpop.f32.mrf.mxu0
        %v2184 = vadd.f32 %v2132, %v2183
        %v2185 = vpop.f32.mrf.mxu0
        %v2186 = vadd.f32 %v2132, %v2185
        %2187 = vmatmul.bf16.gmra.mxu0 %v2164
        %v2188 = vpop.f32.mrf.mxu0
        %v2189 = vadd.f32 %v2132, %v2188
        %v2190 = vpop.f32.mrf.mxu0
        %v2191 = vadd.f32 %v2132, %v2190
        %2192 = vmatmul.bf16.gmra.mxu0 %v2167
        %v2193 = vpop.f32.mrf.mxu0
        %v2194 = vadd.f32 %v2132, %v2193
        %v2195 = vpop.f32.mrf.mxu0
        %v2196 = vadd.f32 %v2132, %v2195
        %2197 = vdwg.mxu0
        %v2198 = vmul.f32 %v2112, %v2179
        %v2199 = vmul.f32 %v2113, %v2181
        %v2200 = vmul.f32 %v2114, %v2184
        %v2201 = vmul.f32 %v2115, %v2186
        %v2202 = vmul.f32 %v2116, %v2189
        %v2203 = vmul.f32 %v2117, %v2191
        %v2204 = vmul.f32 %v2118, %v2194
        %v2205 = vmul.f32 %v2119, %v2196
        %v2206 = vmax.f32 %v2198, 0.0
        %v2207 = vmax.f32 %v2199, 0.0
        %v2208 = vmax.f32 %v2200, 0.0
        %v2209 = vmax.f32 %v2201, 0.0
        %v2210 = vmax.f32 %v2202, 0.0
        %v2211 = vmax.f32 %v2203, 0.0
        %v2212 = vmax.f32 %v2204, 0.0
        %v2213 = vmax.f32 %v2205, 0.0
        %v2214 = vld [vmem:[#allocation10 + $0x230] sm:$0xf]
        %v2215 = vld [vmem:[#allocation10 + $0x234] sm:$0xf]
        %v2216 = vld [vmem:[#allocation10 + $0x238] sm:$0xf]
        %v2217 = vld [vmem:[#allocation10 + $0x23c] sm:$0xf]
        %v2218 = vld [vmem:[#allocation10 + $0x240] sm:$0xf]
        %v2219 = vld [vmem:[#allocation10 + $0x244] sm:$0xf]
        %v2220 = vld [vmem:[#allocation10 + $0x248] sm:$0xf]
        %v2221 = vld [vmem:[#allocation10 + $0x24c] sm:$0xf]
        %v2222 = vld [vmem:[#allocation10 + $0x250] sm:$0xf]
        %v2223 = vld [vmem:[#allocation10 + $0x254] sm:$0xf]
        %v2224 = vld [vmem:[#allocation10 + $0x258] sm:$0xf]
        %v2225 = vld [vmem:[#allocation10 + $0x25c] sm:$0xf]
        %v2226 = vld [vmem:[#allocation10 + $0x260] sm:$0xf]
        %v2227 = vld [vmem:[#allocation10 + $0x264] sm:$0xf]
        %v2228 = vld [vmem:[#allocation10 + $0x268] sm:$0xf]
        %v2229 = vld [vmem:[#allocation10 + $0x26c] sm:$0xf]
        %v2230 = vpack.c.bf16 %v2207, %v2206
        %v2231 = vpack.c.bf16 %v2209, %v2208
        %v2232 = vpack.c.bf16 %v2211, %v2210
        %v2233 = vpack.c.bf16 %v2213, %v2212
        %v2234 = vld [vmem:[#allocation13 + $0x130] ss:$0 sm:$0xff]
        %v2251 = vunpack.c.l.b16 %v2214
        %v2252 = vunpack.c.l.b16 %v2215
        %v2253 = vunpack.c.l.b16 %v2216
        %v2254 = vunpack.c.l.b16 %v2217
        %v2255 = vunpack.c.l.b16 %v2218
        %v2256 = vunpack.c.l.b16 %v2219
        %v2257 = vunpack.c.l.b16 %v2220
        %v2258 = vunpack.c.l.b16 %v2221
        %v2259 = vunpack.c.l.b16 %v2222
        %v2260 = vunpack.c.l.b16 %v2223
        %v2261 = vunpack.c.l.b16 %v2224
        %v2262 = vunpack.c.l.b16 %v2225
        %v2263 = vunpack.c.l.b16 %v2226
        %v2264 = vunpack.c.l.b16 %v2227
        %v2265 = vunpack.c.l.b16 %v2228
        %v2266 = vunpack.c.l.b16 %v2229
        %v2267 = vpack.c.b16 %v2252, %v2251
        %v2268 = vpack.c.b16 %v2254, %v2253
        %v2269 = vpack.c.b16 %v2256, %v2255
        %v2270 = vpack.c.b16 %v2258, %v2257
        %v2271 = vpack.c.b16 %v2260, %v2259
        %v2272 = vpack.c.b16 %v2262, %v2261
        %v2273 = vpack.c.b16 %v2264, %v2263
        %v2274 = vpack.c.b16 %v2266, %v2265
        %2283 = vmatpush.bf16.msra.mxu0 %v2274
        %2284 = vmatpush.bf16.msra.mxu0 %v2273
        %2285 = vmatpush.bf16.msra.mxu0 %v2272
        %2286 = vmatpush.bf16.msra.mxu0 %v2271
        %2287 = vmatpush.bf16.msra.mxu0 %v2270
        %2288 = vmatpush.bf16.msra.mxu0 %v2269
        %2289 = vmatpush.bf16.msra.mxu0 %v2268
        %2290 = vmatpush.bf16.msra.mxu0 %v2267
        %2291 = vmatmul.bf16.gmra.mxu0 %v2230
        %v2292 = vpop.f32.mrf.mxu0
        %v2293 = vadd.f32 %v2234, %v2292
        %v2294 = vpop.f32.mrf.mxu0
        %v2295 = vadd.f32 %v2234, %v2294
        %2296 = vmatmul.bf16.gmra.mxu0 %v2231
        %v2297 = vpop.f32.mrf.mxu0
        %v2298 = vadd.f32 %v2234, %v2297
        %v2299 = vpop.f32.mrf.mxu0
        %v2300 = vadd.f32 %v2234, %v2299
        %2301 = vmatmul.bf16.gmra.mxu0 %v2232
        %v2302 = vpop.f32.mrf.mxu0
        %v2303 = vadd.f32 %v2234, %v2302
        %v2304 = vpop.f32.mrf.mxu0
        %v2305 = vadd.f32 %v2234, %v2304
        %2306 = vmatmul.bf16.gmra.mxu0 %v2233
        %v2307 = vpop.f32.mrf.mxu0
        %v2308 = vadd.f32 %v2234, %v2307
        %v2309 = vpop.f32.mrf.mxu0
        %v2310 = vadd.f32 %v2234, %v2309
        %2311 = vdwg.mxu0
        %v2312 = vmax.f32 %v2293, 0.0
        %v2313 = vmax.f32 %v2295, 0.0
        %v2314 = vmax.f32 %v2298, 0.0
        %v2315 = vmax.f32 %v2300, 0.0
        %v2316 = vmax.f32 %v2303, 0.0
        %v2317 = vmax.f32 %v2305, 0.0
        %v2318 = vmax.f32 %v2308, 0.0
        %v2319 = vmax.f32 %v2310, 0.0
        %v2320 = vld [vmem:[#allocation10 + $0x270] sm:$0xf]
        %v2321 = vld [vmem:[#allocation10 + $0x274] sm:$0xf]
        %v2322 = vld [vmem:[#allocation10 + $0x278] sm:$0xf]
        %v2323 = vld [vmem:[#allocation10 + $0x27c] sm:$0xf]
        %v2324 = vld [vmem:[#allocation10 + $0x280] sm:$0xf]
        %v2325 = vld [vmem:[#allocation10 + $0x284] sm:$0xf]
        %v2326 = vld [vmem:[#allocation10 + $0x288] sm:$0xf]
        %v2327 = vld [vmem:[#allocation10 + $0x28c] sm:$0xf]
        %v2328 = vld [vmem:[#allocation10 + $0x290] sm:$0xf]
        %v2329 = vld [vmem:[#allocation10 + $0x294] sm:$0xf]
        %v2330 = vld [vmem:[#allocation10 + $0x298] sm:$0xf]
        %v2331 = vld [vmem:[#allocation10 + $0x29c] sm:$0xf]
        %v2332 = vld [vmem:[#allocation10 + $0x2a0] sm:$0xf]
        %v2333 = vld [vmem:[#allocation10 + $0x2a4] sm:$0xf]
        %v2334 = vld [vmem:[#allocation10 + $0x2a8] sm:$0xf]
        %v2335 = vld [vmem:[#allocation10 + $0x2ac] sm:$0xf]
        %v2336 = vpack.c.bf16 %v2313, %v2312
        %v2337 = vpack.c.bf16 %v2315, %v2314
        %v2338 = vpack.c.bf16 %v2317, %v2316
        %v2339 = vpack.c.bf16 %v2319, %v2318
        %v2356 = vunpack.c.l.b16 %v2320
        %v2357 = vunpack.c.l.b16 %v2321
        %v2358 = vunpack.c.l.b16 %v2322
        %v2359 = vunpack.c.l.b16 %v2323
        %v2360 = vunpack.c.l.b16 %v2324
        %v2361 = vunpack.c.l.b16 %v2325
        %v2362 = vunpack.c.l.b16 %v2326
        %v2363 = vunpack.c.l.b16 %v2327
        %v2364 = vunpack.c.l.b16 %v2328
        %v2365 = vunpack.c.l.b16 %v2329
        %v2366 = vunpack.c.l.b16 %v2330
        %v2367 = vunpack.c.l.b16 %v2331
        %v2368 = vunpack.c.l.b16 %v2332
        %v2369 = vunpack.c.l.b16 %v2333
        %v2370 = vunpack.c.l.b16 %v2334
        %v2371 = vunpack.c.l.b16 %v2335
        %v2372 = vpack.c.b16 %v2357, %v2356
        %v2373 = vpack.c.b16 %v2359, %v2358
        %v2374 = vpack.c.b16 %v2361, %v2360
        %v2375 = vpack.c.b16 %v2363, %v2362
        %v2376 = vpack.c.b16 %v2365, %v2364
        %v2377 = vpack.c.b16 %v2367, %v2366
        %v2378 = vpack.c.b16 %v2369, %v2368
        %v2379 = vpack.c.b16 %v2371, %v2370
        %2388 = vmatpush.bf16.msra.mxu0 %v2379
        %2389 = vmatpush.bf16.msra.mxu0 %v2378
        %2390 = vmatpush.bf16.msra.mxu0 %v2377
        %2391 = vmatpush.bf16.msra.mxu0 %v2376
        %2392 = vmatpush.bf16.msra.mxu0 %v2375
        %2393 = vmatpush.bf16.msra.mxu0 %v2374
        %2394 = vmatpush.bf16.msra.mxu0 %v2373
        %2395 = vmatpush.bf16.msra.mxu0 %v2372
        %2396 = vmatmul.bf16.gmra.mxu0 %v2336
        %v2397 = vpop.f32.mrf.mxu0
        %v2398 = vadd.f32 0.0, %v2397
        %v2399 = vpop.f32.mrf.mxu0
        %v2400 = vadd.f32 0.0, %v2399
        %2401 = vmatmul.bf16.gmra.mxu0 %v2337
        %v2402 = vpop.f32.mrf.mxu0
        %v2403 = vadd.f32 0.0, %v2402
        %v2404 = vpop.f32.mrf.mxu0
        %v2405 = vadd.f32 0.0, %v2404
        %2406 = vmatmul.bf16.gmra.mxu0 %v2338
        %v2407 = vpop.f32.mrf.mxu0
        %v2408 = vadd.f32 0.0, %v2407
        %v2409 = vpop.f32.mrf.mxu0
        %v2410 = vadd.f32 0.0, %v2409
        %2411 = vmatmul.bf16.gmra.mxu0 %v2339
        %v2412 = vpop.f32.mrf.mxu0
        %v2413 = vadd.f32 0.0, %v2412
        %v2414 = vpop.f32.mrf.mxu0
        %v2415 = vadd.f32 0.0, %v2414
        %2416 = vdwg.mxu0
        %v2417 = vld [vmem:[#allocation10 + $0x2b0] sm:$0xf]
        %v2418 = vld [vmem:[#allocation10 + $0x2b4] sm:$0xf]
        %v2419 = vld [vmem:[#allocation10 + $0x2b8] sm:$0xf]
        %v2420 = vld [vmem:[#allocation10 + $0x2bc] sm:$0xf]
        %v2421 = vld [vmem:[#allocation10 + $0x2c0] sm:$0xf]
        %v2422 = vld [vmem:[#allocation10 + $0x2c4] sm:$0xf]
        %v2423 = vld [vmem:[#allocation10 + $0x2c8] sm:$0xf]
        %v2424 = vld [vmem:[#allocation10 + $0x2cc] sm:$0xf]
        %v2425 = vld [vmem:[#allocation10 + $0x2d0] sm:$0xf]
        %v2426 = vld [vmem:[#allocation10 + $0x2d4] sm:$0xf]
        %v2427 = vld [vmem:[#allocation10 + $0x2d8] sm:$0xf]
        %v2428 = vld [vmem:[#allocation10 + $0x2dc] sm:$0xf]
        %v2429 = vld [vmem:[#allocation10 + $0x2e0] sm:$0xf]
        %v2430 = vld [vmem:[#allocation10 + $0x2e4] sm:$0xf]
        %v2431 = vld [vmem:[#allocation10 + $0x2e8] sm:$0xf]
        %v2432 = vld [vmem:[#allocation10 + $0x2ec] sm:$0xf]
        %v2449 = vunpack.c.l.b16 %v2417
        %v2450 = vunpack.c.l.b16 %v2418
        %v2451 = vunpack.c.l.b16 %v2419
        %v2452 = vunpack.c.l.b16 %v2420
        %v2453 = vunpack.c.l.b16 %v2421
        %v2454 = vunpack.c.l.b16 %v2422
        %v2455 = vunpack.c.l.b16 %v2423
        %v2456 = vunpack.c.l.b16 %v2424
        %v2457 = vunpack.c.l.b16 %v2425
        %v2458 = vunpack.c.l.b16 %v2426
        %v2459 = vunpack.c.l.b16 %v2427
        %v2460 = vunpack.c.l.b16 %v2428
        %v2461 = vunpack.c.l.b16 %v2429
        %v2462 = vunpack.c.l.b16 %v2430
        %v2463 = vunpack.c.l.b16 %v2431
        %v2464 = vunpack.c.l.b16 %v2432
        %v2465 = vpack.c.b16 %v2450, %v2449
        %v2466 = vpack.c.b16 %v2452, %v2451
        %v2467 = vpack.c.b16 %v2454, %v2453
        %v2468 = vpack.c.b16 %v2456, %v2455
        %v2469 = vpack.c.b16 %v2458, %v2457
        %v2470 = vpack.c.b16 %v2460, %v2459
        %v2471 = vpack.c.b16 %v2462, %v2461
        %v2472 = vpack.c.b16 %v2464, %v2463
        %2481 = vmatpush.bf16.msra.mxu0 %v2472
        %2482 = vmatpush.bf16.msra.mxu0 %v2471
        %2483 = vmatpush.bf16.msra.mxu0 %v2470
        %2484 = vmatpush.bf16.msra.mxu0 %v2469
        %2485 = vmatpush.bf16.msra.mxu0 %v2468
        %2486 = vmatpush.bf16.msra.mxu0 %v2467
        %2487 = vmatpush.bf16.msra.mxu0 %v2466
        %2488 = vmatpush.bf16.msra.mxu0 %v2465
        %2489 = vmatmul.bf16.gmra.mxu0 %v2336
        %v2490 = vpop.f32.mrf.mxu0
        %v2491 = vadd.f32 0.0, %v2490
        %v2492 = vpop.f32.mrf.mxu0
        %v2493 = vadd.f32 0.0, %v2492
        %2494 = vmatmul.bf16.gmra.mxu0 %v2337
        %v2495 = vpop.f32.mrf.mxu0
        %v2496 = vadd.f32 0.0, %v2495
        %v2497 = vpop.f32.mrf.mxu0
        %v2498 = vadd.f32 0.0, %v2497
        %2499 = vmatmul.bf16.gmra.mxu0 %v2338
        %v2500 = vpop.f32.mrf.mxu0
        %v2501 = vadd.f32 0.0, %v2500
        %v2502 = vpop.f32.mrf.mxu0
        %v2503 = vadd.f32 0.0, %v2502
        %2504 = vmatmul.bf16.gmra.mxu0 %v2339
        %v2505 = vpop.f32.mrf.mxu0
        %v2506 = vadd.f32 0.0, %v2505
        %v2507 = vpop.f32.mrf.mxu0
        %v2508 = vadd.f32 0.0, %v2507
        %2509 = vdwg.mxu0
        %v2510 = vpack.c.bf16 %v2400, %v2398
        %v2511 = vpack.c.bf16 %v2405, %v2403
        %v2512 = vpack.c.bf16 %v2410, %v2408
        %v2513 = vpack.c.bf16 %v2415, %v2413
        %v2514 = vpack.c.bf16 %v2493, %v2491
        %v2515 = vpack.c.bf16 %v2498, %v2496
        %v2516 = vpack.c.bf16 %v2503, %v2501
        %v2517 = vpack.c.bf16 %v2508, %v2506
        %2518 = vmatpush.bf16.xpose.msra.mxu0 0
        %2519 = vmatpush.bf16.xpose.msra.mxu0 0
        %2520 = vmatpush.bf16.xpose.msra.mxu0 0
        %2521 = vmatpush.bf16.xpose.msra.mxu0 0
        %2522 = vmatpush.bf16.xpose.msra.mxu0 %v2517
        %2523 = vmatpush.bf16.xpose.msra.mxu0 %v2516
        %2524 = vmatpush.bf16.xpose.msra.mxu0 %v2515
        %2525 = vmatpush.bf16.xpose.msra.mxu0 %v2514
        %2526 = vmatmul.bf16.gmra.mxu0 %v2510
        %v2527 = vpop.f32.mrf.mxu0
        %v2528 = vadd.f32 0.0, %v2527
        %v2529 = vpop.f32.mrf.mxu0
        %v2530 = vadd.f32 0.0, %v2529
        %2531 = vmatmul.bf16.gmra.mxu0 %v2511
        %v2532 = vpop.f32.mrf.mxu0
        %v2533 = vadd.f32 0.0, %v2532
        %v2534 = vpop.f32.mrf.mxu0
        %v2535 = vadd.f32 0.0, %v2534
        %2536 = vmatmul.bf16.gmra.mxu0 %v2512
        %v2537 = vpop.f32.mrf.mxu0
        %v2538 = vadd.f32 0.0, %v2537
        %v2539 = vpop.f32.mrf.mxu0
        %v2540 = vadd.f32 0.0, %v2539
        %2541 = vmatmul.bf16.gmra.mxu0 %v2513
        %v2542 = vpop.f32.mrf.mxu0
        %v2543 = vadd.f32 0.0, %v2542
        %v2544 = vpop.f32.mrf.mxu0
        %v2545 = vadd.f32 0.0, %v2544
        %2546 = vdwg.mxu0
        %v2547 = vmul.f32 %v2528, 0.088388346
        %v2548 = vmul.f32 %v2530, 0.088388346
        %v2549 = vmul.f32 %v2533, 0.088388346
        %v2550 = vmul.f32 %v2535, 0.088388346
        %v2551 = vmul.f32 %v2538, 0.088388346
        %v2552 = vmul.f32 %v2540, 0.088388346
        %v2553 = vmul.f32 %v2543, 0.088388346
        %v2554 = vmul.f32 %v2545, 0.088388346
        %v2555 = vperm.slane %v555, 2
        %v2556 = vadd.f32 %v2547, %v2555
        %v2557 = vadd.f32 %v2548, %v2555
        %v2558 = vadd.f32 %v2549, %v2555
        %v2559 = vadd.f32 %v2550, %v2555
        %v2560 = vadd.f32 %v2551, %v2555
        %v2561 = vadd.f32 %v2552, %v2555
        %v2562 = vadd.f32 %v2553, %v2555
        %v2563 = vadd.f32 %v2554, %v2555
        %v2564 = vsel %vm1072, %v2556, -inf
        %2565 = vmax.xlane.f32.xlu0 %v2564
        %v2566 = vpop.xlane.xlu0 %2565
        %v2567 = vsel %vm1072, %v2557, -inf
        %2568 = vmax.xlane.f32.xlu0 %v2567
        %v2569 = vpop.xlane.xlu0 %2568
        %v2570 = vsel %vm1072, %v2558, -inf
        %2571 = vmax.xlane.f32.xlu0 %v2570
        %v2572 = vpop.xlane.xlu0 %2571
        %v2573 = vsel %vm1072, %v2559, -inf
        %2574 = vmax.xlane.f32.xlu0 %v2573
        %v2575 = vpop.xlane.xlu0 %2574
        %v2576 = vsel %vm1072, %v2560, -inf
        %2577 = vmax.xlane.f32.xlu0 %v2576
        %v2578 = vpop.xlane.xlu0 %2577
        %v2579 = vsel %vm1072, %v2561, -inf
        %2580 = vmax.xlane.f32.xlu0 %v2579
        %v2581 = vpop.xlane.xlu0 %2580
        %v2582 = vsel %vm1072, %v2562, -inf
        %2583 = vmax.xlane.f32.xlu0 %v2582
        %v2584 = vpop.xlane.xlu0 %2583
        %v2585 = vsel %vm1072, %v2563, -inf
        %2586 = vmax.xlane.f32.xlu0 %v2585
        %v2587 = vpop.xlane.xlu0 %2586
        %v2588 = vsub.f32 %v2556, %v2566
        %v2589 = vsub.f32 %v2557, %v2569
        %v2590 = vsub.f32 %v2558, %v2572
        %v2591 = vsub.f32 %v2559, %v2575
        %v2592 = vsub.f32 %v2560, %v2578
        %v2593 = vsub.f32 %v2561, %v2581
        %v2594 = vsub.f32 %v2562, %v2584
        %v2595 = vsub.f32 %v2563, %v2587
        %v2596 = vmul.f32 %v2588, 1.442695
        %v2597 = vpow.pop %v2596
        %v2598 = vmul.f32 %v2589, 1.442695
        %v2599 = vpow.pop %v2598
        %v2600 = vmul.f32 %v2590, 1.442695
        %v2601 = vpow.pop %v2600
        %v2602 = vmul.f32 %v2591, 1.442695
        %v2603 = vpow.pop %v2602
        %v2604 = vmul.f32 %v2592, 1.442695
        %v2605 = vpow.pop %v2604
        %v2606 = vmul.f32 %v2593, 1.442695
        %v2607 = vpow.pop %v2606
        %v2608 = vmul.f32 %v2594, 1.442695
        %v2609 = vpow.pop %v2608
        %v2610 = vmul.f32 %v2595, 1.442695
        %v2611 = vpow.pop %v2610
        %v2612 = vsel %vm1072, %v2597, 0.0
        %2613 = vadd.xlane.f32.xlu0 %v2612
        %v2614 = vpop.xlane.xlu0 %2613
        %v2615 = vsel %vm1072, %v2599, 0.0
        %2616 = vadd.xlane.f32.xlu0 %v2615
        %v2617 = vpop.xlane.xlu0 %2616
        %v2618 = vsel %vm1072, %v2601, 0.0
        %2619 = vadd.xlane.f32.xlu0 %v2618
        %v2620 = vpop.xlane.xlu0 %2619
        %v2621 = vsel %vm1072, %v2603, 0.0
        %2622 = vadd.xlane.f32.xlu0 %v2621
        %v2623 = vpop.xlane.xlu0 %2622
        %v2624 = vsel %vm1072, %v2605, 0.0
        %2625 = vadd.xlane.f32.xlu0 %v2624
        %v2626 = vpop.xlane.xlu0 %2625
        %v2627 = vsel %vm1072, %v2607, 0.0
        %2628 = vadd.xlane.f32.xlu0 %v2627
        %v2629 = vpop.xlane.xlu0 %2628
        %v2630 = vsel %vm1072, %v2609, 0.0
        %2631 = vadd.xlane.f32.xlu0 %v2630
        %v2632 = vpop.xlane.xlu0 %2631
        %v2633 = vsel %vm1072, %v2611, 0.0
        %2634 = vadd.xlane.f32.xlu0 %v2633
        %v2635 = vpop.xlane.xlu0 %2634
        %v2636 = vrcp.pop %v2614
        %v2637 = vmul.f32 %v2614, %v2636
        %v2638 = vsub.f32 1.0, %v2637
        %v2639 = vmul.f32 %v2636, %v2638
        %v2640 = vadd.f32 %v2636, %v2639
        %vm2641 = vweird.f32 %v2614
        %vm2642 = vweird.f32 %v2636
        %vm2643 = vmor %vm2641, %vm2642
        %v2644 = vsel %vm2643, %v2636, %v2640
        %v2645 = vand.u32 2147483647, %v2614
        %vm2646 = vcmp.eq.f32.partialorder %v2645, 8.507059e+37
        %v2647 = vand.u32 %v2614, 2147483648
        %v2648 = vor.u32 1.1754944e-38, %v2647
        %v2649 = vsel %vm2646, %v2648, %v2644
        %v2650 = vmul.f32 %v2597, %v2649
        %v2651 = vrcp.pop %v2617
        %v2652 = vmul.f32 %v2617, %v2651
        %v2653 = vsub.f32 1.0, %v2652
        %v2654 = vmul.f32 %v2651, %v2653
        %v2655 = vadd.f32 %v2651, %v2654
        %vm2656 = vweird.f32 %v2617
        %vm2657 = vweird.f32 %v2651
        %vm2658 = vmor %vm2656, %vm2657
        %v2659 = vsel %vm2658, %v2651, %v2655
        %v2660 = vand.u32 2147483647, %v2617
        %vm2661 = vcmp.eq.f32.partialorder %v2660, 8.507059e+37
        %v2662 = vand.u32 %v2617, 2147483648
        %v2663 = vor.u32 1.1754944e-38, %v2662
        %v2664 = vsel %vm2661, %v2663, %v2659
        %v2665 = vmul.f32 %v2599, %v2664
        %v2666 = vrcp.pop %v2620
        %v2667 = vmul.f32 %v2620, %v2666
        %v2668 = vsub.f32 1.0, %v2667
        %v2669 = vmul.f32 %v2666, %v2668
        %v2670 = vadd.f32 %v2666, %v2669
        %vm2671 = vweird.f32 %v2620
        %vm2672 = vweird.f32 %v2666
        %vm2673 = vmor %vm2671, %vm2672
        %v2674 = vsel %vm2673, %v2666, %v2670
        %v2675 = vand.u32 2147483647, %v2620
        %vm2676 = vcmp.eq.f32.partialorder %v2675, 8.507059e+37
        %v2677 = vand.u32 %v2620, 2147483648
        %v2678 = vor.u32 1.1754944e-38, %v2677
        %v2679 = vsel %vm2676, %v2678, %v2674
        %v2680 = vmul.f32 %v2601, %v2679
        %v2681 = vrcp.pop %v2623
        %v2682 = vmul.f32 %v2623, %v2681
        %v2683 = vsub.f32 1.0, %v2682
        %v2684 = vmul.f32 %v2681, %v2683
        %v2685 = vadd.f32 %v2681, %v2684
        %vm2686 = vweird.f32 %v2623
        %vm2687 = vweird.f32 %v2681
        %vm2688 = vmor %vm2686, %vm2687
        %v2689 = vsel %vm2688, %v2681, %v2685
        %v2690 = vand.u32 2147483647, %v2623
        %vm2691 = vcmp.eq.f32.partialorder %v2690, 8.507059e+37
        %v2692 = vand.u32 %v2623, 2147483648
        %v2693 = vor.u32 1.1754944e-38, %v2692
        %v2694 = vsel %vm2691, %v2693, %v2689
        %v2695 = vmul.f32 %v2603, %v2694
        %v2696 = vrcp.pop %v2626
        %v2697 = vmul.f32 %v2626, %v2696
        %v2698 = vsub.f32 1.0, %v2697
        %v2699 = vmul.f32 %v2696, %v2698
        %v2700 = vadd.f32 %v2696, %v2699
        %vm2701 = vweird.f32 %v2626
        %vm2702 = vweird.f32 %v2696
        %vm2703 = vmor %vm2701, %vm2702
        %v2704 = vsel %vm2703, %v2696, %v2700
        %v2705 = vand.u32 2147483647, %v2626
        %vm2706 = vcmp.eq.f32.partialorder %v2705, 8.507059e+37
        %v2707 = vand.u32 %v2626, 2147483648
        %v2708 = vor.u32 1.1754944e-38, %v2707
        %v2709 = vsel %vm2706, %v2708, %v2704
        %v2710 = vmul.f32 %v2605, %v2709
        %v2711 = vrcp.pop %v2629
        %v2712 = vmul.f32 %v2629, %v2711
        %v2713 = vsub.f32 1.0, %v2712
        %v2714 = vmul.f32 %v2711, %v2713
        %v2715 = vadd.f32 %v2711, %v2714
        %vm2716 = vweird.f32 %v2629
        %vm2717 = vweird.f32 %v2711
        %vm2718 = vmor %vm2716, %vm2717
        %v2719 = vsel %vm2718, %v2711, %v2715
        %v2720 = vand.u32 2147483647, %v2629
        %vm2721 = vcmp.eq.f32.partialorder %v2720, 8.507059e+37
        %v2722 = vand.u32 %v2629, 2147483648
        %v2723 = vor.u32 1.1754944e-38, %v2722
        %v2724 = vsel %vm2721, %v2723, %v2719
        %v2725 = vmul.f32 %v2607, %v2724
        %v2726 = vrcp.pop %v2632
        %v2727 = vmul.f32 %v2632, %v2726
        %v2728 = vsub.f32 1.0, %v2727
        %v2729 = vmul.f32 %v2726, %v2728
        %v2730 = vadd.f32 %v2726, %v2729
        %vm2731 = vweird.f32 %v2632
        %vm2732 = vweird.f32 %v2726
        %vm2733 = vmor %vm2731, %vm2732
        %v2734 = vsel %vm2733, %v2726, %v2730
        %v2735 = vand.u32 2147483647, %v2632
        %vm2736 = vcmp.eq.f32.partialorder %v2735, 8.507059e+37
        %v2737 = vand.u32 %v2632, 2147483648
        %v2738 = vor.u32 1.1754944e-38, %v2737
        %v2739 = vsel %vm2736, %v2738, %v2734
        %v2740 = vmul.f32 %v2609, %v2739
        %v2741 = vrcp.pop %v2635
        %v2742 = vmul.f32 %v2635, %v2741
        %v2743 = vsub.f32 1.0, %v2742
        %v2744 = vmul.f32 %v2741, %v2743
        %v2745 = vadd.f32 %v2741, %v2744
        %vm2746 = vweird.f32 %v2635
        %vm2747 = vweird.f32 %v2741
        %vm2748 = vmor %vm2746, %vm2747
        %v2749 = vsel %vm2748, %v2741, %v2745
        %v2750 = vand.u32 2147483647, %v2635
        %vm2751 = vcmp.eq.f32.partialorder %v2750, 8.507059e+37
        %v2752 = vand.u32 %v2635, 2147483648
        %v2753 = vor.u32 1.1754944e-38, %v2752
        %v2754 = vsel %vm2751, %v2753, %v2749
        %v2755 = vmul.f32 %v2611, %v2754
        %v2756 = vsel %vm1072, %v2650, 0.0
        %v2757 = vsel %vm1072, %v2665, 0.0
        %v2758 = vsel %vm1072, %v2680, 0.0
        %v2759 = vsel %vm1072, %v2695, 0.0
        %v2760 = vsel %vm1072, %v2710, 0.0
        %v2761 = vsel %vm1072, %v2725, 0.0
        %v2762 = vsel %vm1072, %v2740, 0.0
        %v2763 = vsel %vm1072, %v2755, 0.0
        %2764 = vst [vmem:[%s536] sm:$0xff] %v2756
        %2765 = vst [vmem:[%s536 + $0x8] sm:$0xff] %v2757
        %2766 = vst [vmem:[%s536 + $0x10] sm:$0xff] %v2758
        %2767 = vst [vmem:[%s536 + $0x18] sm:$0xff] %v2759
        %2768 = vst [vmem:[%s536 + $0x20] sm:$0xff] %v2760
        %2769 = vst [vmem:[%s536 + $0x28] sm:$0xff] %v2761
        %2770 = vst [vmem:[%s536 + $0x30] sm:$0xff] %v2762
        %2771 = vst [vmem:[%s536 + $0x38] sm:$0xff] %v2763
        %v2772 = vld [vmem:[#allocation10 + $0x2f0] sm:$0xf]
        %v2773 = vld [vmem:[#allocation10 + $0x2f4] sm:$0xf]
        %v2774 = vld [vmem:[#allocation10 + $0x2f8] sm:$0xf]
        %v2775 = vld [vmem:[#allocation10 + $0x2fc] sm:$0xf]
        %v2776 = vld [vmem:[#allocation10 + $0x300] sm:$0xf]
        %v2777 = vld [vmem:[#allocation10 + $0x304] sm:$0xf]
        %v2778 = vld [vmem:[#allocation10 + $0x308] sm:$0xf]
        %v2779 = vld [vmem:[#allocation10 + $0x30c] sm:$0xf]
        %v2780 = vld [vmem:[#allocation10 + $0x310] sm:$0xf]
        %v2781 = vld [vmem:[#allocation10 + $0x314] sm:$0xf]
        %v2782 = vld [vmem:[#allocation10 + $0x318] sm:$0xf]
        %v2783 = vld [vmem:[#allocation10 + $0x31c] sm:$0xf]
        %v2784 = vld [vmem:[#allocation10 + $0x320] sm:$0xf]
        %v2785 = vld [vmem:[#allocation10 + $0x324] sm:$0xf]
        %v2786 = vld [vmem:[#allocation10 + $0x328] sm:$0xf]
        %v2787 = vld [vmem:[#allocation10 + $0x32c] sm:$0xf]
        %v2804 = vunpack.c.l.b16 %v2772
        %v2805 = vunpack.c.l.b16 %v2773
        %v2806 = vunpack.c.l.b16 %v2774
        %v2807 = vunpack.c.l.b16 %v2775
        %v2808 = vunpack.c.l.b16 %v2776
        %v2809 = vunpack.c.l.b16 %v2777
        %v2810 = vunpack.c.l.b16 %v2778
        %v2811 = vunpack.c.l.b16 %v2779
        %v2812 = vunpack.c.l.b16 %v2780
        %v2813 = vunpack.c.l.b16 %v2781
        %v2814 = vunpack.c.l.b16 %v2782
        %v2815 = vunpack.c.l.b16 %v2783
        %v2816 = vunpack.c.l.b16 %v2784
        %v2817 = vunpack.c.l.b16 %v2785
        %v2818 = vunpack.c.l.b16 %v2786
        %v2819 = vunpack.c.l.b16 %v2787
        %v2820 = vpack.c.b16 %v2805, %v2804
        %v2821 = vpack.c.b16 %v2807, %v2806
        %v2822 = vpack.c.b16 %v2809, %v2808
        %v2823 = vpack.c.b16 %v2811, %v2810
        %v2824 = vpack.c.b16 %v2813, %v2812
        %v2825 = vpack.c.b16 %v2815, %v2814
        %v2826 = vpack.c.b16 %v2817, %v2816
        %v2827 = vpack.c.b16 %v2819, %v2818
        %2836 = vmatpush.bf16.msra.mxu0 %v2827
        %2837 = vmatpush.bf16.msra.mxu0 %v2826
        %2838 = vmatpush.bf16.msra.mxu0 %v2825
        %2839 = vmatpush.bf16.msra.mxu0 %v2824
        %2840 = vmatpush.bf16.msra.mxu0 %v2823
        %2841 = vmatpush.bf16.msra.mxu0 %v2822
        %2842 = vmatpush.bf16.msra.mxu0 %v2821
        %2843 = vmatpush.bf16.msra.mxu0 %v2820
        %2844 = vmatmul.bf16.gmra.mxu0 %v2336
        %v2845 = vpop.f32.mrf.mxu0
        %v2846 = vadd.f32 0.0, %v2845
        %v2847 = vpop.f32.mrf.mxu0
        %v2848 = vadd.f32 0.0, %v2847
        %2849 = vmatmul.bf16.gmra.mxu0 %v2337
        %v2850 = vpop.f32.mrf.mxu0
        %v2851 = vadd.f32 0.0, %v2850
        %v2852 = vpop.f32.mrf.mxu0
        %v2853 = vadd.f32 0.0, %v2852
        %2854 = vmatmul.bf16.gmra.mxu0 %v2338
        %v2855 = vpop.f32.mrf.mxu0
        %v2856 = vadd.f32 0.0, %v2855
        %v2857 = vpop.f32.mrf.mxu0
        %v2858 = vadd.f32 0.0, %v2857
        %2859 = vmatmul.bf16.gmra.mxu0 %v2339
        %v2860 = vpop.f32.mrf.mxu0
        %v2861 = vadd.f32 0.0, %v2860
        %v2862 = vpop.f32.mrf.mxu0
        %v2863 = vadd.f32 0.0, %v2862
        %2864 = vdwg.mxu0
        %v2865 = vpack.c.bf16 %v2665, %v2650
        %v2866 = vpack.c.bf16 %v2695, %v2680
        %v2867 = vpack.c.bf16 %v2725, %v2710
        %v2868 = vpack.c.bf16 %v2755, %v2740
        %v2869 = vpack.c.bf16 %v2848, %v2846
        %v2870 = vpack.c.bf16 %v2853, %v2851
        %v2871 = vpack.c.bf16 %v2858, %v2856
        %v2872 = vpack.c.bf16 %v2863, %v2861
        %v2874 = vsel %vm1072, %v2865, 0
        %v2877 = vsel %vm1072, %v2866, 0
        %v2880 = vsel %vm1072, %v2867, 0
        %v2883 = vsel %vm1072, %v2868, 0
        %2885 = vmatpush.bf16.msra.mxu0 0
        %2886 = vmatpush.bf16.msra.mxu0 0
        %2887 = vmatpush.bf16.msra.mxu0 0
        %2888 = vmatpush.bf16.msra.mxu0 0
        %2889 = vmatpush.bf16.msra.mxu0 %v2872
        %2890 = vmatpush.bf16.msra.mxu0 %v2871
        %2891 = vmatpush.bf16.msra.mxu0 %v2870
        %2892 = vmatpush.bf16.msra.mxu0 %v2869
        %2893 = vmatmul.bf16.gmra.mxu0 %v2874
        %v2894 = vpop.f32.mrf.mxu0
        %v2895 = vadd.f32 0.0, %v2894
        %v2896 = vpop.f32.mrf.mxu0
        %v2897 = vadd.f32 0.0, %v2896
        %2898 = vmatmul.bf16.gmra.mxu0 %v2877
        %v2899 = vpop.f32.mrf.mxu0
        %v2900 = vadd.f32 0.0, %v2899
        %v2901 = vpop.f32.mrf.mxu0
        %v2902 = vadd.f32 0.0, %v2901
        %2903 = vmatmul.bf16.gmra.mxu0 %v2880
        %v2904 = vpop.f32.mrf.mxu0
        %v2905 = vadd.f32 0.0, %v2904
        %v2906 = vpop.f32.mrf.mxu0
        %v2907 = vadd.f32 0.0, %v2906
        %2908 = vmatmul.bf16.gmra.mxu0 %v2883
        %v2909 = vpop.f32.mrf.mxu0
        %v2910 = vadd.f32 0.0, %v2909
        %v2911 = vpop.f32.mrf.mxu0
        %v2912 = vadd.f32 0.0, %v2911
        %2913 = vdwg.mxu0
        %v2914 = vld [vmem:[#allocation10 + $0x330] sm:$0xf]
        %v2915 = vld [vmem:[#allocation10 + $0x334] sm:$0xf]
        %v2916 = vld [vmem:[#allocation10 + $0x338] sm:$0xf]
        %v2917 = vld [vmem:[#allocation10 + $0x33c] sm:$0xf]
        %v2918 = vld [vmem:[#allocation10 + $0x340] sm:$0xf]
        %v2919 = vld [vmem:[#allocation10 + $0x344] sm:$0xf]
        %v2920 = vld [vmem:[#allocation10 + $0x348] sm:$0xf]
        %v2921 = vld [vmem:[#allocation10 + $0x34c] sm:$0xf]
        %v2922 = vld [vmem:[#allocation10 + $0x350] sm:$0xf]
        %v2923 = vld [vmem:[#allocation10 + $0x354] sm:$0xf]
        %v2924 = vld [vmem:[#allocation10 + $0x358] sm:$0xf]
        %v2925 = vld [vmem:[#allocation10 + $0x35c] sm:$0xf]
        %v2926 = vld [vmem:[#allocation10 + $0x360] sm:$0xf]
        %v2927 = vld [vmem:[#allocation10 + $0x364] sm:$0xf]
        %v2928 = vld [vmem:[#allocation10 + $0x368] sm:$0xf]
        %v2929 = vld [vmem:[#allocation10 + $0x36c] sm:$0xf]
        %v2930 = vpack.c.bf16 %v2897, %v2895
        %v2931 = vpack.c.bf16 %v2902, %v2900
        %v2932 = vpack.c.bf16 %v2907, %v2905
        %v2933 = vpack.c.bf16 %v2912, %v2910
        %v2950 = vunpack.c.l.b16 %v2914
        %v2951 = vunpack.c.l.b16 %v2915
        %v2952 = vunpack.c.l.b16 %v2916
        %v2953 = vunpack.c.l.b16 %v2917
        %v2954 = vunpack.c.l.b16 %v2918
        %v2955 = vunpack.c.l.b16 %v2919
        %v2956 = vunpack.c.l.b16 %v2920
        %v2957 = vunpack.c.l.b16 %v2921
        %v2958 = vunpack.c.l.b16 %v2922
        %v2959 = vunpack.c.l.b16 %v2923
        %v2960 = vunpack.c.l.b16 %v2924
        %v2961 = vunpack.c.l.b16 %v2925
        %v2962 = vunpack.c.l.b16 %v2926
        %v2963 = vunpack.c.l.b16 %v2927
        %v2964 = vunpack.c.l.b16 %v2928
        %v2965 = vunpack.c.l.b16 %v2929
        %v2966 = vpack.c.b16 %v2951, %v2950
        %v2967 = vpack.c.b16 %v2953, %v2952
        %v2968 = vpack.c.b16 %v2955, %v2954
        %v2969 = vpack.c.b16 %v2957, %v2956
        %v2970 = vpack.c.b16 %v2959, %v2958
        %v2971 = vpack.c.b16 %v2961, %v2960
        %v2972 = vpack.c.b16 %v2963, %v2962
        %v2973 = vpack.c.b16 %v2965, %v2964
        %2982 = vmatpush.bf16.msra.mxu0 %v2973
        %2983 = vmatpush.bf16.msra.mxu0 %v2972
        %2984 = vmatpush.bf16.msra.mxu0 %v2971
        %2985 = vmatpush.bf16.msra.mxu0 %v2970
        %2986 = vmatpush.bf16.msra.mxu0 %v2969
        %2987 = vmatpush.bf16.msra.mxu0 %v2968
        %2988 = vmatpush.bf16.msra.mxu0 %v2967
        %2989 = vmatpush.bf16.msra.mxu0 %v2966
        %2990 = vmatmul.bf16.gmra.mxu0 %v2930
        %v2991 = vpop.f32.mrf.mxu0
        %v2992 = vadd.f32 0.0, %v2991
        %v2993 = vpop.f32.mrf.mxu0
        %v2994 = vadd.f32 0.0, %v2993
        %2995 = vmatmul.bf16.gmra.mxu0 %v2931
        %v2996 = vpop.f32.mrf.mxu0
        %v2997 = vadd.f32 0.0, %v2996
        %v2998 = vpop.f32.mrf.mxu0
        %v2999 = vadd.f32 0.0, %v2998
        %3000 = vmatmul.bf16.gmra.mxu0 %v2932
        %v3001 = vpop.f32.mrf.mxu0
        %v3002 = vadd.f32 0.0, %v3001
        %v3003 = vpop.f32.mrf.mxu0
        %v3004 = vadd.f32 0.0, %v3003
        %3005 = vmatmul.bf16.gmra.mxu0 %v2933
        %v3006 = vpop.f32.mrf.mxu0
        %v3007 = vadd.f32 0.0, %v3006
        %v3008 = vpop.f32.mrf.mxu0
        %v3009 = vadd.f32 0.0, %v3008
        %3010 = vdwg.mxu0
        %v3011 = vadd.f32 %v2312, %v2992
        %v3012 = vadd.f32 %v2313, %v2994
        %v3013 = vadd.f32 %v2314, %v2997
        %v3014 = vadd.f32 %v2315, %v2999
        %v3015 = vadd.f32 %v2316, %v3002
        %v3016 = vadd.f32 %v2317, %v3004
        %v3017 = vadd.f32 %v2318, %v3007
        %v3018 = vadd.f32 %v2319, %v3009
        %v3019 = vld [vmem:[#allocation13 + $0x160] ss:$0 sm:$0xff]
        %v3020 = vld [vmem:[#allocation13 + $0x170] ss:$0 sm:$0xff]
        %3021 = vadd.xlane.f32.xlu0 %v3011
        %v3022 = vpop.xlane.xlu0 %3021
        %3023 = vadd.xlane.f32.xlu0 %v3012
        %v3024 = vpop.xlane.xlu0 %3023
        %3025 = vadd.xlane.f32.xlu0 %v3013
        %v3026 = vpop.xlane.xlu0 %3025
        %3027 = vadd.xlane.f32.xlu0 %v3014
        %v3028 = vpop.xlane.xlu0 %3027
        %3029 = vadd.xlane.f32.xlu0 %v3015
        %v3030 = vpop.xlane.xlu0 %3029
        %3031 = vadd.xlane.f32.xlu0 %v3016
        %v3032 = vpop.xlane.xlu0 %3031
        %3033 = vadd.xlane.f32.xlu0 %v3017
        %v3034 = vpop.xlane.xlu0 %3033
        %3035 = vadd.xlane.f32.xlu0 %v3018
        %v3036 = vpop.xlane.xlu0 %3035
        %v3037 = vrcp.pop 128.0
        %v3038 = vmul.f32 128.0, %v3037
        %v3039 = vsub.f32 1.0, %v3038
        %v3040 = vmul.f32 %v3037, %v3039
        %v3041 = vadd.f32 %v3037, %v3040
        %vm3042 = vweird.f32 %v3037
        %v3043 = vsel %vm3042, %v3037, %v3041
        %v3044 = vmul.f32 %v3022, %v3043
        %v3045 = vmul.f32 %v3024, %v3043
        %v3046 = vmul.f32 %v3026, %v3043
        %v3047 = vmul.f32 %v3028, %v3043
        %v3048 = vmul.f32 %v3030, %v3043
        %v3049 = vmul.f32 %v3032, %v3043
        %v3050 = vmul.f32 %v3034, %v3043
        %v3051 = vmul.f32 %v3036, %v3043
        %v3052 = vsub.f32 %v3011, %v3044
        %v3053 = vsub.f32 %v3012, %v3045
        %v3054 = vsub.f32 %v3013, %v3046
        %v3055 = vsub.f32 %v3014, %v3047
        %v3056 = vsub.f32 %v3015, %v3048
        %v3057 = vsub.f32 %v3016, %v3049
        %v3058 = vsub.f32 %v3017, %v3050
        %v3059 = vsub.f32 %v3018, %v3051
        %v3060 = vmul.f32 %v3052, %v3052
        %v3061 = vmul.f32 %v3053, %v3053
        %v3062 = vmul.f32 %v3054, %v3054
        %v3063 = vmul.f32 %v3055, %v3055
        %v3064 = vmul.f32 %v3056, %v3056
        %v3065 = vmul.f32 %v3057, %v3057
        %v3066 = vmul.f32 %v3058, %v3058
        %v3067 = vmul.f32 %v3059, %v3059
        %3068 = vadd.xlane.f32.xlu0 %v3060
        %v3069 = vpop.xlane.xlu0 %3068
        %3070 = vadd.xlane.f32.xlu0 %v3061
        %v3071 = vpop.xlane.xlu0 %3070
        %3072 = vadd.xlane.f32.xlu0 %v3062
        %v3073 = vpop.xlane.xlu0 %3072
        %3074 = vadd.xlane.f32.xlu0 %v3063
        %v3075 = vpop.xlane.xlu0 %3074
        %3076 = vadd.xlane.f32.xlu0 %v3064
        %v3077 = vpop.xlane.xlu0 %3076
        %3078 = vadd.xlane.f32.xlu0 %v3065
        %v3079 = vpop.xlane.xlu0 %3078
        %3080 = vadd.xlane.f32.xlu0 %v3066
        %v3081 = vpop.xlane.xlu0 %3080
        %3082 = vadd.xlane.f32.xlu0 %v3067
        %v3083 = vpop.xlane.xlu0 %3082
        %v3084 = vmul.f32 %v3069, %v3043
        %v3085 = vmul.f32 %v3071, %v3043
        %v3086 = vmul.f32 %v3073, %v3043
        %v3087 = vmul.f32 %v3075, %v3043
        %v3088 = vmul.f32 %v3077, %v3043
        %v3089 = vmul.f32 %v3079, %v3043
        %v3090 = vmul.f32 %v3081, %v3043
        %v3091 = vmul.f32 %v3083, %v3043
        %v3092 = vadd.f32 %v3084, 1e-05
        %v3093 = vadd.f32 %v3085, 1e-05
        %v3094 = vadd.f32 %v3086, 1e-05
        %v3095 = vadd.f32 %v3087, 1e-05
        %v3096 = vadd.f32 %v3088, 1e-05
        %v3097 = vadd.f32 %v3089, 1e-05
        %v3098 = vadd.f32 %v3090, 1e-05
        %v3099 = vadd.f32 %v3091, 1e-05
        %v3100 = vrsqrt.pop %v3092
        %v3101 = vmul.f32 %v3100, %v3092
        %v3102 = vmul.f32 %v3101, %v3100
        %v3103 = vmul.f32 0.5, %v3102
        %v3104 = vsub.f32 1.5, %v3103
        %v3105 = vmul.f32 %v3100, %v3104
        %vm3106 = vweird.f32 %v3092
        %vm3107 = vweird.f32 %v3100
        %vm3108 = vmor %vm3106, %vm3107
        %v3109 = vsel %vm3108, %v3100, %v3105
        %v3110 = vrsqrt.pop %v3093
        %v3111 = vmul.f32 %v3110, %v3093
        %v3112 = vmul.f32 %v3111, %v3110
        %v3113 = vmul.f32 0.5, %v3112
        %v3114 = vsub.f32 1.5, %v3113
        %v3115 = vmul.f32 %v3110, %v3114
        %vm3116 = vweird.f32 %v3093
        %vm3117 = vweird.f32 %v3110
        %vm3118 = vmor %vm3116, %vm3117
        %v3119 = vsel %vm3118, %v3110, %v3115
        %v3120 = vrsqrt.pop %v3094
        %v3121 = vmul.f32 %v3120, %v3094
        %v3122 = vmul.f32 %v3121, %v3120
        %v3123 = vmul.f32 0.5, %v3122
        %v3124 = vsub.f32 1.5, %v3123
        %v3125 = vmul.f32 %v3120, %v3124
        %vm3126 = vweird.f32 %v3094
        %vm3127 = vweird.f32 %v3120
        %vm3128 = vmor %vm3126, %vm3127
        %v3129 = vsel %vm3128, %v3120, %v3125
        %v3130 = vrsqrt.pop %v3095
        %v3131 = vmul.f32 %v3130, %v3095
        %v3132 = vmul.f32 %v3131, %v3130
        %v3133 = vmul.f32 0.5, %v3132
        %v3134 = vsub.f32 1.5, %v3133
        %v3135 = vmul.f32 %v3130, %v3134
        %vm3136 = vweird.f32 %v3095
        %vm3137 = vweird.f32 %v3130
        %vm3138 = vmor %vm3136, %vm3137
        %v3139 = vsel %vm3138, %v3130, %v3135
        %v3140 = vrsqrt.pop %v3096
        %v3141 = vmul.f32 %v3140, %v3096
        %v3142 = vmul.f32 %v3141, %v3140
        %v3143 = vmul.f32 0.5, %v3142
        %v3144 = vsub.f32 1.5, %v3143
        %v3145 = vmul.f32 %v3140, %v3144
        %vm3146 = vweird.f32 %v3096
        %vm3147 = vweird.f32 %v3140
        %vm3148 = vmor %vm3146, %vm3147
        %v3149 = vsel %vm3148, %v3140, %v3145
        %v3150 = vrsqrt.pop %v3097
        %v3151 = vmul.f32 %v3150, %v3097
        %v3152 = vmul.f32 %v3151, %v3150
        %v3153 = vmul.f32 0.5, %v3152
        %v3154 = vsub.f32 1.5, %v3153
        %v3155 = vmul.f32 %v3150, %v3154
        %vm3156 = vweird.f32 %v3097
        %vm3157 = vweird.f32 %v3150
        %vm3158 = vmor %vm3156, %vm3157
        %v3159 = vsel %vm3158, %v3150, %v3155
        %v3160 = vrsqrt.pop %v3098
        %v3161 = vmul.f32 %v3160, %v3098
        %v3162 = vmul.f32 %v3161, %v3160
        %v3163 = vmul.f32 0.5, %v3162
        %v3164 = vsub.f32 1.5, %v3163
        %v3165 = vmul.f32 %v3160, %v3164
        %vm3166 = vweird.f32 %v3098
        %vm3167 = vweird.f32 %v3160
        %vm3168 = vmor %vm3166, %vm3167
        %v3169 = vsel %vm3168, %v3160, %v3165
        %v3170 = vrsqrt.pop %v3099
        %v3171 = vmul.f32 %v3170, %v3099
        %v3172 = vmul.f32 %v3171, %v3170
        %v3173 = vmul.f32 0.5, %v3172
        %v3174 = vsub.f32 1.5, %v3173
        %v3175 = vmul.f32 %v3170, %v3174
        %vm3176 = vweird.f32 %v3099
        %vm3177 = vweird.f32 %v3170
        %vm3178 = vmor %vm3176, %vm3177
        %v3179 = vsel %vm3178, %v3170, %v3175
        %v3180 = vmul.f32 %v3052, %v3109
        %v3181 = vmul.f32 %v3053, %v3119
        %v3182 = vmul.f32 %v3054, %v3129
        %v3183 = vmul.f32 %v3055, %v3139
        %v3184 = vmul.f32 %v3056, %v3149
        %v3185 = vmul.f32 %v3057, %v3159
        %v3186 = vmul.f32 %v3058, %v3169
        %v3187 = vmul.f32 %v3059, %v3179
        %v3188 = vmul.f32 %v3180, %v3019
        %v3189 = vmul.f32 %v3181, %v3019
        %v3190 = vmul.f32 %v3182, %v3019
        %v3191 = vmul.f32 %v3183, %v3019
        %v3192 = vmul.f32 %v3184, %v3019
        %v3193 = vmul.f32 %v3185, %v3019
        %v3194 = vmul.f32 %v3186, %v3019
        %v3195 = vmul.f32 %v3187, %v3019
        %v3196 = vadd.f32 %v3188, %v3020
        %v3197 = vadd.f32 %v3189, %v3020
        %v3198 = vadd.f32 %v3190, %v3020
        %v3199 = vadd.f32 %v3191, %v3020
        %v3200 = vadd.f32 %v3192, %v3020
        %v3201 = vadd.f32 %v3193, %v3020
        %v3202 = vadd.f32 %v3194, %v3020
        %v3203 = vadd.f32 %v3195, %v3020
        %v3204 = vld [vmem:[#allocation11 + $0x80] sm:$0xff]
        %v3205 = vld [vmem:[#allocation11 + $0x88] sm:$0xff]
        %v3206 = vld [vmem:[#allocation11 + $0x90] sm:$0xff]
        %v3207 = vld [vmem:[#allocation11 + $0x98] sm:$0xff]
        %v3208 = vld [vmem:[#allocation11 + $0xa0] sm:$0xff]
        %v3209 = vld [vmem:[#allocation11 + $0xa8] sm:$0xff]
        %v3210 = vld [vmem:[#allocation11 + $0xb0] sm:$0xff]
        %v3211 = vld [vmem:[#allocation11 + $0xb8] sm:$0xff]
        %v3212 = vld [vmem:[#allocation11 + $0xc0] sm:$0xff]
        %v3213 = vld [vmem:[#allocation11 + $0xc8] sm:$0xff]
        %v3214 = vld [vmem:[#allocation11 + $0xd0] sm:$0xff]
        %v3215 = vld [vmem:[#allocation11 + $0xd8] sm:$0xff]
        %v3216 = vld [vmem:[#allocation11 + $0xe0] sm:$0xff]
        %v3217 = vld [vmem:[#allocation11 + $0xe8] sm:$0xff]
        %v3218 = vld [vmem:[#allocation11 + $0xf0] sm:$0xff]
        %v3219 = vld [vmem:[#allocation11 + $0xf8] sm:$0xff]
        %v3220 = vpack.c.bf16 %v3197, %v3196
        %v3221 = vpack.c.bf16 %v3199, %v3198
        %v3222 = vpack.c.bf16 %v3201, %v3200
        %v3223 = vpack.c.bf16 %v3203, %v3202
        %s3224 = scalar_lea.vmem [#allocation13], 320
        %v3225 = vld [vmem:[%s3224] ss:$8 sm:$0x3]
        %v3227 = vperm.slane %v3225, 0
        %v3228 = vperm.slane %v3225, 1
        %v3247 = vunpack.c.l.b16 %v3204
        %v3248 = vunpack.c.h.b16 %v3204
        %v3249 = vunpack.c.l.b16 %v3205
        %v3250 = vunpack.c.h.b16 %v3205
        %v3251 = vunpack.c.l.b16 %v3206
        %v3252 = vunpack.c.h.b16 %v3206
        %v3253 = vunpack.c.l.b16 %v3207
        %v3254 = vunpack.c.h.b16 %v3207
        %v3255 = vunpack.c.l.b16 %v3208
        %v3256 = vunpack.c.h.b16 %v3208
        %v3257 = vunpack.c.l.b16 %v3209
        %v3258 = vunpack.c.h.b16 %v3209
        %v3259 = vunpack.c.l.b16 %v3210
        %v3260 = vunpack.c.h.b16 %v3210
        %v3261 = vunpack.c.l.b16 %v3211
        %v3262 = vunpack.c.h.b16 %v3211
        %v3263 = vunpack.c.l.b16 %v3212
        %v3264 = vunpack.c.h.b16 %v3212
        %v3265 = vunpack.c.l.b16 %v3213
        %v3266 = vunpack.c.h.b16 %v3213
        %v3267 = vunpack.c.l.b16 %v3214
        %v3268 = vunpack.c.h.b16 %v3214
        %v3269 = vunpack.c.l.b16 %v3215
        %v3270 = vunpack.c.h.b16 %v3215
        %v3271 = vunpack.c.l.b16 %v3216
        %v3272 = vunpack.c.h.b16 %v3216
        %v3273 = vunpack.c.l.b16 %v3217
        %v3274 = vunpack.c.h.b16 %v3217
        %v3275 = vunpack.c.l.b16 %v3218
        %v3276 = vunpack.c.h.b16 %v3218
        %v3277 = vunpack.c.l.b16 %v3219
        %v3278 = vunpack.c.h.b16 %v3219
        %v3279 = vpack.c.b16 %v3249, %v3247
        %v3280 = vpack.c.b16 %v3250, %v3248
        %v3281 = vpack.c.b16 %v3253, %v3251
        %v3282 = vpack.c.b16 %v3254, %v3252
        %v3283 = vpack.c.b16 %v3257, %v3255
        %v3284 = vpack.c.b16 %v3258, %v3256
        %v3285 = vpack.c.b16 %v3261, %v3259
        %v3286 = vpack.c.b16 %v3262, %v3260
        %v3287 = vpack.c.b16 %v3265, %v3263
        %v3288 = vpack.c.b16 %v3266, %v3264
        %v3289 = vpack.c.b16 %v3269, %v3267
        %v3290 = vpack.c.b16 %v3270, %v3268
        %v3291 = vpack.c.b16 %v3273, %v3271
        %v3292 = vpack.c.b16 %v3274, %v3272
        %v3293 = vpack.c.b16 %v3277, %v3275
        %v3294 = vpack.c.b16 %v3278, %v3276
        %3311 = vmatpush.bf16.msra.mxu0 %v3293
        %3312 = vmatpush.bf16.msra.mxu0 %v3291
        %3313 = vmatpush.bf16.msra.mxu0 %v3289
        %3314 = vmatpush.bf16.msra.mxu0 %v3287
        %3315 = vmatpush.bf16.msra.mxu0 %v3285
        %3316 = vmatpush.bf16.msra.mxu0 %v3283
        %3317 = vmatpush.bf16.msra.mxu0 %v3281
        %3318 = vmatpush.bf16.msra.mxu0 %v3279
        %3319 = vmatmul.bf16.gmra.mxu0 %v3220
        %v3320 = vpop.f32.mrf.mxu0
        %v3321 = vadd.f32 %v3227, %v3320
        %v3322 = vpop.f32.mrf.mxu0
        %v3323 = vadd.f32 %v3227, %v3322
        %3324 = vmatmul.bf16.gmra.mxu0 %v3221
        %v3325 = vpop.f32.mrf.mxu0
        %v3326 = vadd.f32 %v3227, %v3325
        %v3327 = vpop.f32.mrf.mxu0
        %v3328 = vadd.f32 %v3227, %v3327
        %3329 = vmatmul.bf16.gmra.mxu0 %v3222
        %v3330 = vpop.f32.mrf.mxu0
        %v3331 = vadd.f32 %v3227, %v3330
        %v3332 = vpop.f32.mrf.mxu0
        %v3333 = vadd.f32 %v3227, %v3332
        %3334 = vmatmul.bf16.gmra.mxu0 %v3223
        %v3335 = vpop.f32.mrf.mxu0
        %v3336 = vadd.f32 %v3227, %v3335
        %v3337 = vpop.f32.mrf.mxu0
        %v3338 = vadd.f32 %v3227, %v3337
        %3339 = vdwg.mxu0
        %3340 = vmatpush.bf16.msra.mxu0 %v3294
        %3341 = vmatpush.bf16.msra.mxu0 %v3292
        %3342 = vmatpush.bf16.msra.mxu0 %v3290
        %3343 = vmatpush.bf16.msra.mxu0 %v3288
        %3344 = vmatpush.bf16.msra.mxu0 %v3286
        %3345 = vmatpush.bf16.msra.mxu0 %v3284
        %3346 = vmatpush.bf16.msra.mxu0 %v3282
        %3347 = vmatpush.bf16.msra.mxu0 %v3280
        %3348 = vmatmul.bf16.gmra.mxu0 %v3220
        %v3349 = vpop.f32.mrf.mxu0
        %v3350 = vadd.f32 %v3228, %v3349
        %v3351 = vpop.f32.mrf.mxu0
        %v3352 = vadd.f32 %v3228, %v3351
        %3353 = vmatmul.bf16.gmra.mxu0 %v3221
        %v3354 = vpop.f32.mrf.mxu0
        %v3355 = vadd.f32 %v3228, %v3354
        %v3356 = vpop.f32.mrf.mxu0
        %v3357 = vadd.f32 %v3228, %v3356
        %3358 = vmatmul.bf16.gmra.mxu0 %v3222
        %v3359 = vpop.f32.mrf.mxu0
        %v3360 = vadd.f32 %v3228, %v3359
        %v3361 = vpop.f32.mrf.mxu0
        %v3362 = vadd.f32 %v3228, %v3361
        %3363 = vmatmul.bf16.gmra.mxu0 %v3223
        %v3364 = vpop.f32.mrf.mxu0
        %v3365 = vadd.f32 %v3228, %v3364
        %v3366 = vpop.f32.mrf.mxu0
        %v3367 = vadd.f32 %v3228, %v3366
        %3368 = vdwg.mxu0
        %v3369 = vmax.f32 %v3321, 0.0
        %v3370 = vmax.f32 %v3350, 0.0
        %v3371 = vmax.f32 %v3323, 0.0
        %v3372 = vmax.f32 %v3352, 0.0
        %v3373 = vmax.f32 %v3326, 0.0
        %v3374 = vmax.f32 %v3355, 0.0
        %v3375 = vmax.f32 %v3328, 0.0
        %v3376 = vmax.f32 %v3357, 0.0
        %v3377 = vmax.f32 %v3331, 0.0
        %v3378 = vmax.f32 %v3360, 0.0
        %v3379 = vmax.f32 %v3333, 0.0
        %v3380 = vmax.f32 %v3362, 0.0
        %v3381 = vmax.f32 %v3336, 0.0
        %v3382 = vmax.f32 %v3365, 0.0
        %v3383 = vmax.f32 %v3338, 0.0
        %v3384 = vmax.f32 %v3367, 0.0
        %v3385 = vld [vmem:[#allocation10 + $0x370] sm:$0xf]
        %v3386 = vld [vmem:[#allocation10 + $0x374] sm:$0xf]
        %v3387 = vld [vmem:[#allocation10 + $0x378] sm:$0xf]
        %v3388 = vld [vmem:[#allocation10 + $0x37c] sm:$0xf]
        %v3389 = vld [vmem:[#allocation10 + $0x380] sm:$0xf]
        %v3390 = vld [vmem:[#allocation10 + $0x384] sm:$0xf]
        %v3391 = vld [vmem:[#allocation10 + $0x388] sm:$0xf]
        %v3392 = vld [vmem:[#allocation10 + $0x38c] sm:$0xf]
        %v3393 = vld [vmem:[#allocation10 + $0x390] sm:$0xf]
        %v3394 = vld [vmem:[#allocation10 + $0x394] sm:$0xf]
        %v3395 = vld [vmem:[#allocation10 + $0x398] sm:$0xf]
        %v3396 = vld [vmem:[#allocation10 + $0x39c] sm:$0xf]
        %v3397 = vld [vmem:[#allocation10 + $0x3a0] sm:$0xf]
        %v3398 = vld [vmem:[#allocation10 + $0x3a4] sm:$0xf]
        %v3399 = vld [vmem:[#allocation10 + $0x3a8] sm:$0xf]
        %v3400 = vld [vmem:[#allocation10 + $0x3ac] sm:$0xf]
        %v3401 = vld [vmem:[#allocation10 + $0x3b0] sm:$0xf]
        %v3402 = vld [vmem:[#allocation10 + $0x3b4] sm:$0xf]
        %v3403 = vld [vmem:[#allocation10 + $0x3b8] sm:$0xf]
        %v3404 = vld [vmem:[#allocation10 + $0x3bc] sm:$0xf]
        %v3405 = vld [vmem:[#allocation10 + $0x3c0] sm:$0xf]
        %v3406 = vld [vmem:[#allocation10 + $0x3c4] sm:$0xf]
        %v3407 = vld [vmem:[#allocation10 + $0x3c8] sm:$0xf]
        %v3408 = vld [vmem:[#allocation10 + $0x3cc] sm:$0xf]
        %v3409 = vld [vmem:[#allocation10 + $0x3d0] sm:$0xf]
        %v3410 = vld [vmem:[#allocation10 + $0x3d4] sm:$0xf]
        %v3411 = vld [vmem:[#allocation10 + $0x3d8] sm:$0xf]
        %v3412 = vld [vmem:[#allocation10 + $0x3dc] sm:$0xf]
        %v3413 = vld [vmem:[#allocation10 + $0x3e0] sm:$0xf]
        %v3414 = vld [vmem:[#allocation10 + $0x3e4] sm:$0xf]
        %v3415 = vld [vmem:[#allocation10 + $0x3e8] sm:$0xf]
        %v3416 = vld [vmem:[#allocation10 + $0x3ec] sm:$0xf]
        %v3417 = vpack.c.bf16 %v3371, %v3369
        %v3418 = vpack.c.bf16 %v3372, %v3370
        %v3419 = vpack.c.bf16 %v3375, %v3373
        %v3420 = vpack.c.bf16 %v3376, %v3374
        %v3421 = vpack.c.bf16 %v3379, %v3377
        %v3422 = vpack.c.bf16 %v3380, %v3378
        %v3423 = vpack.c.bf16 %v3383, %v3381
        %v3424 = vpack.c.bf16 %v3384, %v3382
        %v3425 = vld [vmem:[#allocation13 + $0x150] ss:$0 sm:$0xff]
        %v3458 = vunpack.c.l.b16 %v3385
        %v3459 = vunpack.c.l.b16 %v3386
        %v3460 = vunpack.c.l.b16 %v3387
        %v3461 = vunpack.c.l.b16 %v3388
        %v3462 = vunpack.c.l.b16 %v3389
        %v3463 = vunpack.c.l.b16 %v3390
        %v3464 = vunpack.c.l.b16 %v3391
        %v3465 = vunpack.c.l.b16 %v3392
        %v3466 = vunpack.c.l.b16 %v3393
        %v3467 = vunpack.c.l.b16 %v3394
        %v3468 = vunpack.c.l.b16 %v3395
        %v3469 = vunpack.c.l.b16 %v3396
        %v3470 = vunpack.c.l.b16 %v3397
        %v3471 = vunpack.c.l.b16 %v3398
        %v3472 = vunpack.c.l.b16 %v3399
        %v3473 = vunpack.c.l.b16 %v3400
        %v3474 = vunpack.c.l.b16 %v3401
        %v3475 = vunpack.c.l.b16 %v3402
        %v3476 = vunpack.c.l.b16 %v3403
        %v3477 = vunpack.c.l.b16 %v3404
        %v3478 = vunpack.c.l.b16 %v3405
        %v3479 = vunpack.c.l.b16 %v3406
        %v3480 = vunpack.c.l.b16 %v3407
        %v3481 = vunpack.c.l.b16 %v3408
        %v3482 = vunpack.c.l.b16 %v3409
        %v3483 = vunpack.c.l.b16 %v3410
        %v3484 = vunpack.c.l.b16 %v3411
        %v3485 = vunpack.c.l.b16 %v3412
        %v3486 = vunpack.c.l.b16 %v3413
        %v3487 = vunpack.c.l.b16 %v3414
        %v3488 = vunpack.c.l.b16 %v3415
        %v3489 = vunpack.c.l.b16 %v3416
        %v3490 = vpack.c.b16 %v3459, %v3458
        %v3491 = vpack.c.b16 %v3461, %v3460
        %v3492 = vpack.c.b16 %v3463, %v3462
        %v3493 = vpack.c.b16 %v3465, %v3464
        %v3494 = vpack.c.b16 %v3467, %v3466
        %v3495 = vpack.c.b16 %v3469, %v3468
        %v3496 = vpack.c.b16 %v3471, %v3470
        %v3497 = vpack.c.b16 %v3473, %v3472
        %v3498 = vpack.c.b16 %v3475, %v3474
        %v3499 = vpack.c.b16 %v3477, %v3476
        %v3500 = vpack.c.b16 %v3479, %v3478
        %v3501 = vpack.c.b16 %v3481, %v3480
        %v3502 = vpack.c.b16 %v3483, %v3482
        %v3503 = vpack.c.b16 %v3485, %v3484
        %v3504 = vpack.c.b16 %v3487, %v3486
        %v3505 = vpack.c.b16 %v3489, %v3488
        %3522 = vmatpush.bf16.msra.mxu0 %v3497
        %3523 = vmatpush.bf16.msra.mxu0 %v3496
        %3524 = vmatpush.bf16.msra.mxu0 %v3495
        %3525 = vmatpush.bf16.msra.mxu0 %v3494
        %3526 = vmatpush.bf16.msra.mxu0 %v3493
        %3527 = vmatpush.bf16.msra.mxu0 %v3492
        %3528 = vmatpush.bf16.msra.mxu0 %v3491
        %3529 = vmatpush.bf16.msra.mxu0 %v3490
        %3530 = vmatmul.bf16.gmra.mxu0 %v3417
        %v3531 = vpop.f32.mrf.mxu0
        %v3532 = vadd.f32 %v3425, %v3531
        %v3533 = vpop.f32.mrf.mxu0
        %v3534 = vadd.f32 %v3425, %v3533
        %3535 = vmatmul.bf16.gmra.mxu0 %v3419
        %v3536 = vpop.f32.mrf.mxu0
        %v3537 = vadd.f32 %v3425, %v3536
        %v3538 = vpop.f32.mrf.mxu0
        %v3539 = vadd.f32 %v3425, %v3538
        %3540 = vmatmul.bf16.gmra.mxu0 %v3421
        %v3541 = vpop.f32.mrf.mxu0
        %v3542 = vadd.f32 %v3425, %v3541
        %v3543 = vpop.f32.mrf.mxu0
        %v3544 = vadd.f32 %v3425, %v3543
        %3545 = vmatmul.bf16.gmra.mxu0 %v3423
        %v3546 = vpop.f32.mrf.mxu0
        %v3547 = vadd.f32 %v3425, %v3546
        %v3548 = vpop.f32.mrf.mxu0
        %v3549 = vadd.f32 %v3425, %v3548
        %3550 = vdwg.mxu0
        %3551 = vmatpush.bf16.msra.mxu0 %v3505
        %3552 = vmatpush.bf16.msra.mxu0 %v3504
        %3553 = vmatpush.bf16.msra.mxu0 %v3503
        %3554 = vmatpush.bf16.msra.mxu0 %v3502
        %3555 = vmatpush.bf16.msra.mxu0 %v3501
        %3556 = vmatpush.bf16.msra.mxu0 %v3500
        %3557 = vmatpush.bf16.msra.mxu0 %v3499
        %3558 = vmatpush.bf16.msra.mxu0 %v3498
        %3559 = vmatmul.bf16.gmra.mxu0 %v3418
        %v3560 = vpop.f32.mrf.mxu0
        %v3561 = vadd.f32 %v3532, %v3560
        %v3562 = vpop.f32.mrf.mxu0
        %v3563 = vadd.f32 %v3534, %v3562
        %3564 = vmatmul.bf16.gmra.mxu0 %v3420
        %v3565 = vpop.f32.mrf.mxu0
        %v3566 = vadd.f32 %v3537, %v3565
        %v3567 = vpop.f32.mrf.mxu0
        %v3568 = vadd.f32 %v3539, %v3567
        %3569 = vmatmul.bf16.gmra.mxu0 %v3422
        %v3570 = vpop.f32.mrf.mxu0
        %v3571 = vadd.f32 %v3542, %v3570
        %v3572 = vpop.f32.mrf.mxu0
        %v3573 = vadd.f32 %v3544, %v3572
        %3574 = vmatmul.bf16.gmra.mxu0 %v3424
        %v3575 = vpop.f32.mrf.mxu0
        %v3576 = vadd.f32 %v3547, %v3575
        %v3577 = vpop.f32.mrf.mxu0
        %v3578 = vadd.f32 %v3549, %v3577
        %3579 = vdwg.mxu0
        %v3580 = vadd.f32 %v3196, %v3561
        %v3581 = vadd.f32 %v3197, %v3563
        %v3582 = vadd.f32 %v3198, %v3566
        %v3583 = vadd.f32 %v3199, %v3568
        %v3584 = vadd.f32 %v3200, %v3571
        %v3585 = vadd.f32 %v3201, %v3573
        %v3586 = vadd.f32 %v3202, %v3576
        %v3587 = vadd.f32 %v3203, %v3578
        %v3588 = vld [vmem:[#allocation13 + $0x180] ss:$0 sm:$0xff]
        %v3589 = vld [vmem:[#allocation13 + $0x190] ss:$0 sm:$0xff]
        %3590 = vadd.xlane.f32.xlu0 %v3580
        %v3591 = vpop.xlane.xlu0 %3590
        %3592 = vadd.xlane.f32.xlu0 %v3581
        %v3593 = vpop.xlane.xlu0 %3592
        %3594 = vadd.xlane.f32.xlu0 %v3582
        %v3595 = vpop.xlane.xlu0 %3594
        %3596 = vadd.xlane.f32.xlu0 %v3583
        %v3597 = vpop.xlane.xlu0 %3596
        %3598 = vadd.xlane.f32.xlu0 %v3584
        %v3599 = vpop.xlane.xlu0 %3598
        %3600 = vadd.xlane.f32.xlu0 %v3585
        %v3601 = vpop.xlane.xlu0 %3600
        %3602 = vadd.xlane.f32.xlu0 %v3586
        %v3603 = vpop.xlane.xlu0 %3602
        %3604 = vadd.xlane.f32.xlu0 %v3587
        %v3605 = vpop.xlane.xlu0 %3604
        %v3606 = vmul.f32 %v3591, %v3043
        %v3607 = vmul.f32 %v3593, %v3043
        %v3608 = vmul.f32 %v3595, %v3043
        %v3609 = vmul.f32 %v3597, %v3043
        %v3610 = vmul.f32 %v3599, %v3043
        %v3611 = vmul.f32 %v3601, %v3043
        %v3612 = vmul.f32 %v3603, %v3043
        %v3613 = vmul.f32 %v3605, %v3043
        %v3614 = vsub.f32 %v3580, %v3606
        %v3615 = vsub.f32 %v3581, %v3607
        %v3616 = vsub.f32 %v3582, %v3608
        %v3617 = vsub.f32 %v3583, %v3609
        %v3618 = vsub.f32 %v3584, %v3610
        %v3619 = vsub.f32 %v3585, %v3611
        %v3620 = vsub.f32 %v3586, %v3612
        %v3621 = vsub.f32 %v3587, %v3613
        %v3622 = vmul.f32 %v3614, %v3614
        %v3623 = vmul.f32 %v3615, %v3615
        %v3624 = vmul.f32 %v3616, %v3616
        %v3625 = vmul.f32 %v3617, %v3617
        %v3626 = vmul.f32 %v3618, %v3618
        %v3627 = vmul.f32 %v3619, %v3619
        %v3628 = vmul.f32 %v3620, %v3620
        %v3629 = vmul.f32 %v3621, %v3621
        %3630 = vadd.xlane.f32.xlu0 %v3622
        %v3631 = vpop.xlane.xlu0 %3630
        %3632 = vadd.xlane.f32.xlu0 %v3623
        %v3633 = vpop.xlane.xlu0 %3632
        %3634 = vadd.xlane.f32.xlu0 %v3624
        %v3635 = vpop.xlane.xlu0 %3634
        %3636 = vadd.xlane.f32.xlu0 %v3625
        %v3637 = vpop.xlane.xlu0 %3636
        %3638 = vadd.xlane.f32.xlu0 %v3626
        %v3639 = vpop.xlane.xlu0 %3638
        %3640 = vadd.xlane.f32.xlu0 %v3627
        %v3641 = vpop.xlane.xlu0 %3640
        %3642 = vadd.xlane.f32.xlu0 %v3628
        %v3643 = vpop.xlane.xlu0 %3642
        %3644 = vadd.xlane.f32.xlu0 %v3629
        %v3645 = vpop.xlane.xlu0 %3644
        %v3646 = vmul.f32 %v3631, %v3043
        %v3647 = vmul.f32 %v3633, %v3043
        %v3648 = vmul.f32 %v3635, %v3043
        %v3649 = vmul.f32 %v3637, %v3043
        %v3650 = vmul.f32 %v3639, %v3043
        %v3651 = vmul.f32 %v3641, %v3043
        %v3652 = vmul.f32 %v3643, %v3043
        %v3653 = vmul.f32 %v3645, %v3043
        %v3654 = vadd.f32 %v3646, 1e-05
        %v3655 = vadd.f32 %v3647, 1e-05
        %v3656 = vadd.f32 %v3648, 1e-05
        %v3657 = vadd.f32 %v3649, 1e-05
        %v3658 = vadd.f32 %v3650, 1e-05
        %v3659 = vadd.f32 %v3651, 1e-05
        %v3660 = vadd.f32 %v3652, 1e-05
        %v3661 = vadd.f32 %v3653, 1e-05
        %v3662 = vrsqrt.pop %v3654
        %v3663 = vmul.f32 %v3662, %v3654
        %v3664 = vmul.f32 %v3663, %v3662
        %v3665 = vmul.f32 0.5, %v3664
        %v3666 = vsub.f32 1.5, %v3665
        %v3667 = vmul.f32 %v3662, %v3666
        %vm3668 = vweird.f32 %v3654
        %vm3669 = vweird.f32 %v3662
        %vm3670 = vmor %vm3668, %vm3669
        %v3671 = vsel %vm3670, %v3662, %v3667
        %v3672 = vrsqrt.pop %v3655
        %v3673 = vmul.f32 %v3672, %v3655
        %v3674 = vmul.f32 %v3673, %v3672
        %v3675 = vmul.f32 0.5, %v3674
        %v3676 = vsub.f32 1.5, %v3675
        %v3677 = vmul.f32 %v3672, %v3676
        %vm3678 = vweird.f32 %v3655
        %vm3679 = vweird.f32 %v3672
        %vm3680 = vmor %vm3678, %vm3679
        %v3681 = vsel %vm3680, %v3672, %v3677
        %v3682 = vrsqrt.pop %v3656
        %v3683 = vmul.f32 %v3682, %v3656
        %v3684 = vmul.f32 %v3683, %v3682
        %v3685 = vmul.f32 0.5, %v3684
        %v3686 = vsub.f32 1.5, %v3685
        %v3687 = vmul.f32 %v3682, %v3686
        %vm3688 = vweird.f32 %v3656
        %vm3689 = vweird.f32 %v3682
        %vm3690 = vmor %vm3688, %vm3689
        %v3691 = vsel %vm3690, %v3682, %v3687
        %v3692 = vrsqrt.pop %v3657
        %v3693 = vmul.f32 %v3692, %v3657
        %v3694 = vmul.f32 %v3693, %v3692
        %v3695 = vmul.f32 0.5, %v3694
        %v3696 = vsub.f32 1.5, %v3695
        %v3697 = vmul.f32 %v3692, %v3696
        %vm3698 = vweird.f32 %v3657
        %vm3699 = vweird.f32 %v3692
        %vm3700 = vmor %vm3698, %vm3699
        %v3701 = vsel %vm3700, %v3692, %v3697
        %v3702 = vrsqrt.pop %v3658
        %v3703 = vmul.f32 %v3702, %v3658
        %v3704 = vmul.f32 %v3703, %v3702
        %v3705 = vmul.f32 0.5, %v3704
        %v3706 = vsub.f32 1.5, %v3705
        %v3707 = vmul.f32 %v3702, %v3706
        %vm3708 = vweird.f32 %v3658
        %vm3709 = vweird.f32 %v3702
        %vm3710 = vmor %vm3708, %vm3709
        %v3711 = vsel %vm3710, %v3702, %v3707
        %v3712 = vrsqrt.pop %v3659
        %v3713 = vmul.f32 %v3712, %v3659
        %v3714 = vmul.f32 %v3713, %v3712
        %v3715 = vmul.f32 0.5, %v3714
        %v3716 = vsub.f32 1.5, %v3715
        %v3717 = vmul.f32 %v3712, %v3716
        %vm3718 = vweird.f32 %v3659
        %vm3719 = vweird.f32 %v3712
        %vm3720 = vmor %vm3718, %vm3719
        %v3721 = vsel %vm3720, %v3712, %v3717
        %v3722 = vrsqrt.pop %v3660
        %v3723 = vmul.f32 %v3722, %v3660
        %v3724 = vmul.f32 %v3723, %v3722
        %v3725 = vmul.f32 0.5, %v3724
        %v3726 = vsub.f32 1.5, %v3725
        %v3727 = vmul.f32 %v3722, %v3726
        %vm3728 = vweird.f32 %v3660
        %vm3729 = vweird.f32 %v3722
        %vm3730 = vmor %vm3728, %vm3729
        %v3731 = vsel %vm3730, %v3722, %v3727
        %v3732 = vrsqrt.pop %v3661
        %v3733 = vmul.f32 %v3732, %v3661
        %v3734 = vmul.f32 %v3733, %v3732
        %v3735 = vmul.f32 0.5, %v3734
        %v3736 = vsub.f32 1.5, %v3735
        %v3737 = vmul.f32 %v3732, %v3736
        %vm3738 = vweird.f32 %v3661
        %vm3739 = vweird.f32 %v3732
        %vm3740 = vmor %vm3738, %vm3739
        %v3741 = vsel %vm3740, %v3732, %v3737
        %v3742 = vmul.f32 %v3614, %v3671
        %v3743 = vmul.f32 %v3615, %v3681
        %v3744 = vmul.f32 %v3616, %v3691
        %v3745 = vmul.f32 %v3617, %v3701
        %v3746 = vmul.f32 %v3618, %v3711
        %v3747 = vmul.f32 %v3619, %v3721
        %v3748 = vmul.f32 %v3620, %v3731
        %v3749 = vmul.f32 %v3621, %v3741
        %v3750 = vmul.f32 %v3742, %v3588
        %v3751 = vmul.f32 %v3743, %v3588
        %v3752 = vmul.f32 %v3744, %v3588
        %v3753 = vmul.f32 %v3745, %v3588
        %v3754 = vmul.f32 %v3746, %v3588
        %v3755 = vmul.f32 %v3747, %v3588
        %v3756 = vmul.f32 %v3748, %v3588
        %v3757 = vmul.f32 %v3749, %v3588
        %v3758 = vadd.f32 %v3750, %v3589
        %v3759 = vadd.f32 %v3751, %v3589
        %v3760 = vadd.f32 %v3752, %v3589
        %v3761 = vadd.f32 %v3753, %v3589
        %v3762 = vadd.f32 %v3754, %v3589
        %v3763 = vadd.f32 %v3755, %v3589
        %v3764 = vadd.f32 %v3756, %v3589
        %v3765 = vadd.f32 %v3757, %v3589
        %v3766 = vld [vmem:[#allocation10 + $0x3f0] sm:$0xf]
        %v3767 = vld [vmem:[#allocation10 + $0x3f4] sm:$0xf]
        %v3768 = vld [vmem:[#allocation10 + $0x3f8] sm:$0xf]
        %v3769 = vld [vmem:[#allocation10 + $0x3fc] sm:$0xf]
        %v3770 = vld [vmem:[#allocation10 + $0x400] sm:$0xf]
        %v3771 = vld [vmem:[#allocation10 + $0x404] sm:$0xf]
        %v3772 = vld [vmem:[#allocation10 + $0x408] sm:$0xf]
        %v3773 = vld [vmem:[#allocation10 + $0x40c] sm:$0xf]
        %v3774 = vld [vmem:[#allocation10 + $0x410] sm:$0xf]
        %v3775 = vld [vmem:[#allocation10 + $0x414] sm:$0xf]
        %v3776 = vld [vmem:[#allocation10 + $0x418] sm:$0xf]
        %v3777 = vld [vmem:[#allocation10 + $0x41c] sm:$0xf]
        %v3778 = vld [vmem:[#allocation10 + $0x420] sm:$0xf]
        %v3779 = vld [vmem:[#allocation10 + $0x424] sm:$0xf]
        %v3780 = vld [vmem:[#allocation10 + $0x428] sm:$0xf]
        %v3781 = vld [vmem:[#allocation10 + $0x42c] sm:$0xf]
        %v3782 = vpack.c.bf16 %v3759, %v3758
        %v3783 = vpack.c.bf16 %v3761, %v3760
        %v3784 = vpack.c.bf16 %v3763, %v3762
        %v3785 = vpack.c.bf16 %v3765, %v3764
        %v3786 = vld [vmem:[#allocation13 + $0x1a0] ss:$0 sm:$0xff]
        %v3803 = vunpack.c.l.b16 %v3766
        %v3804 = vunpack.c.l.b16 %v3767
        %v3805 = vunpack.c.l.b16 %v3768
        %v3806 = vunpack.c.l.b16 %v3769
        %v3807 = vunpack.c.l.b16 %v3770
        %v3808 = vunpack.c.l.b16 %v3771
        %v3809 = vunpack.c.l.b16 %v3772
        %v3810 = vunpack.c.l.b16 %v3773
        %v3811 = vunpack.c.l.b16 %v3774
        %v3812 = vunpack.c.l.b16 %v3775
        %v3813 = vunpack.c.l.b16 %v3776
        %v3814 = vunpack.c.l.b16 %v3777
        %v3815 = vunpack.c.l.b16 %v3778
        %v3816 = vunpack.c.l.b16 %v3779
        %v3817 = vunpack.c.l.b16 %v3780
        %v3818 = vunpack.c.l.b16 %v3781
        %v3819 = vpack.c.b16 %v3804, %v3803
        %v3820 = vpack.c.b16 %v3806, %v3805
        %v3821 = vpack.c.b16 %v3808, %v3807
        %v3822 = vpack.c.b16 %v3810, %v3809
        %v3823 = vpack.c.b16 %v3812, %v3811
        %v3824 = vpack.c.b16 %v3814, %v3813
        %v3825 = vpack.c.b16 %v3816, %v3815
        %v3826 = vpack.c.b16 %v3818, %v3817
        %3835 = vmatpush.bf16.msra.mxu0 %v3826
        %3836 = vmatpush.bf16.msra.mxu0 %v3825
        %3837 = vmatpush.bf16.msra.mxu0 %v3824
        %3838 = vmatpush.bf16.msra.mxu0 %v3823
        %3839 = vmatpush.bf16.msra.mxu0 %v3822
        %3840 = vmatpush.bf16.msra.mxu0 %v3821
        %3841 = vmatpush.bf16.msra.mxu0 %v3820
        %3842 = vmatpush.bf16.msra.mxu0 %v3819
        %3843 = vmatmul.bf16.gmra.mxu0 %v3782
        %v3844 = vpop.f32.mrf.mxu0
        %v3845 = vadd.f32 %v3786, %v3844
        %v3846 = vpop.f32.mrf.mxu0
        %v3847 = vadd.f32 %v3786, %v3846
        %3848 = vmatmul.bf16.gmra.mxu0 %v3783
        %v3849 = vpop.f32.mrf.mxu0
        %v3850 = vadd.f32 %v3786, %v3849
        %v3851 = vpop.f32.mrf.mxu0
        %v3852 = vadd.f32 %v3786, %v3851
        %3853 = vmatmul.bf16.gmra.mxu0 %v3784
        %v3854 = vpop.f32.mrf.mxu0
        %v3855 = vadd.f32 %v3786, %v3854
        %v3856 = vpop.f32.mrf.mxu0
        %v3857 = vadd.f32 %v3786, %v3856
        %3858 = vmatmul.bf16.gmra.mxu0 %v3785
        %v3859 = vpop.f32.mrf.mxu0
        %v3860 = vadd.f32 %v3786, %v3859
        %v3861 = vpop.f32.mrf.mxu0
        %v3862 = vadd.f32 %v3786, %v3861
        %3863 = vdwg.mxu0
        %3864 = vst [vmem:[%s522] sm:$0xff] %v3845
        %3865 = vst [vmem:[%s522 + $0x8] sm:$0xff] %v3847
        %3866 = vst [vmem:[%s522 + $0x10] sm:$0xff] %v3850
        %3867 = vst [vmem:[%s522 + $0x18] sm:$0xff] %v3852
        %3868 = vst [vmem:[%s522 + $0x20] sm:$0xff] %v3855
        %3869 = vst [vmem:[%s522 + $0x28] sm:$0xff] %v3857
        %3870 = vst [vmem:[%s522 + $0x30] sm:$0xff] %v3860
        %3871 = vst [vmem:[%s522 + $0x38] sm:$0xff] %v3862
        %s3872 = sand.u32 %s212, 1
        %s3873 = scalar_lea.sflag [#allocation4], %s3872
        %s3874 = sand.u32 %s212, 1
        %s3875 = smul.addr %s3874, 64
        %s3876 = scalar_lea.vmem [#allocation14], %s3875
        %s3877 = sand.u32 %s37, 1
        %s3878 = scalar_lea.sflag [#allocation16], %s3877
        %s3879 = sand.u32 %s238, 1
        %s3880 = smul.addr %s3879, 8
        %s3881 = scalar_lea.vmem [#allocation15], %s3880
        %s3882 = sand.u32 %s37, 1
        %s3883 = scalar_lea.sflag [#allocation16], %s3882
        %s3884 = sand.u32 %s264, 1
        %s3885 = smul.addr %s3884, 64
        %s3886 = scalar_lea.vmem [#allocation17], %s3885
        // Predicated region
        $region77: #{tpu_custom_call.1} parent=47 // pred_check
          %p3887 = pneg %p222
        $region78: #{tpu_custom_call.1} parent=47 // pred_check_branch
          %3889 = sbr.rel (%p3887) target = $region80
        $region79: #{tpu_custom_call.1} parent=47 // pred_region
          %3891 = vsyncadd %s3873, 0
          %s3892 = smul.addr %s37, 8
          %s3893 = smul.addr %s3892, 8
          %s3894 = scalar_lea.hbm %s7, %s3893
          %s3895 = sshll.u32 %s3876, 4
          %s3896 = int_to_ptr.vmem [resolvable:$true] %s3895
          %s3897 = sshll.u32 %s3894, 4
          %s3898 = int_to_ptr.hbm [resolvable:$true] %s3897
          %3903 = dma.vmem_to_hbm [thread:$0]  %s3896, 1024, %s3898, %s3873, 128, 128, 8
        $region80: #{tpu_custom_call.1} parent=47 // pred_fallthru
          _
        // Predicated region
        $region81: #{tpu_custom_call.1} parent=47 // pred_check
          %p3904 = pneg %p248
        $region82: #{tpu_custom_call.1} parent=47 // pred_check_branch
          %3906 = sbr.rel (%p3904) target = $region84
        $region83: #{tpu_custom_call.1} parent=47 // pred_region
          %3908 = vsyncadd %s3878, 0
          %s3909 = smul.addr %s37, 8
          %s3910 = scalar_lea.hbm %s8, %s3909
          %s3912 = sshll.u32 %s3881, 4
          %s3913 = int_to_ptr.vmem [resolvable:$true] %s3912
          %s3914 = sshll.u32 %s3910, 4
          %s3915 = int_to_ptr.hbm [resolvable:$true] %s3914
          %3917 = dma.vmem_to_hbm [thread:$0]  %s3913, 128, %s3915, %s3878
        $region84: #{tpu_custom_call.1} parent=47 // pred_fallthru
          _
        // Predicated region
        $region85: #{tpu_custom_call.1} parent=47 // pred_check
          %p3918 = pneg %p274
        $region86: #{tpu_custom_call.1} parent=47 // pred_check_branch
          %3920 = sbr.rel (%p3918) target = $region88
        $region87: #{tpu_custom_call.1} parent=47 // pred_region
          %3922 = vsyncadd %s3883, 0
          %s3923 = smul.addr %s37, 8
          %s3924 = smul.addr %s3923, 8
          %s3925 = scalar_lea.hbm %s9, %s3924
          %s3926 = sshll.u32 %s3886, 4
          %s3927 = int_to_ptr.vmem [resolvable:$true] %s3926
          %s3928 = sshll.u32 %s3925, 4
          %s3929 = int_to_ptr.hbm [resolvable:$true] %s3928
          %3934 = dma.vmem_to_hbm [thread:$0]  %s3927, 1024, %s3929, %s3883, 128, 128, 8
        $region88: #{tpu_custom_call.1} parent=47 // pred_fallthru
          _
      $region48: #{tpu_custom_call.1} parent=5 // pred_fallthru
        _
      %p3935 = scmp.le.s32.totalorder 2, %s32
      // Predicated region
      $region89: #{tpu_custom_call.1} parent=5 // pred_check
        %p3936 = pneg %p3935
      $region90: #{tpu_custom_call.1} parent=5 // pred_check_branch
        %3938 = sbr.rel (%p3936) target = $region92
      $region91: #{tpu_custom_call.1} parent=5 // pred_region
        %s3939 = ssub.s32 %s32, 2
        // Predicated region
        $region93: #{tpu_custom_call.1} parent=91 // pred_check
          %p3940 = pneg %p228
        $region94: #{tpu_custom_call.1} parent=91 // pred_check_branch
          %3942 = sbr.rel (%p3940) target = $region96
        $region95: #{tpu_custom_call.1} parent=91 // pred_region
          %s3943 = sand.u32 %s213, 1
          %s3944 = scalar_lea.sflag [#allocation4], %s3943
          %s3945 = sand.u32 %s213, 1
          %s3946 = smul.addr %s3945, 64
          %s3947 = scalar_lea.vmem [#allocation14], %s3946
          %3949 = dma.done %s3944, 1024
        $region96: #{tpu_custom_call.1} parent=91 // pred_fallthru
          _
        // Predicated region
        $region97: #{tpu_custom_call.1} parent=91 // pred_check
          %p3950 = pneg %p254
        $region98: #{tpu_custom_call.1} parent=91 // pred_check_branch
          %3952 = sbr.rel (%p3950) target = $region100
        $region99: #{tpu_custom_call.1} parent=91 // pred_region
          %s3953 = sand.u32 %s38, 1
          %s3954 = scalar_lea.sflag [#allocation16], %s3953
          %s3955 = sand.u32 %s239, 1
          %s3956 = smul.addr %s3955, 8
          %s3957 = scalar_lea.vmem [#allocation15], %s3956
          %3959 = dma.done %s3954, 128
        $region100: #{tpu_custom_call.1} parent=91 // pred_fallthru
          _
        // Predicated region
        $region101: #{tpu_custom_call.1} parent=91 // pred_check
          %p3960 = pneg %p280
        $region102: #{tpu_custom_call.1} parent=91 // pred_check_branch
          %3962 = sbr.rel (%p3960) target = $region104
        $region103: #{tpu_custom_call.1} parent=91 // pred_region
          %s3963 = sand.u32 %s38, 1
          %s3964 = scalar_lea.sflag [#allocation16], %s3963
          %s3965 = sand.u32 %s265, 1
          %s3966 = smul.addr %s3965, 64
          %s3967 = scalar_lea.vmem [#allocation17], %s3966
          %3969 = dma.done %s3964, 1024
        $region104: #{tpu_custom_call.1} parent=91 // pred_fallthru
          _
      $region92: #{tpu_custom_call.1} parent=5 // pred_fallthru
        _
    $region6: #{tpu_custom_call.1} parent=1 // loop_footer
      %s36 = sadd.s32 1, %s32
    $region7: #{tpu_custom_call.1} parent=1 // loop_footer_branch
      %31 = sbr.rel target = $region3
    $region8: #{tpu_custom_call.1} parent=1 // loop_exit
      _
    %3970 = vsyncpa [#allocation3], 1
    %s3971 = scalar_lea.sflag [#allocation3], 1
    %3972 = vsyncpa %s3971, 1
    %3973 = vsyncpa [#allocation6], 1
    %s3974 = scalar_lea.sflag [#allocation6], 1
    %3975 = vsyncpa %s3974, 1
    %3976 = vsyncpa [#allocation9], 1
    %s3977 = scalar_lea.sflag [#allocation9], 1
    %3978 = vsyncpa %s3977, 1
    %3979 = vsyncpa [#allocation12], 1
    %3980 = vsyncpa [#allocation4], 1
    %s3981 = scalar_lea.sflag [#allocation4], 1
    %3982 = vsyncpa %s3981, 1
    %3983 = vsyncpa [#allocation16], 1
    %s3984 = scalar_lea.sflag [#allocation16], 1
    %3985 = vsyncpa %s3984, 1

</llo_original>
